<compile_context>
chip_gen: v7x
topology: tpu7x:2x2x1
jax: 0.10.0
libtpu: 0.0.40
codegen_flags: <defaults>
</compile_context>

<pallas_src>
import functools

import jax
import jax.numpy as jnp
import numpy as np
from jax.experimental import pallas as pl
from jax.experimental.pallas import tpu as pltpu

# Full-f32 matmuls so the f32 demo path compares tightly with the pure-JAX
# reference.  Production should use matmul_dtype=jnp.bfloat16 and drop this.
jax.config.update("jax_default_matmul_precision", "highest")


def _mamba_kernel(x_ref,
                  w_in_ref, b_in_ref,
                  conv_w_ref, conv_b_ref,
                  w_x_ref, b_x_ref,
                  neg_a_ref,
                  w_out_ref, b_out_ref,
                  o_ref,
                  conv_scr, xse_scr, delta_scr, du_scr, b_scr, c_scr,
                  st_scr, states_scr, y_scr,
                  *, seq_tile, sub_chunk, d_inner, n_state, kernel_size, halo,
                  reset_every, needs_midtile_reset, mm_dtype):
    TL, TC, D, N, K, KH = (seq_tile, sub_chunk, d_inner, n_state, kernel_size,
                           halo)
    f32 = jnp.float32
    c_idx = pl.program_id(1)

    xb = x_ref[0].astype(mm_dtype)                               # (TL, d_model)

    # --- fused in_proj: [xs | res] in one MXU matmul (bias added in f32) -----
    xr = jnp.dot(xb, w_in_ref[...], preferred_element_type=f32) + b_in_ref[...]
    xs = xr[:, :D]                                               # (TL, D)
    res = xr[:, D:]                                              # (TL, D)

    # --- causal depthwise conv, halo carried across sequence tiles -----------
    @pl.when(c_idx == 0)
    def _():
        conv_scr[...] = jnp.zeros_like(conv_scr)                 # zero left-pad

    xse_scr[0:KH, :] = conv_scr[...]                             # previous halo
    xse_scr[KH:KH + TL, :] = xs                                  # current rows
    conv_scr[...] = xse_scr[TL:TL + KH, :]                       # halo for next tile

    x_ext = xse_scr[...]                                         # aligned load
    conv_w = conv_w_ref[...]                                     # (K, D)
    acc = jnp.broadcast_to(conv_b_ref[...], (TL, D))
    total = KH + TL
    for k in range(K):
        off = KH - (K - 1) + k
        if off % 8 == 0:                                         # aligned tap
            shifted = x_ext[off:off + TL, :]
        else:                                                    # XLU roll tap
            shifted = pltpu.roll(x_ext, shift=total - off, axis=0)[:TL, :]
        acc = acc + conv_w[k:k + 1, :] * shifted
    u = acc * jax.nn.sigmoid(acc)                                # SiLU, (TL, D)

    # --- fused x_proj (dt_proj folded): [delta_pre | B | C] ------------------
    xp = jnp.dot(u.astype(mm_dtype), w_x_ref[...],
                 preferred_element_type=f32) + b_x_ref[...]      # (TL, D+2N)
    delta = jax.nn.softplus(xp[:, :D])                           # (TL, D)
    delta_scr[...] = delta
    du_scr[...] = delta * u
    b_scr[...] = xp[:, D:D + N]
    c_scr[...] = xp[:, D + N:D + 2 * N]

    # --- selective scan (state reset at every chunk_size boundary) ----------
    st_scr[...] = jnp.zeros_like(st_scr)
    neg_a = neg_a_ref[...]                                       # (N, D) = -exp(A_log).T

    # Loop-invariant selector for the per-sub-chunk C contraction (hoisted).
    col = jax.lax.broadcasted_iota(jnp.int32, (TC, TC * N), 1)
    row = jax.lax.broadcasted_iota(jnp.int32, (TC, TC * N), 0)
    sel = (col >= row * N) & (col < (row + 1) * N)

    num_sub = TL // TC

    @pl.loop(0, num_sub)
    def _(s):
        if needs_midtile_reset:
            @pl.when(s % reset_every == 0)
            def _():
                st_scr[...] = jnp.zeros_like(st_scr)

        t0 = pl.multiple_of(s * TC, TC)
        d_sub = delta_scr[pl.ds(t0, TC), :]                      # (TC, D)
        du_sub = du_scr[pl.ds(t0, TC), :]                        # (TC, D)
        b_sub = b_scr[pl.ds(t0, TC), :]                          # (TC, N)
        c_sub = c_scr[pl.ds(t0, TC), :]                          # (TC, N)

        # Batched decay / input terms for the sub-chunk (one EUP exp burst).
        dA = jnp.exp(d_sub[:, None, :] * neg_a[None, :, :])      # (TC, N, D)
        dBu = b_sub[:, :, None] * du_sub[:, None, :]             # (TC, N, D)

        # Short sequential recurrence; per-step states go to VMEM scratch so
        # vreg pressure stays bounded to {dA[i], dBu[i], st}.
        st = st_scr[...]                                         # (N, D)
        for i in range(TC):
            st = dA[i] * st + dBu[i]
            states_scr[i * N:(i + 1) * N, :] = st
        st_scr[...] = st

        # y[t] = sum_n C[t, n] * st_t[n, :] as one MXU matmul with a
        # block-diagonal selector built from C.
        c_mat = jnp.where(sel, jnp.concatenate([c_sub] * TC, axis=1), 0.0)
        y_scr[pl.ds(t0, TC), :] = jnp.dot(
            c_mat.astype(mm_dtype), states_scr[...].astype(mm_dtype),
            preferred_element_type=f32)

    # --- gate with silu(res) and out_proj (lane-dense, 128-padded) -----------
    y = y_scr[...] * (res * jax.nn.sigmoid(res))
    out = jnp.dot(y.astype(mm_dtype), w_out_ref[...],
                  preferred_element_type=f32) + b_out_ref[...]
    o_ref[0] = out.astype(o_ref.dtype)


_WEIGHT_ORDER = ("w_in", "b_in", "conv_w", "conv_b", "w_x", "b_x",
                 "neg_a_t", "w_out", "b_out")


def _round_up(v, m):
    return (v + m - 1) // m * m


def _full_spec(shape):
    zeros = (0,) * len(shape)
    return pl.BlockSpec(shape, lambda b, c, _z=zeros: _z)


def _pick_vmem_limit(default=32 * 1024 * 1024):
    # Per-generation scoped-VMEM budget: ~48 MiB on v7x (64 MiB physical),
    # ~96 MiB on v5e/v6e (128 MiB physical); safe fallback otherwise.
    try:
        cap = int(pltpu.get_tpu_info().vmem_capacity_bytes)
        return min(cap * 3 // 4, 100 * 1024 * 1024)
    except Exception:
        return default


def parallel_mamba_forward(x, params, *, chunk_size=256, chunks_per_tile=2,
                           matmul_dtype=jnp.float32):
    B, L, d_model = x.shape
    D = params["w_inx"].shape[1]
    N = params["w_xb"].shape[1]
    K = params["conv_w"].shape[0]
    KH = 8                                   # conv halo rows carried across tiles
    assert chunk_size % 8 == 0 and K - 1 <= KH

    mm = matmul_dtype
    d_model_pad = _round_up(d_model, 128)    # lane-dense output stores
    w_out_p = jnp.pad(params["w_out"], ((0, 0), (0, d_model_pad - d_model)))
    b_out_p = jnp.pad(params["b_out"], ((0, 0), (0, d_model_pad - d_model)))

    # Fused / pre-folded weights.  Matmul operands get matmul_dtype; biases,
    # conv taps and -exp(A_log) stay f32 (VPU/EUP work is kept in f32).
    fused = {
        "w_in": jnp.concatenate([params["w_inx"], params["w_inr"]],
                                axis=1).astype(mm),
        "b_in": jnp.concatenate([params["b_inx"], params["b_inr"]], axis=1),
        "conv_w": params["conv_w"], "conv_b": params["conv_b"],
        # dt_proj folded into x_proj: W_delta = w_xd @ w_dt (rank-R done once).
        "w_x": jnp.concatenate([params["w_xd"] @ params["w_dt"],
                                params["w_xb"], params["w_xc"]],
                               axis=1).astype(mm),
        "b_x": jnp.concatenate([params["b_dt"],
                                jnp.zeros((1, 2 * N), jnp.float32)], axis=1),
        # -exp(A_log) hoisted out of the kernel entirely (transposed to (N, D)).
        "neg_a_t": (-jnp.exp(params["A_log"])).T,
        "w_out": w_out_p.astype(mm), "b_out": b_out_p,
    }

    # Sequence tiling: tiles are chunk-aligned; for long sequences a tile may
    # span `chunks_per_tile` chunks (in-loop state reset at chunk boundaries).
    if L > chunk_size:
        n_chunks = -(-L // chunk_size)
        TL = chunk_size * min(chunks_per_tile, n_chunks)
        base = chunk_size
    else:
        TL = _round_up(L, 8)
        base = TL
    TC = 32 if base % 32 == 0 else (16 if base % 16 == 0 else 8)
    L_pad = _round_up(L, TL)
    if L_pad != L:
        x = jnp.pad(x, ((0, 0), (0, L_pad - L), (0, 0)))
    num_tiles = L_pad // TL
    needs_midtile_reset = TL > chunk_size
    reset_every = max(chunk_size // TC, 1)

    kernel = functools.partial(
        _mamba_kernel, seq_tile=TL, sub_chunk=TC, d_inner=D, n_state=N,
        kernel_size=K, halo=KH, reset_every=reset_every,
        needs_midtile_reset=needs_midtile_reset, mm_dtype=mm)

    in_specs = [pl.BlockSpec((1, TL, d_model), lambda b, c: (b, c, 0))]
    # TODO(synk): add pipeline_mode=pl.Buffered(1) here (constant index maps)
    # to single-buffer the weights once verified on the target jax version.
    in_specs += [_full_spec(fused[name].shape) for name in _WEIGHT_ORDER]

    # Advisory cost estimate: matmuls + scan elementwise; scan transcendentals.
    flops = int(2 * B * L_pad * (d_model * 2 * D + D * (D + 2 * N)
                                 + D * d_model_pad + TC * N * D)
                + 6 * B * L_pad * N * D)
    transcendentals = int(B * L_pad * (N * D + 4 * D))
    weight_bytes = sum(int(np.prod(v.shape)) * v.dtype.itemsize
                       for v in fused.values())
    bytes_accessed = int(x.size * x.dtype.itemsize
                         + B * L_pad * d_model_pad * 4 + weight_bytes)

    out = pl.pallas_call(
        kernel,
        out_shape=jax.ShapeDtypeStruct((B, L_pad, d_model_pad), jnp.float32),
        grid=(B, num_tiles),
        in_specs=in_specs,
        out_specs=pl.BlockSpec((1, TL, d_model_pad), lambda b, c: (b, c, 0)),
        scratch_shapes=[
            pltpu.VMEM((KH, D), jnp.float32),        # conv halo carry
            pltpu.VMEM((KH + TL, D), jnp.float32),   # extended conv input
            pltpu.VMEM((TL, D), jnp.float32),        # delta
            pltpu.VMEM((TL, D), jnp.float32),        # delta * u
            pltpu.VMEM((TL, N), jnp.float32),        # B
            pltpu.VMEM((TL, N), jnp.float32),        # C
            pltpu.VMEM((N, D), jnp.float32),         # scan state
            pltpu.VMEM((TC * N, D), jnp.float32),    # per-sub-chunk states
            pltpu.VMEM((TL, D), jnp.float32),        # y
        ],
        compiler_params=pltpu.CompilerParams(
            dimension_semantics=("parallel", "arbitrary"),
            vmem_limit_bytes=_pick_vmem_limit()),
        cost_estimate=pl.CostEstimate(
            flops=flops, transcendentals=transcendentals,
            bytes_accessed=bytes_accessed),
    )(x, *[fused[name] for name in _WEIGHT_ORDER])

    return out[:, :L, :d_model]


def init_params(key, d_model, d_inner, n_state, dt_rank, kernel_size):
    ks = jax.random.split(key, 16)
    s = 0.1
    f32 = jnp.float32
    return {
        "w_inx":  jax.random.normal(ks[0], (d_model, d_inner), f32) * s,
        "w_inr":  jax.random.normal(ks[1], (d_model, d_inner), f32) * s,
        "b_inx":  jax.random.normal(ks[2], (1, d_inner), f32) * s,
        "b_inr":  jax.random.normal(ks[3], (1, d_inner), f32) * s,
        "conv_w": jax.random.normal(ks[4], (kernel_size, d_inner), f32) * s,
        "conv_b": jax.random.normal(ks[5], (1, d_inner), f32) * s,
        "w_xd":   jax.random.normal(ks[6], (d_inner, dt_rank), f32) * s,
        "w_xb":   jax.random.normal(ks[7], (d_inner, n_state), f32) * s,
        "w_xc":   jax.random.normal(ks[8], (d_inner, n_state), f32) * s,
        "w_dt":   jax.random.normal(ks[9], (dt_rank, d_inner), f32) * s,
        "b_dt":   jax.random.normal(ks[10], (1, d_inner), f32) * s,
        # Torch layout: A_log is (d_inner, n_state).
        "A_log":  jax.random.normal(ks[11], (d_inner, n_state), f32) * 0.5,
        "w_out":  jax.random.normal(ks[12], (d_inner, d_model), f32) * s,
        "b_out":  jax.random.normal(ks[13], (1, d_model), f32) * s,
    }


def ref_forward(x, p, *, chunk_size=256):
    """Pure-JAX reference mirroring the torch forward exactly (un-fused)."""
    Bsz, L, _ = x.shape
    D = p["w_inx"].shape[1]
    K = p["conv_w"].shape[0]

    xs = x @ p["w_inx"] + p["b_inx"]
    res = x @ p["w_inr"] + p["b_inr"]

    acc = jnp.broadcast_to(p["conv_b"], (Bsz, L, D))
    for k in range(K):
        shift = K - 1 - k
        if shift == 0:
            xk = xs
        else:
            xk = jnp.concatenate(
                [jnp.zeros((Bsz, shift, D), xs.dtype), xs[:, : L - shift, :]],
                axis=1)
        acc = acc + xk * p["conv_w"][k][None, None, :]
    u = jax.nn.silu(acc)

    delta = jax.nn.softplus((u @ p["w_xd"]) @ p["w_dt"] + p["b_dt"])
    Bm = u @ p["w_xb"]
    Cm = u @ p["w_xc"]
    A = -jnp.exp(p["A_log"])                                     # (D, N)

    st = jnp.zeros((Bsz, D, A.shape[1]), jnp.float32)
    ys = []
    for t in range(L):
        if t % chunk_size == 0:
            st = jnp.zeros_like(st)
        dA = jnp.exp(delta[:, t, :, None] * A[None])
        dBu = delta[:, t, :, None] * Bm[:, t, None, :] * u[:, t, :, None]
        st = dA * st + dBu
        ys.append(jnp.einsum("bdn,bn->bd", st, Cm[:, t]))
    y = jnp.stack(ys, axis=1)
    y = y * jax.nn.silu(res)
    return y @ p["w_out"] + p["b_out"]


if __name__ == "__main__":
    d_model, d_inner, n_state, dt_rank, ksize = 32, 64, 16, 4, 3

    key = jax.random.PRNGKey(0)
    pkey, xkey1, xkey2 = jax.random.split(key, 3)
    params = init_params(pkey, d_model, d_inner, n_state, dt_rank, ksize)

    # Test 1: single sequence tile (batch=2, seq=8), default chunk_size.
    x1 = jax.random.normal(xkey1, (2, 8, d_model), jnp.float32)
    out1 = jax.block_until_ready(parallel_mamba_forward(x1, params))
    ref1 = ref_forward(x1, params)
    np.testing.assert_allclose(np.asarray(out1), np.asarray(ref1),
                               rtol=1e-4, atol=1e-4)

    # Test 2: multi-tile halo carry, multi-chunk tiles with mid-tile scan
    # reset, TC=32 sub-chunks, tail padding: seq=150, chunk=64, 2 chunks/tile.
    x2 = jax.random.normal(xkey2, (2, 150, d_model), jnp.float32)
    out2 = jax.block_until_ready(
        parallel_mamba_forward(x2, params, chunk_size=64, chunks_per_tile=2))
    ref2 = ref_forward(x2, params, chunk_size=64)
    np.testing.assert_allclose(np.asarray(out2), np.asarray(ref2),
                               rtol=1e-4, atol=1e-4)

    # Test 3: bf16 matmul-operand path (production setting), loose tolerance.
    out3 = jax.block_until_ready(
        parallel_mamba_forward(x2, params, chunk_size=64, chunks_per_tile=2,
                               matmul_dtype=jnp.bfloat16))
    np.testing.assert_allclose(np.asarray(out3), np.asarray(ref2),
                               rtol=3e-2, atol=3e-2)

    print("KERNEL_OK")
</pallas_src>

<mosaic_0001>
module attributes {stable_mosaic.version = 11 : i64} {
  func.func @_mamba_kernel(%arg0: i32, %arg1: i32, %arg2: memref<1x8x32xf32, #tpu.memory_space<vmem>>, %arg3: memref<32x128xf32, #tpu.memory_space<vmem>>, %arg4: memref<1x128xf32, #tpu.memory_space<vmem>>, %arg5: memref<3x64xf32, #tpu.memory_space<vmem>>, %arg6: memref<1x64xf32, #tpu.memory_space<vmem>>, %arg7: memref<64x96xf32, #tpu.memory_space<vmem>>, %arg8: memref<1x96xf32, #tpu.memory_space<vmem>>, %arg9: memref<16x64xf32, #tpu.memory_space<vmem>>, %arg10: memref<64x128xf32, #tpu.memory_space<vmem>>, %arg11: memref<1x128xf32, #tpu.memory_space<vmem>>, %arg12: memref<1x8x128xf32, #tpu.memory_space<vmem>>, %arg13: memref<8x64xf32, #tpu.memory_space<vmem>>, %arg14: memref<16x64xf32, #tpu.memory_space<vmem>>, %arg15: memref<8x64xf32, #tpu.memory_space<vmem>>, %arg16: memref<8x64xf32, #tpu.memory_space<vmem>>, %arg17: memref<8x16xf32, #tpu.memory_space<vmem>>, %arg18: memref<8x16xf32, #tpu.memory_space<vmem>>, %arg19: memref<16x64xf32, #tpu.memory_space<vmem>>, %arg20: memref<128x64xf32, #tpu.memory_space<vmem>>, %arg21: memref<8x64xf32, #tpu.memory_space<vmem>>) attributes {dimension_semantics = [#tpu.dimension_semantics<parallel>, #tpu.dimension_semantics<arbitrary>], iteration_bounds = array<i64: 2, 1>, scalar_prefetch = 0 : i64, scratch_operands = 9 : i64, tpu.core_type = #tpu.core_type<tc>, window_params = [{transform_indices = @transform_0, window_bounds = array<i64: 1, 8, 32>}, {pipeline_mode = #tpu.pipeline_mode<synchronous>, transform_indices = @transform_1, window_bounds = array<i64: 32, 128>}, {pipeline_mode = #tpu.pipeline_mode<synchronous>, transform_indices = @transform_2, window_bounds = array<i64: 1, 128>}, {pipeline_mode = #tpu.pipeline_mode<synchronous>, transform_indices = @transform_3, window_bounds = array<i64: 3, 64>}, {pipeline_mode = #tpu.pipeline_mode<synchronous>, transform_indices = @transform_4, window_bounds = array<i64: 1, 64>}, {pipeline_mode = #tpu.pipeline_mode<synchronous>, transform_indices = @transform_5, window_bounds = array<i64: 64, 96>}, {pipeline_mode = #tpu.pipeline_mode<synchronous>, transform_indices = @transform_6, window_bounds = array<i64: 1, 96>}, {pipeline_mode = #tpu.pipeline_mode<synchronous>, transform_indices = @transform_7, window_bounds = array<i64: 16, 64>}, {pipeline_mode = #tpu.pipeline_mode<synchronous>, transform_indices = @transform_8, window_bounds = array<i64: 64, 128>}, {pipeline_mode = #tpu.pipeline_mode<synchronous>, transform_indices = @transform_9, window_bounds = array<i64: 1, 128>}, {transform_indices = @transform_10, window_bounds = array<i64: 1, 8, 128>}]} {
    %c0 = arith.constant 0 : index
    %c0_0 = arith.constant 0 : index
    %c0_1 = arith.constant 0 : index
    %0 = vector.load %arg2[%c0, %c0_0, %c0_1] : memref<1x8x32xf32, #tpu.memory_space<vmem>>, vector<1x8x32xf32>
    %1 = vector.shape_cast %0 : vector<1x8x32xf32> to vector<8x32xf32>
    %c0_2 = arith.constant 0 : index
    %c0_3 = arith.constant 0 : index
    %2 = vector.load %arg3[%c0_2, %c0_3] : memref<32x128xf32, #tpu.memory_space<vmem>>, vector<32x128xf32>
    %cst = arith.constant dense<0.000000e+00> : vector<8x128xf32>
    %3 = tpu.matmul %1, %2, %cst {dimension_numbers = #tpu.dot_dimension_numbers<[1], [0], [0], [1], [0, 0, 1, 1], [], []>, precision = #tpu.contract_precision<fp32>} : vector<8x32xf32>, vector<32x128xf32>, vector<8x128xf32> -> vector<8x128xf32>
    %c0_4 = arith.constant 0 : index
    %c0_5 = arith.constant 0 : index
    %4 = vector.load %arg4[%c0_4, %c0_5] : memref<1x128xf32, #tpu.memory_space<vmem>>, vector<1x128xf32>
    %5 = vector.broadcast %4 : vector<1x128xf32> to vector<8x128xf32>
    %6 = arith.addf %3, %5 : vector<8x128xf32>
    %7 = vector.extract_strided_slice %6 {offsets = [0, 0], sizes = [8, 64], strides = [1, 1]} : vector<8x128xf32> to vector<8x64xf32>
    %8 = vector.extract_strided_slice %6 {offsets = [0, 64], sizes = [8, 64], strides = [1, 1]} : vector<8x128xf32> to vector<8x64xf32>
    %c0_i32 = arith.constant 0 : i32
    %9 = arith.cmpi eq, %arg1, %c0_i32 : i32
    %10 = arith.extui %9 : i1 to i32
    %c0_i32_6 = arith.constant 0 : i32
    %11 = arith.cmpi ne, %10, %c0_i32_6 : i32
    scf.if %11 {
      %cst_81 = arith.constant 0.000000e+00 : f32
      %190 = vector.broadcast %cst_81 : f32 to vector<8x64xf32>
      %c0_82 = arith.constant 0 : index
      %c0_83 = arith.constant 0 : index
      %191 = vector.load %arg13[%c0_82, %c0_83] : memref<8x64xf32, #tpu.memory_space<vmem>>, vector<8x64xf32>
      tpu.vector_store %arg13[%c0_82, %c0_83], %190 {strides = array<i32>} : memref<8x64xf32, #tpu.memory_space<vmem>>, vector<8x64xf32>,
    } else {
    }
    %c0_7 = arith.constant 0 : index
    %c0_8 = arith.constant 0 : index
    %12 = vector.load %arg13[%c0_7, %c0_8] : memref<8x64xf32, #tpu.memory_space<vmem>>, vector<8x64xf32>
    %c0_9 = arith.constant 0 : index
    %c0_10 = arith.constant 0 : index
    %13 = vector.load %arg14[%c0_9, %c0_10] : memref<16x64xf32, #tpu.memory_space<vmem>>, vector<8x64xf32>
    tpu.vector_store %arg14[%c0_9, %c0_10], %12 {strides = array<i32>} : memref<16x64xf32, #tpu.memory_space<vmem>>, vector<8x64xf32>,
    %c8 = arith.constant 8 : index
    %c0_11 = arith.constant 0 : index
    %14 = vector.load %arg14[%c8, %c0_11] : memref<16x64xf32, #tpu.memory_space<vmem>>, vector<8x64xf32>
    tpu.vector_store %arg14[%c8, %c0_11], %7 {strides = array<i32>} : memref<16x64xf32, #tpu.memory_space<vmem>>, vector<8x64xf32>,
    %c8_12 = arith.constant 8 : index
    %c0_13 = arith.constant 0 : index
    %15 = vector.load %arg14[%c8_12, %c0_13] : memref<16x64xf32, #tpu.memory_space<vmem>>, vector<8x64xf32>
    %c0_14 = arith.constant 0 : index
    %c0_15 = arith.constant 0 : index
    %16 = vector.load %arg13[%c0_14, %c0_15] : memref<8x64xf32, #tpu.memory_space<vmem>>, vector<8x64xf32>
    tpu.vector_store %arg13[%c0_14, %c0_15], %15 {strides = array<i32>} : memref<8x64xf32, #tpu.memory_space<vmem>>, vector<8x64xf32>,
    %c0_16 = arith.constant 0 : index
    %c0_17 = arith.constant 0 : index
    %17 = vector.load %arg14[%c0_16, %c0_17] : memref<16x64xf32, #tpu.memory_space<vmem>>, vector<16x64xf32>
    %c0_18 = arith.constant 0 : index
    %c0_19 = arith.constant 0 : index
    %18 = vector.load %arg5[%c0_18, %c0_19] : memref<3x64xf32, #tpu.memory_space<vmem>>, vector<3x64xf32>
    %c0_20 = arith.constant 0 : index
    %c0_21 = arith.constant 0 : index
    %19 = vector.load %arg6[%c0_20, %c0_21] : memref<1x64xf32, #tpu.memory_space<vmem>>, vector<1x64xf32>
    %20 = vector.shape_cast %19 : vector<1x64xf32> to vector<1x64xf32>
    %21 = vector.broadcast %20 : vector<1x64xf32> to vector<8x64xf32>
    %c10_i32 = arith.constant 10 : i32
    %22 = tpu.dynamic_rotate %17 by %c10_i32 dim 0 : vector<16x64xf32>, i32 -> vector<16x64xf32>
    %23 = vector.extract_strided_slice %22 {offsets = [0, 0], sizes = [8, 64], strides = [1, 1]} : vector<16x64xf32> to vector<8x64xf32>
    %24 = vector.extract_strided_slice %18 {offsets = [0, 0], sizes = [1, 64], strides = [1, 1]} : vector<3x64xf32> to vector<1x64xf32>
    %25 = vector.broadcast %24 : vector<1x64xf32> to vector<8x64xf32>
    %26 = arith.mulf %25, %23 : vector<8x64xf32>
    %27 = arith.addf %21, %26 : vector<8x64xf32>
    %c9_i32 = arith.constant 9 : i32
    %28 = tpu.dynamic_rotate %17 by %c9_i32 dim 0 : vector<16x64xf32>, i32 -> vector<16x64xf32>
    %29 = vector.extract_strided_slice %28 {offsets = [0, 0], sizes = [8, 64], strides = [1, 1]} : vector<16x64xf32> to vector<8x64xf32>
    %30 = vector.extract_strided_slice %18 {offsets = [1, 0], sizes = [1, 64], strides = [1, 1]} : vector<3x64xf32> to vector<1x64xf32>
    %31 = vector.broadcast %30 : vector<1x64xf32> to vector<8x64xf32>
    %32 = arith.mulf %31, %29 : vector<8x64xf32>
    %33 = arith.addf %27, %32 : vector<8x64xf32>
    %34 = vector.extract_strided_slice %17 {offsets = [8, 0], sizes = [8, 64], strides = [1, 1]} : vector<16x64xf32> to vector<8x64xf32>
    %35 = vector.extract_strided_slice %18 {offsets = [2, 0], sizes = [1, 64], strides = [1, 1]} : vector<3x64xf32> to vector<1x64xf32>
    %36 = vector.broadcast %35 : vector<1x64xf32> to vector<8x64xf32>
    %37 = arith.mulf %36, %34 : vector<8x64xf32>
    %38 = arith.addf %33, %37 : vector<8x64xf32>
    %39 = arith.negf %38 : vector<8x64xf32>
    %40 = math.exp %39 : vector<8x64xf32>
    %cst_22 = arith.constant 1.000000e+00 : f32
    %41 = vector.broadcast %cst_22 : f32 to vector<8x64xf32>
    %42 = arith.addf %41, %40 : vector<8x64xf32>
    %43 = arith.divf %41, %42 : vector<8x64xf32>
    %44 = arith.mulf %38, %43 : vector<8x64xf32>
    %c0_23 = arith.constant 0 : index
    %c0_24 = arith.constant 0 : index
    %45 = vector.load %arg7[%c0_23, %c0_24] : memref<64x96xf32, #tpu.memory_space<vmem>>, vector<64x96xf32>
    %cst_25 = arith.constant dense<0.000000e+00> : vector<8x96xf32>
    %46 = tpu.matmul %44, %45, %cst_25 {dimension_numbers = #tpu.dot_dimension_numbers<[1], [0], [0], [1], [0, 0, 1, 1], [], []>, precision = #tpu.contract_precision<fp32>} : vector<8x64xf32>, vector<64x96xf32>, vector<8x96xf32> -> vector<8x96xf32>
    %c0_26 = arith.constant 0 : index
    %c0_27 = arith.constant 0 : index
    %47 = vector.load %arg8[%c0_26, %c0_27] : memref<1x96xf32, #tpu.memory_space<vmem>>, vector<1x96xf32>
    %48 = vector.broadcast %47 : vector<1x96xf32> to vector<8x96xf32>
    %49 = arith.addf %46, %48 : vector<8x96xf32>
    %50 = vector.extract_strided_slice %49 {offsets = [0, 0], sizes = [8, 64], strides = [1, 1]} : vector<8x96xf32> to vector<8x64xf32>
    %cst_28 = arith.constant 0.000000e+00 : f32
    %51 = vector.broadcast %cst_28 : f32 to vector<8x64xf32>
    %52 = arith.maximumf %50, %51 : vector<8x64xf32>
    %53 = vector.broadcast %cst_28 : f32 to vector<8x64xf32>
    %54 = arith.subf %50, %53 : vector<8x64xf32>
    %55 = arith.cmpf one, %54, %54 : vector<8x64xf32>
    %56 = vector.broadcast %cst_28 : f32 to vector<8x64xf32>
    %57 = arith.addf %50, %56 : vector<8x64xf32>
    %58 = math.absf %54 : vector<8x64xf32>
    %cst_29 = arith.constant 0.000000e+00 : f32
    %59 = vector.broadcast %cst_29 : f32 to vector<8x64xf32>
    %60 = arith.subf %59, %58 : vector<8x64xf32>
    %61 = math.exp %60 : vector<8x64xf32>
    %62 = math.log1p %61 : vector<8x64xf32>
    %63 = arith.addf %52, %62 : vector<8x64xf32>
    %64 = arith.select %55, %57, %63 : vector<8x64xi1>, vector<8x64xf32>
    %c0_30 = arith.constant 0 : index
    %c0_31 = arith.constant 0 : index
    %65 = vector.load %arg15[%c0_30, %c0_31] : memref<8x64xf32, #tpu.memory_space<vmem>>, vector<8x64xf32>
    tpu.vector_store %arg15[%c0_30, %c0_31], %64 {strides = array<i32>} : memref<8x64xf32, #tpu.memory_space<vmem>>, vector<8x64xf32>,
    %66 = arith.mulf %64, %44 : vector<8x64xf32>
    %c0_32 = arith.constant 0 : index
    %c0_33 = arith.constant 0 : index
    %67 = vector.load %arg16[%c0_32, %c0_33] : memref<8x64xf32, #tpu.memory_space<vmem>>, vector<8x64xf32>
    tpu.vector_store %arg16[%c0_32, %c0_33], %66 {strides = array<i32>} : memref<8x64xf32, #tpu.memory_space<vmem>>, vector<8x64xf32>,
    %68 = vector.extract_strided_slice %49 {offsets = [0, 64], sizes = [8, 16], strides = [1, 1]} : vector<8x96xf32> to vector<8x16xf32>
    %c0_34 = arith.constant 0 : index
    %c0_35 = arith.constant 0 : index
    %69 = vector.load %arg17[%c0_34, %c0_35] : memref<8x16xf32, #tpu.memory_space<vmem>>, vector<8x16xf32>
    tpu.vector_store %arg17[%c0_34, %c0_35], %68 {strides = array<i32>} : memref<8x16xf32, #tpu.memory_space<vmem>>, vector<8x16xf32>,
    %70 = vector.extract_strided_slice %49 {offsets = [0, 80], sizes = [8, 16], strides = [1, 1]} : vector<8x96xf32> to vector<8x16xf32>
    %c0_36 = arith.constant 0 : index
    %c0_37 = arith.constant 0 : index
    %71 = vector.load %arg18[%c0_36, %c0_37] : memref<8x16xf32, #tpu.memory_space<vmem>>, vector<8x16xf32>
    tpu.vector_store %arg18[%c0_36, %c0_37], %70 {strides = array<i32>} : memref<8x16xf32, #tpu.memory_space<vmem>>, vector<8x16xf32>,
    %cst_38 = arith.constant 0.000000e+00 : f32
    %72 = vector.broadcast %cst_38 : f32 to vector<16x64xf32>
    %c0_39 = arith.constant 0 : index
    %c0_40 = arith.constant 0 : index
    %73 = vector.load %arg19[%c0_39, %c0_40] : memref<16x64xf32, #tpu.memory_space<vmem>>, vector<16x64xf32>
    tpu.vector_store %arg19[%c0_39, %c0_40], %72 {strides = array<i32>} : memref<16x64xf32, #tpu.memory_space<vmem>>, vector<16x64xf32>,
    %c0_41 = arith.constant 0 : index
    %c0_42 = arith.constant 0 : index
    %74 = vector.load %arg9[%c0_41, %c0_42] : memref<16x64xf32, #tpu.memory_space<vmem>>, vector<16x64xf32>
    %75 = tpu.iota {dimensions = array<i32: 1>} : vector<8x128xi32>
    %76 = tpu.iota {dimensions = array<i32: 0>} : vector<8x128xi32>
    %c16_i32 = arith.constant 16 : i32
    %77 = vector.broadcast %c16_i32 : i32 to vector<8x128xi32>
    %78 = arith.muli %76, %77 : vector<8x128xi32>
    %79 = arith.cmpi sge, %75, %78 : vector<8x128xi32>
    %c1_i32 = arith.constant 1 : i32
    %80 = vector.broadcast %c1_i32 : i32 to vector<8x128xi32>
    %81 = arith.addi %76, %80 : vector<8x128xi32>
    %c16_i32_43 = arith.constant 16 : i32
    %82 = vector.broadcast %c16_i32_43 : i32 to vector<8x128xi32>
    %83 = arith.muli %81, %82 : vector<8x128xi32>
    %84 = arith.cmpi slt, %75, %83 : vector<8x128xi32>
    %85 = arith.andi %79, %84 : vector<8x128xi1>
    %c0_i32_44 = arith.constant 0 : i32
    %c1_i32_45 = arith.constant 1 : i32
    %86 = arith.muli %c0_i32_44, %c1_i32_45 : i32
    %c0_i32_46 = arith.constant 0 : i32
    %87 = arith.addi %c0_i32_46, %86 : i32
    %c8_i32 = arith.constant 8 : i32
    %88 = arith.muli %87, %c8_i32 : i32
    %89 = tpu.assume_multiple %88, 8 : i32
    %90 = arith.index_cast %89 : i32 to index
    %c0_47 = arith.constant 0 : index
    %91 = vector.load %arg15[%90, %c0_47] : memref<8x64xf32, #tpu.memory_space<vmem>>, vector<8x64xf32>
    %92 = arith.index_cast %89 : i32 to index
    %c0_48 = arith.constant 0 : index
    %93 = vector.load %arg16[%92, %c0_48] : memref<8x64xf32, #tpu.memory_space<vmem>>, vector<8x64xf32>
    %94 = arith.index_cast %89 : i32 to index
    %c0_49 = arith.constant 0 : index
    %95 = vector.load %arg17[%94, %c0_49] : memref<8x16xf32, #tpu.memory_space<vmem>>, vector<8x16xf32>
    %96 = arith.index_cast %89 : i32 to index
    %c0_50 = arith.constant 0 : index
    %97 = vector.load %arg18[%96, %c0_50] : memref<8x16xf32, #tpu.memory_space<vmem>>, vector<8x16xf32>
    %98 = vector.shape_cast %91 : vector<8x64xf32> to vector<8x1x64xf32>
    %99 = vector.shape_cast %74 : vector<16x64xf32> to vector<1x16x64xf32>
    %100 = vector.broadcast %98 : vector<8x1x64xf32> to vector<8x16x64xf32>
    %101 = vector.broadcast %99 : vector<1x16x64xf32> to vector<8x16x64xf32>
    %102 = arith.mulf %100, %101 : vector<8x16x64xf32>
    %103 = math.exp %102 : vector<8x16x64xf32>
    %104 = vector.shape_cast %95 : vector<8x16xf32> to vector<8x16x1xf32>
    %105 = vector.shape_cast %93 : vector<8x64xf32> to vector<8x1x64xf32>
    %106 = vector.broadcast %104 : vector<8x16x1xf32> to vector<8x16x64xf32>
    %107 = vector.broadcast %105 : vector<8x1x64xf32> to vector<8x16x64xf32>
    %108 = arith.mulf %106, %107 : vector<8x16x64xf32>
    %c0_51 = arith.constant 0 : index
    %c0_52 = arith.constant 0 : index
    %109 = vector.load %arg19[%c0_51, %c0_52] : memref<16x64xf32, #tpu.memory_space<vmem>>, vector<16x64xf32>
    %110 = vector.extract_strided_slice %103 {offsets = [0, 0, 0], sizes = [1, 16, 64], strides = [1, 1, 1]} : vector<8x16x64xf32> to vector<1x16x64xf32>
    %111 = vector.shape_cast %110 : vector<1x16x64xf32> to vector<16x64xf32>
    %112 = arith.mulf %111, %109 : vector<16x64xf32>
    %113 = vector.extract_strided_slice %108 {offsets = [0, 0, 0], sizes = [1, 16, 64], strides = [1, 1, 1]} : vector<8x16x64xf32> to vector<1x16x64xf32>
    %114 = vector.shape_cast %113 : vector<1x16x64xf32> to vector<16x64xf32>
    %115 = arith.addf %112, %114 : vector<16x64xf32>
    %c0_53 = arith.constant 0 : index
    %c0_54 = arith.constant 0 : index
    %116 = vector.load %arg20[%c0_53, %c0_54] : memref<128x64xf32, #tpu.memory_space<vmem>>, vector<16x64xf32>
    tpu.vector_store %arg20[%c0_53, %c0_54], %115 {strides = array<i32>} : memref<128x64xf32, #tpu.memory_space<vmem>>, vector<16x64xf32>,
    %117 = vector.extract_strided_slice %103 {offsets = [1, 0, 0], sizes = [1, 16, 64], strides = [1, 1, 1]} : vector<8x16x64xf32> to vector<1x16x64xf32>
    %118 = vector.shape_cast %117 : vector<1x16x64xf32> to vector<16x64xf32>
    %119 = arith.mulf %118, %115 : vector<16x64xf32>
    %120 = vector.extract_strided_slice %108 {offsets = [1, 0, 0], sizes = [1, 16, 64], strides = [1, 1, 1]} : vector<8x16x64xf32> to vector<1x16x64xf32>
    %121 = vector.shape_cast %120 : vector<1x16x64xf32> to vector<16x64xf32>
    %122 = arith.addf %119, %121 : vector<16x64xf32>
    %c16 = arith.constant 16 : index
    %c0_55 = arith.constant 0 : index
    %123 = vector.load %arg20[%c16, %c0_55] : memref<128x64xf32, #tpu.memory_space<vmem>>, vector<16x64xf32>
    tpu.vector_store %arg20[%c16, %c0_55], %122 {strides = array<i32>} : memref<128x64xf32, #tpu.memory_space<vmem>>, vector<16x64xf32>,
    %124 = vector.extract_strided_slice %103 {offsets = [2, 0, 0], sizes = [1, 16, 64], strides = [1, 1, 1]} : vector<8x16x64xf32> to vector<1x16x64xf32>
    %125 = vector.shape_cast %124 : vector<1x16x64xf32> to vector<16x64xf32>
    %126 = arith.mulf %125, %122 : vector<16x64xf32>
    %127 = vector.extract_strided_slice %108 {offsets = [2, 0, 0], sizes = [1, 16, 64], strides = [1, 1, 1]} : vector<8x16x64xf32> to vector<1x16x64xf32>
    %128 = vector.shape_cast %127 : vector<1x16x64xf32> to vector<16x64xf32>
    %129 = arith.addf %126, %128 : vector<16x64xf32>
    %c32 = arith.constant 32 : index
    %c0_56 = arith.constant 0 : index
    %130 = vector.load %arg20[%c32, %c0_56] : memref<128x64xf32, #tpu.memory_space<vmem>>, vector<16x64xf32>
    tpu.vector_store %arg20[%c32, %c0_56], %129 {strides = array<i32>} : memref<128x64xf32, #tpu.memory_space<vmem>>, vector<16x64xf32>,
    %131 = vector.extract_strided_slice %103 {offsets = [3, 0, 0], sizes = [1, 16, 64], strides = [1, 1, 1]} : vector<8x16x64xf32> to vector<1x16x64xf32>
    %132 = vector.shape_cast %131 : vector<1x16x64xf32> to vector<16x64xf32>
    %133 = arith.mulf %132, %129 : vector<16x64xf32>
    %134 = vector.extract_strided_slice %108 {offsets = [3, 0, 0], sizes = [1, 16, 64], strides = [1, 1, 1]} : vector<8x16x64xf32> to vector<1x16x64xf32>
    %135 = vector.shape_cast %134 : vector<1x16x64xf32> to vector<16x64xf32>
    %136 = arith.addf %133, %135 : vector<16x64xf32>
    %c48 = arith.constant 48 : index
    %c0_57 = arith.constant 0 : index
    %137 = vector.load %arg20[%c48, %c0_57] : memref<128x64xf32, #tpu.memory_space<vmem>>, vector<16x64xf32>
    tpu.vector_store %arg20[%c48, %c0_57], %136 {strides = array<i32>} : memref<128x64xf32, #tpu.memory_space<vmem>>, vector<16x64xf32>,
    %138 = vector.extract_strided_slice %103 {offsets = [4, 0, 0], sizes = [1, 16, 64], strides = [1, 1, 1]} : vector<8x16x64xf32> to vector<1x16x64xf32>
    %139 = vector.shape_cast %138 : vector<1x16x64xf32> to vector<16x64xf32>
    %140 = arith.mulf %139, %136 : vector<16x64xf32>
    %141 = vector.extract_strided_slice %108 {offsets = [4, 0, 0], sizes = [1, 16, 64], strides = [1, 1, 1]} : vector<8x16x64xf32> to vector<1x16x64xf32>
    %142 = vector.shape_cast %141 : vector<1x16x64xf32> to vector<16x64xf32>
    %143 = arith.addf %140, %142 : vector<16x64xf32>
    %c64 = arith.constant 64 : index
    %c0_58 = arith.constant 0 : index
    %144 = vector.load %arg20[%c64, %c0_58] : memref<128x64xf32, #tpu.memory_space<vmem>>, vector<16x64xf32>
    tpu.vector_store %arg20[%c64, %c0_58], %143 {strides = array<i32>} : memref<128x64xf32, #tpu.memory_space<vmem>>, vector<16x64xf32>,
    %145 = vector.extract_strided_slice %103 {offsets = [5, 0, 0], sizes = [1, 16, 64], strides = [1, 1, 1]} : vector<8x16x64xf32> to vector<1x16x64xf32>
    %146 = vector.shape_cast %145 : vector<1x16x64xf32> to vector<16x64xf32>
    %147 = arith.mulf %146, %143 : vector<16x64xf32>
    %148 = vector.extract_strided_slice %108 {offsets = [5, 0, 0], sizes = [1, 16, 64], strides = [1, 1, 1]} : vector<8x16x64xf32> to vector<1x16x64xf32>
    %149 = vector.shape_cast %148 : vector<1x16x64xf32> to vector<16x64xf32>
    %150 = arith.addf %147, %149 : vector<16x64xf32>
    %c80 = arith.constant 80 : index
    %c0_59 = arith.constant 0 : index
    %151 = vector.load %arg20[%c80, %c0_59] : memref<128x64xf32, #tpu.memory_space<vmem>>, vector<16x64xf32>
    tpu.vector_store %arg20[%c80, %c0_59], %150 {strides = array<i32>} : memref<128x64xf32, #tpu.memory_space<vmem>>, vector<16x64xf32>,
    %152 = vector.extract_strided_slice %103 {offsets = [6, 0, 0], sizes = [1, 16, 64], strides = [1, 1, 1]} : vector<8x16x64xf32> to vector<1x16x64xf32>
    %153 = vector.shape_cast %152 : vector<1x16x64xf32> to vector<16x64xf32>
    %154 = arith.mulf %153, %150 : vector<16x64xf32>
    %155 = vector.extract_strided_slice %108 {offsets = [6, 0, 0], sizes = [1, 16, 64], strides = [1, 1, 1]} : vector<8x16x64xf32> to vector<1x16x64xf32>
    %156 = vector.shape_cast %155 : vector<1x16x64xf32> to vector<16x64xf32>
    %157 = arith.addf %154, %156 : vector<16x64xf32>
    %c96 = arith.constant 96 : index
    %c0_60 = arith.constant 0 : index
    %158 = vector.load %arg20[%c96, %c0_60] : memref<128x64xf32, #tpu.memory_space<vmem>>, vector<16x64xf32>
    tpu.vector_store %arg20[%c96, %c0_60], %157 {strides = array<i32>} : memref<128x64xf32, #tpu.memory_space<vmem>>, vector<16x64xf32>,
    %159 = vector.extract_strided_slice %103 {offsets = [7, 0, 0], sizes = [1, 16, 64], strides = [1, 1, 1]} : vector<8x16x64xf32> to vector<1x16x64xf32>
    %160 = vector.shape_cast %159 : vector<1x16x64xf32> to vector<16x64xf32>
    %161 = arith.mulf %160, %157 : vector<16x64xf32>
    %162 = vector.extract_strided_slice %108 {offsets = [7, 0, 0], sizes = [1, 16, 64], strides = [1, 1, 1]} : vector<8x16x64xf32> to vector<1x16x64xf32>
    %163 = vector.shape_cast %162 : vector<1x16x64xf32> to vector<16x64xf32>
    %164 = arith.addf %161, %163 : vector<16x64xf32>
    %c112 = arith.constant 112 : index
    %c0_61 = arith.constant 0 : index
    %165 = vector.load %arg20[%c112, %c0_61] : memref<128x64xf32, #tpu.memory_space<vmem>>, vector<16x64xf32>
    tpu.vector_store %arg20[%c112, %c0_61], %164 {strides = array<i32>} : memref<128x64xf32, #tpu.memory_space<vmem>>, vector<16x64xf32>,
    %c0_62 = arith.constant 0 : index
    %c0_63 = arith.constant 0 : index
    %166 = vector.load %arg19[%c0_62, %c0_63] : memref<16x64xf32, #tpu.memory_space<vmem>>, vector<16x64xf32>
    tpu.vector_store %arg19[%c0_62, %c0_63], %164 {strides = array<i32>} : memref<16x64xf32, #tpu.memory_space<vmem>>, vector<16x64xf32>,
    %167 = tpu.concatenate %97, %97, %97, %97, %97, %97, %97, %97 in 1 : vector<8x16xf32>, vector<8x16xf32>, vector<8x16xf32>, vector<8x16xf32>, vector<8x16xf32>, vector<8x16xf32>, vector<8x16xf32>, vector<8x16xf32> -> vector<8x128xf32>
    %cst_64 = arith.constant 0.000000e+00 : f32
    %168 = vector.broadcast %cst_64 : f32 to vector<8x128xf32>
    %169 = arith.select %85, %167, %168 : vector<8x128xi1>, vector<8x128xf32>
    %c0_65 = arith.constant 0 : index
    %c0_66 = arith.constant 0 : index
    %170 = vector.load %arg20[%c0_65, %c0_66] : memref<128x64xf32, #tpu.memory_space<vmem>>, vector<128x64xf32>
    %cst_67 = arith.constant dense<0.000000e+00> : vector<8x64xf32>
    %171 = tpu.matmul %169, %170, %cst_67 {dimension_numbers = #tpu.dot_dimension_numbers<[1], [0], [0], [1], [0, 0, 1, 1], [], []>, precision = #tpu.contract_precision<fp32>} : vector<8x128xf32>, vector<128x64xf32>, vector<8x64xf32> -> vector<8x64xf32>
    %172 = arith.index_cast %89 : i32 to index
    %c0_68 = arith.constant 0 : index
    %173 = vector.load %arg21[%172, %c0_68] : memref<8x64xf32, #tpu.memory_space<vmem>>, vector<8x64xf32>
    tpu.vector_store %arg21[%172, %c0_68], %171 {strides = array<i32>} : memref<8x64xf32, #tpu.memory_space<vmem>>, vector<8x64xf32>,
    %c1_i32_69 = arith.constant 1 : i32
    %c0_70 = arith.constant 0 : index
    %c0_71 = arith.constant 0 : index
    %174 = vector.load %arg21[%c0_70, %c0_71] : memref<8x64xf32, #tpu.memory_space<vmem>>, vector<8x64xf32>
    %175 = arith.negf %8 : vector<8x64xf32>
    %176 = math.exp %175 : vector<8x64xf32>
    %cst_72 = arith.constant 1.000000e+00 : f32
    %177 = vector.broadcast %cst_72 : f32 to vector<8x64xf32>
    %178 = arith.addf %177, %176 : vector<8x64xf32>
    %179 = arith.divf %177, %178 : vector<8x64xf32>
    %180 = arith.mulf %8, %179 : vector<8x64xf32>
    %181 = arith.mulf %174, %180 : vector<8x64xf32>
    %c0_73 = arith.constant 0 : index
    %c0_74 = arith.constant 0 : index
    %182 = vector.load %arg10[%c0_73, %c0_74] : memref<64x128xf32, #tpu.memory_space<vmem>>, vector<64x128xf32>
    %cst_75 = arith.constant dense<0.000000e+00> : vector<8x128xf32>
    %183 = tpu.matmul %181, %182, %cst_75 {dimension_numbers = #tpu.dot_dimension_numbers<[1], [0], [0], [1], [0, 0, 1, 1], [], []>, precision = #tpu.contract_precision<fp32>} : vector<8x64xf32>, vector<64x128xf32>, vector<8x128xf32> -> vector<8x128xf32>
    %c0_76 = arith.constant 0 : index
    %c0_77 = arith.constant 0 : index
    %184 = vector.load %arg11[%c0_76, %c0_77] : memref<1x128xf32, #tpu.memory_space<vmem>>, vector<1x128xf32>
    %185 = vector.broadcast %184 : vector<1x128xf32> to vector<8x128xf32>
    %186 = arith.addf %183, %185 : vector<8x128xf32>
    %c0_78 = arith.constant 0 : index
    %c0_79 = arith.constant 0 : index
    %c0_80 = arith.constant 0 : index
    %187 = vector.load %arg12[%c0_78, %c0_79, %c0_80] : memref<1x8x128xf32, #tpu.memory_space<vmem>>, vector<1x8x128xf32>
    %188 = vector.shape_cast %187 : vector<1x8x128xf32> to vector<8x128xf32>
    %189 = vector.shape_cast %186 : vector<8x128xf32> to vector<1x8x128xf32>
    tpu.vector_store %arg12[%c0_78, %c0_79, %c0_80], %189 {strides = array<i32>} : memref<1x8x128xf32, #tpu.memory_space<vmem>>, vector<1x8x128xf32>,
    return
  }
  func.func @transform_0(%arg0: i32, %arg1: i32) -> (i32, i32, i32) {
    %c0_i32 = arith.constant 0 : i32
    %c0_i32_0 = arith.constant 0 : i32
    return %arg0, %arg1, %c0_i32 : i32, i32, i32
  }
  func.func @transform_1(%arg0: i32, %arg1: i32) -> (i32, i32) {
    %c0_i32 = arith.constant 0 : i32
    %c0_i32_0 = arith.constant 0 : i32
    %c0_i32_1 = arith.constant 0 : i32
    return %c0_i32, %c0_i32_0 : i32, i32
  }
  func.func @transform_2(%arg0: i32, %arg1: i32) -> (i32, i32) {
    %c0_i32 = arith.constant 0 : i32
    %c0_i32_0 = arith.constant 0 : i32
    %c0_i32_1 = arith.constant 0 : i32
    return %c0_i32, %c0_i32_0 : i32, i32
  }
  func.func @transform_3(%arg0: i32, %arg1: i32) -> (i32, i32) {
    %c0_i32 = arith.constant 0 : i32
    %c0_i32_0 = arith.constant 0 : i32
    %c0_i32_1 = arith.constant 0 : i32
    return %c0_i32, %c0_i32_0 : i32, i32
  }
  func.func @transform_4(%arg0: i32, %arg1: i32) -> (i32, i32) {
    %c0_i32 = arith.constant 0 : i32
    %c0_i32_0 = arith.constant 0 : i32
    %c0_i32_1 = arith.constant 0 : i32
    return %c0_i32, %c0_i32_0 : i32, i32
  }
  func.func @transform_5(%arg0: i32, %arg1: i32) -> (i32, i32) {
    %c0_i32 = arith.constant 0 : i32
    %c0_i32_0 = arith.constant 0 : i32
    %c0_i32_1 = arith.constant 0 : i32
    return %c0_i32, %c0_i32_0 : i32, i32
  }
  func.func @transform_6(%arg0: i32, %arg1: i32) -> (i32, i32) {
    %c0_i32 = arith.constant 0 : i32
    %c0_i32_0 = arith.constant 0 : i32
    %c0_i32_1 = arith.constant 0 : i32
    return %c0_i32, %c0_i32_0 : i32, i32
  }
  func.func @transform_7(%arg0: i32, %arg1: i32) -> (i32, i32) {
    %c0_i32 = arith.constant 0 : i32
    %c0_i32_0 = arith.constant 0 : i32
    %c0_i32_1 = arith.constant 0 : i32
    return %c0_i32, %c0_i32_0 : i32, i32
  }
  func.func @transform_8(%arg0: i32, %arg1: i32) -> (i32, i32) {
    %c0_i32 = arith.constant 0 : i32
    %c0_i32_0 = arith.constant 0 : i32
    %c0_i32_1 = arith.constant 0 : i32
    return %c0_i32, %c0_i32_0 : i32, i32
  }
  func.func @transform_9(%arg0: i32, %arg1: i32) -> (i32, i32) {
    %c0_i32 = arith.constant 0 : i32
    %c0_i32_0 = arith.constant 0 : i32
    %c0_i32_1 = arith.constant 0 : i32
    return %c0_i32, %c0_i32_0 : i32, i32
  }
  func.func @transform_10(%arg0: i32, %arg1: i32) -> (i32, i32, i32) {
    %c0_i32 = arith.constant 0 : i32
    %c0_i32_0 = arith.constant 0 : i32
    return %arg0, %arg1, %c0_i32 : i32, i32, i32
  }
}

</mosaic_0001>

<llo_original>
// kernel: tpu_custom_call.1
$region0: #{tpu_custom_call.1}
  #allocation0 [shape = 'u32[]', space=smem, size = 0x4, offset = 0x4, fixed_abs, tag = 'smem constant byte address 0x4 - core index']
  #allocation1 [shape = 'u32[144,128]{1,0:T(1,128)}', space=vmem, size = 0x12000, scoped, tag = 'internal scratch']
  #allocation2 [shape = 'f32[8,64]{1,0:T(8,128)}', space=vmem, size = 0x1000, scoped, tag = 'scratch operand']
  #allocation3 [shape = 'f32[16,64]{1,0:T(8,128)}', space=vmem, size = 0x2000, scoped, tag = 'scratch operand']
  #allocation4 [shape = 'f32[8,64]{1,0:T(8,128)}', space=vmem, size = 0x1000, scoped, tag = 'scratch operand']
  #allocation5 [shape = 'f32[8,64]{1,0:T(8,128)}', space=vmem, size = 0x1000, scoped, tag = 'scratch operand']
  #allocation6 [shape = 'f32[8,16]{1,0:T(8,128)}', space=vmem, size = 0x1000, scoped, tag = 'scratch operand']
  #allocation7 [shape = 'f32[8,16]{1,0:T(8,128)}', space=vmem, size = 0x1000, scoped, tag = 'scratch operand']
  #allocation8 [shape = 'f32[16,64]{1,0:T(8,128)}', space=vmem, size = 0x2000, scoped, tag = 'scratch operand']
  #allocation9 [shape = 'f32[128,64]{1,0:T(8,128)}', space=vmem, size = 0x10000, scoped, tag = 'scratch operand']
  #allocation10 [shape = 'f32[8,64]{1,0:T(8,128)}', space=vmem, size = 0x1000, scoped, tag = 'scratch operand']
  %s0 = inlined_call_operand.hbm [shape: f32[2,8,32], index: 0, kind: input, shape index: {}]
  %s1 = inlined_call_operand.hbm [shape: f32[32,128], index: 1, kind: input, shape index: {}]
  %s2 = inlined_call_operand.vmem [shape: f32[1,128], index: 2, kind: input, shape index: {}]
  %s3 = inlined_call_operand.vmem [shape: f32[3,64], index: 3, kind: input, shape index: {}]
  %s4 = inlined_call_operand.vmem [shape: f32[1,64], index: 4, kind: input, shape index: {}]
  %s5 = inlined_call_operand.hbm [shape: f32[64,96], index: 5, kind: input, shape index: {}]
  %s6 = inlined_call_operand.vmem [shape: f32[1,96], index: 6, kind: input, shape index: {}]
  %s7 = inlined_call_operand.vmem [shape: f32[16,64], index: 7, kind: input, shape index: {}]
  %s8 = inlined_call_operand.hbm [shape: f32[64,128], index: 8, kind: input, shape index: {}]
  %s9 = inlined_call_operand.vmem [shape: f32[1,128], index: 9, kind: input, shape index: {}]
  %s10 = inlined_call_operand.hbm [shape: f32[2,8,128], index: 10, kind: output, shape index: {}]
  %s11 = sld [smem:[#allocation0]]
  $region93: #{tpu_custom_call.1} parent=0
    _
  %s13 = ssub.s32 1, %s11
  %s14 = scalar_select 0, %s13, %s11
  $region1: #{tpu_custom_call.1} parent=0
    #allocation11 [shape = 'u8[8192]{0}', space=vmem, size = 0x2000, scoped, tag = 'input window, operand 0']
    #allocation12 [shape = 's32[2]{0}', space=sflag, size = 0x8, scoped, tag = 'scoped memory for tpu_custom_call.1']
    #allocation13 [shape = 's32[2]{0}', space=sflag, size = 0x8, scoped, tag = 'scoped memory for tpu_custom_call.1']
    #allocation14 [shape = 'u8[16384]{0}', space=vmem, size = 0x4000, scoped, tag = 'input window, operand 1, single buffered']
    #allocation15 [shape = 's32[1]{0}', space=sflag, size = 0x4, scoped, tag = 'scoped memory for tpu_custom_call.1']
    #allocation16 [shape = 'u8[32768]{0}', space=vmem, size = 0x8000, scoped, tag = 'input window, operand 5, single buffered']
    #allocation17 [shape = 'u8[32768]{0}', space=vmem, size = 0x8000, scoped, tag = 'input window, operand 8, single buffered']
    #allocation18 [shape = 's32[1]{0}', space=sflag, size = 0x4, scoped, tag = 'scoped memory for tpu_custom_call.1']
    #allocation19 [shape = 'u8[8192]{0}', space=vmem, size = 0x2000, scoped, tag = 'output window, operand 0']
    %15 = vsyncpa [#allocation12], 0
    %s16 = scalar_lea.sflag [#allocation12], 1
    %17 = vsyncpa %s16, 0
    %18 = vsyncpa [#allocation15], 0
    %19 = vsyncpa [#allocation18], 0
    %20 = vsyncpa [#allocation13], 0
    %s21 = scalar_lea.sflag [#allocation13], 1
    %22 = vsyncpa %s21, 0
    loop: start=0, step=1, limit=4
    $region2: #{tpu_custom_call.1} parent=1 // loop_pre_header
      _
    $region3: #{tpu_custom_call.1} parent=1 // loop_header
      %s24 = sphi 0, %s28
      %p25 = scmp.ge.s32.totalorder %s24, 4
      %s31 = sphi 0, %s43
      %s32 = sphi 0, %s39
      %s33 = sphi 0, %s31
      %s34 = sphi 0, %s32
      %s35 = sphi 0, %s33
      %s36 = sphi 0, %s34
      %s48 = sphi 0, %s50
      %s51 = sphi 0, %s48
      %s52 = sphi 0, %s51
      %s68 = sphi 0, %s52
      %s72 = sphi 0, %s72
      %s74 = sphi 0, %s72
      %s75 = sphi 0, %s74
      %s89 = sphi 0, %s75
      %s93 = sphi 0, %s93
      %s95 = sphi 0, %s93
      %s96 = sphi 0, %s95
      %s110 = sphi 0, %s96
      %s114 = sphi 0, %s114
      %s116 = sphi 0, %s114
      %s117 = sphi 0, %s116
      %s131 = sphi 0, %s117
      %s135 = sphi 0, %s135
      %s137 = sphi 0, %s135
      %s138 = sphi 0, %s137
      %s152 = sphi 0, %s138
      %s156 = sphi 0, %s156
      %s158 = sphi 0, %s156
      %s159 = sphi 0, %s158
      %s173 = sphi 0, %s159
      %s177 = sphi 0, %s177
      %s179 = sphi 0, %s177
      %s180 = sphi 0, %s179
      %s194 = sphi 0, %s180
      %s198 = sphi 0, %s198
      %s200 = sphi 0, %s198
      %s201 = sphi 0, %s200
      %s215 = sphi 0, %s201
      %s219 = sphi 0, %s219
      %s221 = sphi 0, %s219
      %s222 = sphi 0, %s221
      %s236 = sphi 0, %s222
      %s240 = sphi 0, %s240
      %s242 = sphi 0, %s240
      %s243 = sphi 0, %s242
      %s257 = sphi 0, %s243
      %s265 = sphi 0, %s267
      %s268 = sphi 0, %s265
      %s269 = sphi 0, %s268
      %s285 = sphi 0, %s269
    $region4: #{tpu_custom_call.1} parent=1 // loop_header_branch
      %27 = sbr.rel (%p25) target = $region8
    $region5: #{tpu_custom_call.1} parent=1 // loop_body
      %s29 = ssub.s32 %s24, 1
      %s30 = ssub.s32 %s24, 2
      %s37 = sadd.s32 1, %s32
      %p38 = scmp.ge.s32.totalorder %s37, 1
      %s39 = scalar_select %p38, 0, %s37
      %s40 = sadd.s32 1, %s31
      %s41 = scalar_select %p38, %s40, %s31
      %p42 = scmp.ge.s32.totalorder %s41, 2
      %s43 = scalar_select %p42, 0, %s41
      %s44 = ssub.s32 %s31, %s43
      %s45 = ssub.s32 %s32, %s39
      %s46 = sor.u32 %s44, %s45
      %p47 = scmp.eq.s32.totalorder %s46, 0
      %s49 = sadd.s32 %s48, 1
      %s50 = scalar_select %p47, %s48, %s49
      %p53 = pneg %p47
      %p54 = scmp.eq.s32.totalorder %s24, 1
      %p55 = por %p53, %p54
      %p56 = scmp.ne.s32.totalorder %s48, %s51
      %p57 = scmp.eq.s32.totalorder %s24, 0
      %p58 = por %p56, %p57
      %p59 = scmp.ne.s32.totalorder %s48, %s51
      %p60 = scmp.eq.s32.totalorder %s29, 1
      %p61 = por %p59, %p60
      %p62 = scmp.ne.s32.totalorder %s51, %s52
      %p63 = scmp.eq.s32.totalorder %s29, 0
      %p64 = por %p62, %p63
      %p65 = scmp.ne.s32.totalorder %s51, %s52
      %p66 = scmp.eq.s32.totalorder %s30, 1
      %p67 = por %p65, %p66
      %p69 = scmp.ne.s32.totalorder %s52, %s68
      %p70 = scmp.eq.s32.totalorder %s30, 0
      %p71 = por %p69, %p70
      %s73 = sadd.s32 %s72, 1
      %p76 = scmp.eq.s32.totalorder %s24, 1
      %p77 = scmp.ne.s32.totalorder %s72, %s74
      %p78 = scmp.eq.s32.totalorder %s24, 0
      %p79 = por %p77, %p78
      %p80 = scmp.ne.s32.totalorder %s72, %s74
      %p81 = scmp.eq.s32.totalorder %s29, 1
      %p82 = por %p80, %p81
      %p83 = scmp.ne.s32.totalorder %s74, %s75
      %p84 = scmp.eq.s32.totalorder %s29, 0
      %p85 = por %p83, %p84
      %p86 = scmp.ne.s32.totalorder %s74, %s75
      %p87 = scmp.eq.s32.totalorder %s30, 1
      %p88 = por %p86, %p87
      %p90 = scmp.ne.s32.totalorder %s75, %s89
      %p91 = scmp.eq.s32.totalorder %s30, 0
      %p92 = por %p90, %p91
      %s94 = sadd.s32 %s93, 1
      %p97 = scmp.eq.s32.totalorder %s24, 1
      %p98 = scmp.ne.s32.totalorder %s93, %s95
      %p99 = scmp.eq.s32.totalorder %s24, 0
      %p100 = por %p98, %p99
      %p101 = scmp.ne.s32.totalorder %s93, %s95
      %p102 = scmp.eq.s32.totalorder %s29, 1
      %p103 = por %p101, %p102
      %p104 = scmp.ne.s32.totalorder %s95, %s96
      %p105 = scmp.eq.s32.totalorder %s29, 0
      %p106 = por %p104, %p105
      %p107 = scmp.ne.s32.totalorder %s95, %s96
      %p108 = scmp.eq.s32.totalorder %s30, 1
      %p109 = por %p107, %p108
      %p111 = scmp.ne.s32.totalorder %s96, %s110
      %p112 = scmp.eq.s32.totalorder %s30, 0
      %p113 = por %p111, %p112
      %s115 = sadd.s32 %s114, 1
      %p118 = scmp.eq.s32.totalorder %s24, 1
      %p119 = scmp.ne.s32.totalorder %s114, %s116
      %p120 = scmp.eq.s32.totalorder %s24, 0
      %p121 = por %p119, %p120
      %p122 = scmp.ne.s32.totalorder %s114, %s116
      %p123 = scmp.eq.s32.totalorder %s29, 1
      %p124 = por %p122, %p123
      %p125 = scmp.ne.s32.totalorder %s116, %s117
      %p126 = scmp.eq.s32.totalorder %s29, 0
      %p127 = por %p125, %p126
      %p128 = scmp.ne.s32.totalorder %s116, %s117
      %p129 = scmp.eq.s32.totalorder %s30, 1
      %p130 = por %p128, %p129
      %p132 = scmp.ne.s32.totalorder %s117, %s131
      %p133 = scmp.eq.s32.totalorder %s30, 0
      %p134 = por %p132, %p133
      %s136 = sadd.s32 %s135, 1
      %p139 = scmp.eq.s32.totalorder %s24, 1
      %p140 = scmp.ne.s32.totalorder %s135, %s137
      %p141 = scmp.eq.s32.totalorder %s24, 0
      %p142 = por %p140, %p141
      %p143 = scmp.ne.s32.totalorder %s135, %s137
      %p144 = scmp.eq.s32.totalorder %s29, 1
      %p145 = por %p143, %p144
      %p146 = scmp.ne.s32.totalorder %s137, %s138
      %p147 = scmp.eq.s32.totalorder %s29, 0
      %p148 = por %p146, %p147
      %p149 = scmp.ne.s32.totalorder %s137, %s138
      %p150 = scmp.eq.s32.totalorder %s30, 1
      %p151 = por %p149, %p150
      %p153 = scmp.ne.s32.totalorder %s138, %s152
      %p154 = scmp.eq.s32.totalorder %s30, 0
      %p155 = por %p153, %p154
      %s157 = sadd.s32 %s156, 1
      %p160 = scmp.eq.s32.totalorder %s24, 1
      %p161 = scmp.ne.s32.totalorder %s156, %s158
      %p162 = scmp.eq.s32.totalorder %s24, 0
      %p163 = por %p161, %p162
      %p164 = scmp.ne.s32.totalorder %s156, %s158
      %p165 = scmp.eq.s32.totalorder %s29, 1
      %p166 = por %p164, %p165
      %p167 = scmp.ne.s32.totalorder %s158, %s159
      %p168 = scmp.eq.s32.totalorder %s29, 0
      %p169 = por %p167, %p168
      %p170 = scmp.ne.s32.totalorder %s158, %s159
      %p171 = scmp.eq.s32.totalorder %s30, 1
      %p172 = por %p170, %p171
      %p174 = scmp.ne.s32.totalorder %s159, %s173
      %p175 = scmp.eq.s32.totalorder %s30, 0
      %p176 = por %p174, %p175
      %s178 = sadd.s32 %s177, 1
      %p181 = scmp.eq.s32.totalorder %s24, 1
      %p182 = scmp.ne.s32.totalorder %s177, %s179
      %p183 = scmp.eq.s32.totalorder %s24, 0
      %p184 = por %p182, %p183
      %p185 = scmp.ne.s32.totalorder %s177, %s179
      %p186 = scmp.eq.s32.totalorder %s29, 1
      %p187 = por %p185, %p186
      %p188 = scmp.ne.s32.totalorder %s179, %s180
      %p189 = scmp.eq.s32.totalorder %s29, 0
      %p190 = por %p188, %p189
      %p191 = scmp.ne.s32.totalorder %s179, %s180
      %p192 = scmp.eq.s32.totalorder %s30, 1
      %p193 = por %p191, %p192
      %p195 = scmp.ne.s32.totalorder %s180, %s194
      %p196 = scmp.eq.s32.totalorder %s30, 0
      %p197 = por %p195, %p196
      %s199 = sadd.s32 %s198, 1
      %p202 = scmp.eq.s32.totalorder %s24, 1
      %p203 = scmp.ne.s32.totalorder %s198, %s200
      %p204 = scmp.eq.s32.totalorder %s24, 0
      %p205 = por %p203, %p204
      %p206 = scmp.ne.s32.totalorder %s198, %s200
      %p207 = scmp.eq.s32.totalorder %s29, 1
      %p208 = por %p206, %p207
      %p209 = scmp.ne.s32.totalorder %s200, %s201
      %p210 = scmp.eq.s32.totalorder %s29, 0
      %p211 = por %p209, %p210
      %p212 = scmp.ne.s32.totalorder %s200, %s201
      %p213 = scmp.eq.s32.totalorder %s30, 1
      %p214 = por %p212, %p213
      %p216 = scmp.ne.s32.totalorder %s201, %s215
      %p217 = scmp.eq.s32.totalorder %s30, 0
      %p218 = por %p216, %p217
      %s220 = sadd.s32 %s219, 1
      %p223 = scmp.eq.s32.totalorder %s24, 1
      %p224 = scmp.ne.s32.totalorder %s219, %s221
      %p225 = scmp.eq.s32.totalorder %s24, 0
      %p226 = por %p224, %p225
      %p227 = scmp.ne.s32.totalorder %s219, %s221
      %p228 = scmp.eq.s32.totalorder %s29, 1
      %p229 = por %p227, %p228
      %p230 = scmp.ne.s32.totalorder %s221, %s222
      %p231 = scmp.eq.s32.totalorder %s29, 0
      %p232 = por %p230, %p231
      %p233 = scmp.ne.s32.totalorder %s221, %s222
      %p234 = scmp.eq.s32.totalorder %s30, 1
      %p235 = por %p233, %p234
      %p237 = scmp.ne.s32.totalorder %s222, %s236
      %p238 = scmp.eq.s32.totalorder %s30, 0
      %p239 = por %p237, %p238
      %s241 = sadd.s32 %s240, 1
      %p244 = scmp.eq.s32.totalorder %s24, 1
      %p245 = scmp.ne.s32.totalorder %s240, %s242
      %p246 = scmp.eq.s32.totalorder %s24, 0
      %p247 = por %p245, %p246
      %p248 = scmp.ne.s32.totalorder %s240, %s242
      %p249 = scmp.eq.s32.totalorder %s29, 1
      %p250 = por %p248, %p249
      %p251 = scmp.ne.s32.totalorder %s242, %s243
      %p252 = scmp.eq.s32.totalorder %s29, 0
      %p253 = por %p251, %p252
      %p254 = scmp.ne.s32.totalorder %s242, %s243
      %p255 = scmp.eq.s32.totalorder %s30, 1
      %p256 = por %p254, %p255
      %p258 = scmp.ne.s32.totalorder %s243, %s257
      %p259 = scmp.eq.s32.totalorder %s30, 0
      %p260 = por %p258, %p259
      %s261 = ssub.s32 %s31, %s43
      %s262 = ssub.s32 %s32, %s39
      %s263 = sor.u32 %s261, %s262
      %p264 = scmp.eq.s32.totalorder %s263, 0
      %s266 = sadd.s32 %s265, 1
      %s267 = scalar_select %p264, %s265, %s266
      %p270 = pneg %p264
      %p271 = scmp.eq.s32.totalorder %s24, 1
      %p272 = por %p270, %p271
      %p273 = scmp.ne.s32.totalorder %s265, %s268
      %p274 = scmp.eq.s32.totalorder %s24, 0
      %p275 = por %p273, %p274
      %p276 = scmp.ne.s32.totalorder %s265, %s268
      %p277 = scmp.eq.s32.totalorder %s29, 1
      %p278 = por %p276, %p277
      %p279 = scmp.ne.s32.totalorder %s268, %s269
      %p280 = scmp.eq.s32.totalorder %s29, 0
      %p281 = por %p279, %p280
      %p282 = scmp.ne.s32.totalorder %s268, %s269
      %p283 = scmp.eq.s32.totalorder %s30, 1
      %p284 = por %p282, %p283
      %p286 = scmp.ne.s32.totalorder %s269, %s285
      %p287 = scmp.eq.s32.totalorder %s30, 0
      %p288 = por %p286, %p287
      %p289 = scmp.le.s32.totalorder 1, %s24
      %p290 = scmp.lt.s32.totalorder %s24, 3
      %p291 = pnand %p289, %p290
      %p292 = pneg %p291
      // Predicated region
      $region9: #{tpu_custom_call.1} parent=5 // pred_check
        _
      $region10: #{tpu_custom_call.1} parent=5 // pred_check_branch
        %294 = sbr.rel (%p291) target = $region12
      $region11: #{tpu_custom_call.1} parent=5 // pred_region
        %s295 = ssub.s32 %s24, 1
        // Predicated region
        $region13: #{tpu_custom_call.1} parent=11 // pred_check
          %p296 = pneg %p85
        $region14: #{tpu_custom_call.1} parent=11 // pred_check_branch
          %298 = sbr.rel (%p296) target = $region16
        $region15: #{tpu_custom_call.1} parent=11 // pred_region
          %s300 = ssub.s32 512, 512
          %301 = vsyncadd [#allocation15], %s300
          %s302 = sshll.u32 [#allocation14], 4
          %s303 = int_to_ptr.vmem [resolvable:$true] %s302
          %308 = dma.hbm_to_vmem [thread:$0]  %s1, 512, %s303, [#allocation15], 128, 128, 8
        $region16: #{tpu_custom_call.1} parent=11 // pred_fallthru
          _
        // Predicated region
        $region17: #{tpu_custom_call.1} parent=11 // pred_check
          %p309 = pneg %p106
        $region18: #{tpu_custom_call.1} parent=11 // pred_check_branch
          %311 = sbr.rel (%p309) target = $region20
        $region19: #{tpu_custom_call.1} parent=11 // pred_region
          _
        $region20: #{tpu_custom_call.1} parent=11 // pred_fallthru
          _
        // Predicated region
        $region21: #{tpu_custom_call.1} parent=11 // pred_check
          %p312 = pneg %p127
        $region22: #{tpu_custom_call.1} parent=11 // pred_check_branch
          %314 = sbr.rel (%p312) target = $region24
        $region23: #{tpu_custom_call.1} parent=11 // pred_region
          _
        $region24: #{tpu_custom_call.1} parent=11 // pred_fallthru
          _
        // Predicated region
        $region25: #{tpu_custom_call.1} parent=11 // pred_check
          %p315 = pneg %p148
        $region26: #{tpu_custom_call.1} parent=11 // pred_check_branch
          %317 = sbr.rel (%p315) target = $region28
        $region27: #{tpu_custom_call.1} parent=11 // pred_region
          _
        $region28: #{tpu_custom_call.1} parent=11 // pred_fallthru
          _
        // Predicated region
        $region29: #{tpu_custom_call.1} parent=11 // pred_check
          %p318 = pneg %p169
        $region30: #{tpu_custom_call.1} parent=11 // pred_check_branch
          %320 = sbr.rel (%p318) target = $region32
        $region31: #{tpu_custom_call.1} parent=11 // pred_region
          %s322 = ssub.s32 1024, 1024
          %323 = vsyncadd [#allocation15], %s322
          %s324 = sshll.u32 [#allocation16], 4
          %s325 = int_to_ptr.vmem [resolvable:$true] %s324
          %330 = dma.hbm_to_vmem [thread:$0]  %s5, 1024, %s325, [#allocation15], 128, 128, 8
        $region32: #{tpu_custom_call.1} parent=11 // pred_fallthru
          _
        // Predicated region
        $region33: #{tpu_custom_call.1} parent=11 // pred_check
          %p331 = pneg %p190
        $region34: #{tpu_custom_call.1} parent=11 // pred_check_branch
          %333 = sbr.rel (%p331) target = $region36
        $region35: #{tpu_custom_call.1} parent=11 // pred_region
          _
        $region36: #{tpu_custom_call.1} parent=11 // pred_fallthru
          _
        // Predicated region
        $region37: #{tpu_custom_call.1} parent=11 // pred_check
          %p334 = pneg %p211
        $region38: #{tpu_custom_call.1} parent=11 // pred_check_branch
          %336 = sbr.rel (%p334) target = $region40
        $region39: #{tpu_custom_call.1} parent=11 // pred_region
          _
        $region40: #{tpu_custom_call.1} parent=11 // pred_fallthru
          _
        // Predicated region
        $region41: #{tpu_custom_call.1} parent=11 // pred_check
          %p337 = pneg %p232
        $region42: #{tpu_custom_call.1} parent=11 // pred_check_branch
          %339 = sbr.rel (%p337) target = $region44
        $region43: #{tpu_custom_call.1} parent=11 // pred_region
          %s341 = ssub.s32 1024, 1024
          %342 = vsyncadd [#allocation18], %s341
          %s343 = sshll.u32 [#allocation17], 4
          %s344 = int_to_ptr.vmem [resolvable:$true] %s343
          %349 = dma.hbm_to_vmem [thread:$0]  %s8, 1024, %s344, [#allocation18], 128, 128, 8
        $region44: #{tpu_custom_call.1} parent=11 // pred_fallthru
          _
        // Predicated region
        $region45: #{tpu_custom_call.1} parent=11 // pred_check
          %p350 = pneg %p253
        $region46: #{tpu_custom_call.1} parent=11 // pred_check_branch
          %352 = sbr.rel (%p350) target = $region48
        $region47: #{tpu_custom_call.1} parent=11 // pred_region
          _
        $region48: #{tpu_custom_call.1} parent=11 // pred_fallthru
          _
      $region12: #{tpu_custom_call.1} parent=5 // pred_fallthru
        _
      %p353 = scmp.lt.s32.totalorder %s24, 2
      // Predicated region
      $region49: #{tpu_custom_call.1} parent=5 // pred_check
        %p354 = pneg %p353
      $region50: #{tpu_custom_call.1} parent=5 // pred_check_branch
        %356 = sbr.rel (%p354) target = $region52
      $region51: #{tpu_custom_call.1} parent=5 // pred_region
        // Predicated region
        $region53: #{tpu_custom_call.1} parent=51 // pred_check
          %p357 = pneg %p58
        $region54: #{tpu_custom_call.1} parent=51 // pred_check_branch
          %359 = sbr.rel (%p357) target = $region56
        $region55: #{tpu_custom_call.1} parent=51 // pred_region
          %s360 = sand.u32 %s48, 1
          %s361 = scalar_lea.sflag [#allocation12], %s360
          %s362 = sand.u32 %s48, 1
          %s363 = smul.addr %s362, 8
          %s364 = scalar_lea.vmem [#allocation11], %s363
          %s366 = ssub.s32 128, 128
          %367 = vsyncadd %s361, %s366
          %s368 = sadd.s32 %s32, %s31
          %s369 = smul.addr %s368, 128
          %s370 = scalar_lea.hbm %s0, %s369
          %s372 = sshll.u32 %s364, 4
          %s373 = int_to_ptr.vmem [resolvable:$true] %s372
          %375 = dma.hbm_to_vmem [thread:$0]  %s370, 128, %s373, %s361
        $region56: #{tpu_custom_call.1} parent=51 // pred_fallthru
          _
      $region52: #{tpu_custom_call.1} parent=5 // pred_fallthru
        _
      %p376 = scmp.le.s32.totalorder 1, %s24
      %p377 = scmp.lt.s32.totalorder %s24, 3
      %p378 = pnand %p376, %p377
      %p379 = pneg %p378
      // Predicated region
      $region57: #{tpu_custom_call.1} parent=5 // pred_check
        _
      $region58: #{tpu_custom_call.1} parent=5 // pred_check_branch
        %381 = sbr.rel (%p378) target = $region60
      $region59: #{tpu_custom_call.1} parent=5 // pred_region
        %s382 = ssub.s32 %s24, 1
        %s383 = sand.u32 %s51, 1
        %s384 = scalar_lea.sflag [#allocation12], %s383
        %s385 = sand.u32 %s51, 1
        %s386 = smul.addr %s385, 8
        %s387 = scalar_lea.vmem [#allocation11], %s386
        // Predicated region
        $region61: #{tpu_custom_call.1} parent=59 // pred_check
          %p388 = pneg %p64
        $region62: #{tpu_custom_call.1} parent=59 // pred_check_branch
          %390 = sbr.rel (%p388) target = $region64
        $region63: #{tpu_custom_call.1} parent=59 // pred_region
          %391 = dma.done %s384, 128
        $region64: #{tpu_custom_call.1} parent=59 // pred_fallthru
          _
        // Predicated region
        $region65: #{tpu_custom_call.1} parent=59 // pred_check
          %p392 = pneg %p85
        $region66: #{tpu_custom_call.1} parent=59 // pred_check_branch
          %394 = sbr.rel (%p392) target = $region68
        $region67: #{tpu_custom_call.1} parent=59 // pred_region
          %395 = dma.done [#allocation15], 512
        $region68: #{tpu_custom_call.1} parent=59 // pred_fallthru
          _
        // Predicated region
        $region69: #{tpu_custom_call.1} parent=59 // pred_check
          %p396 = pneg %p169
        $region70: #{tpu_custom_call.1} parent=59 // pred_check_branch
          %398 = sbr.rel (%p396) target = $region72
        $region71: #{tpu_custom_call.1} parent=59 // pred_region
          %399 = dma.done [#allocation15], 1024
        $region72: #{tpu_custom_call.1} parent=59 // pred_fallthru
          _
        // Predicated region
        $region73: #{tpu_custom_call.1} parent=59 // pred_check
          %p400 = pneg %p232
        $region74: #{tpu_custom_call.1} parent=59 // pred_check_branch
          %402 = sbr.rel (%p400) target = $region76
        $region75: #{tpu_custom_call.1} parent=59 // pred_region
          %403 = dma.done [#allocation18], 1024
        $region76: #{tpu_custom_call.1} parent=59 // pred_fallthru
          _
        %s404 = sand.u32 %s51, 1
        %s405 = scalar_lea.sflag [#allocation12], %s404
        %s406 = sand.u32 %s51, 1
        %s407 = smul.addr %s406, 8
        %s408 = scalar_lea.vmem [#allocation11], %s407
        %p409 = pneg %p64
        %p410 = pneg %p61
        %p411 = pneg %p85
        %p412 = pneg %p82
        %p413 = pneg %p106
        %p414 = pneg %p103
        %p415 = pneg %p127
        %p416 = pneg %p124
        %p417 = pneg %p148
        %p418 = pneg %p145
        %p419 = pneg %p169
        %p420 = pneg %p166
        %p421 = pneg %p190
        %p422 = pneg %p187
        %p423 = pneg %p211
        %p424 = pneg %p208
        %p425 = pneg %p232
        %p426 = pneg %p229
        %p427 = pneg %p253
        %p428 = pneg %p250
        %p429 = pneg %p281
        %p430 = pneg %p278
        %s431 = sand.u32 %s268, 1
        %s432 = scalar_lea.sflag [#allocation13], %s431
        %s433 = sand.u32 %s268, 1
        %s434 = smul.addr %s433, 8
        %s435 = scalar_lea.vmem [#allocation19], %s434
        %v436 = vld [vmem:[%s387] sm:$0xff]
        %v437 = vld [vmem:[#allocation14] sm:$0xff]
        %v438 = vld [vmem:[#allocation14 + $0x8] sm:$0xff]
        %v439 = vld [vmem:[#allocation14 + $0x10] sm:$0xff]
        %v440 = vld [vmem:[#allocation14 + $0x18] sm:$0xff]
        %v441 = vld [vmem:[%s2] sm:$0x1]
        %v443 = vlaneseq
        %v444 = vshrl.u32 %v443, 7
        %v445 = vsub.s32 0, %v444
        %v446 = vrot.slane %v441, %v445
        %vm448 = vcmask 261120
        %v450 = vsel %vm448, %v436, 0
        %452 = vmatprep.subr.mxu0 0.0
        %v453 = vand.u32 %v437, 4294901760
        %454 = vmatpush1.msra.mxu0 %v453
        %455 = vmatprep.subr.mxu0 0.0
        %v456 = vand.u32 %v438, 4294901760
        %457 = vmatpush1.msra.mxu0 %v456
        %458 = vmatprep.subr.mxu0 0.0
        %v459 = vand.u32 %v439, 4294901760
        %460 = vmatpush1.msra.mxu0 %v459
        %461 = vmatprep.subr.mxu0 0.0
        %v462 = vand.u32 %v440, 4294901760
        %463 = vmatpush1.msra.mxu0 %v462
        %464 = vmatprep.subr.mxu0 0.0
        %465 = vmatpush1.msra.mxu0 0.0
        %466 = vmatprep.subr.mxu0 0.0
        %467 = vmatpush1.msra.mxu0 0.0
        %468 = vmatprep.subr.mxu0 0.0
        %469 = vmatpush1.msra.mxu0 0.0
        %470 = vmatprep.subr.mxu0 0.0
        %471 = vmatpush1.msra.mxu0 0.0
        %472 = vmatprep.subr.mxu0 0.0
        %473 = vmatpush1.msra.mxu0 0.0
        %474 = vmatprep.subr.mxu0 0.0
        %475 = vmatpush1.msra.mxu0 0.0
        %476 = vmatprep.subr.mxu0 0.0
        %477 = vmatpush1.msra.mxu0 0.0
        %478 = vmatprep.subr.mxu0 0.0
        %479 = vmatpush1.msra.mxu0 0.0
        %480 = vmatprep.subr.mxu0 0.0
        %481 = vmatpush1.msra.mxu0 0.0
        %482 = vmatprep.subr.mxu0 0.0
        %483 = vmatpush1.msra.mxu0 0.0
        %484 = vmatprep.subr.mxu0 0.0
        %485 = vmatpush1.msra.mxu0 0.0
        %486 = vmatprep.subr.mxu0 0.0
        %487 = vmatpush1.msra.mxu0 0.0
        %488 = vmatprep.subr.mxu0 0.0
        %489 = vmatpush1.msra.mxu0 0.0
        %490 = vmatprep.subr.mxu0 0.0
        %491 = vmatpush1.msra.mxu0 0.0
        %492 = vmatprep.subr.mxu0 0.0
        %493 = vmatpush1.msra.mxu0 0.0
        %494 = vmatprep.subr.mxu0 0.0
        %495 = vmatpush1.msra.mxu0 0.0
        %496 = vmatprep.subr.mxu0 0.0
        %497 = vmatpush1.msra.mxu0 0.0
        %498 = vmatprep.subr.mxu0 0.0
        %499 = vmatpush1.msra.mxu0 0.0
        %500 = vmatprep.subr.mxu0 0.0
        %501 = vmatpush1.msra.mxu0 0.0
        %502 = vmatprep.subr.mxu0 0.0
        %503 = vmatpush1.msra.mxu0 0.0
        %504 = vmatprep.subr.mxu0 0.0
        %505 = vmatpush1.msra.mxu0 0.0
        %506 = vmatprep.subr.mxu0 0.0
        %507 = vmatpush1.msra.mxu0 0.0
        %508 = vmatprep.subr.mxu0 0.0
        %509 = vmatpush1.msra.mxu0 0.0
        %510 = vmatprep.subr.mxu0 0.0
        %511 = vmatpush1.msra.mxu0 0.0
        %512 = vmatprep.subr.mxu0 0.0
        %513 = vmatpush1.msra.mxu0 0.0
        %514 = vmatprep.subr.mxu0 0.0
        %515 = vmatpush1.msra.mxu0 0.0
        %516 = vmatprep.subr.mxu0 0.0
        %517 = vmatpush1.msra.mxu0 0.0
        %518 = vmatprep.subr.mxu0 0.0
        %519 = vmatpush1.msra.mxu0 0.0
        %520 = vmatprep.mubr.f32.mxu0 0.0
        %v521 = vand.u32 %v450, 4294901760
        %v522 = vsub.f32 %v450, %v521
        %v523 = vand.u32 %v522, 4294901760
        %v524 = vsub.f32 %v522, %v523
        %v525 = vand.u32 %v524, 4294901760
        %526 = vmatmul.mubr.f32.gmra.mrb[0].mxu0 %v525
        %v527 = vpop.f32.mrb[0].mxu0
        %v528 = vadd.f32 %v446, %v527
        %v529 = vpop.f32.mrb[0].mxu0
        %530 = vdwg.mxu0
        %531 = vmatprep.subr.mxu0 0.0
        %v532 = vand.u32 %v437, 4294901760
        %v533 = vsub.f32 %v437, %v532
        %v534 = vand.u32 %v533, 4294901760
        %v535 = vsub.f32 %v533, %v534
        %v536 = vand.u32 %v535, 4294901760
        %537 = vmatpush1.msra.mxu0 %v536
        %538 = vmatprep.subr.mxu0 0.0
        %v539 = vand.u32 %v438, 4294901760
        %v540 = vsub.f32 %v438, %v539
        %v541 = vand.u32 %v540, 4294901760
        %v542 = vsub.f32 %v540, %v541
        %v543 = vand.u32 %v542, 4294901760
        %544 = vmatpush1.msra.mxu0 %v543
        %545 = vmatprep.subr.mxu0 0.0
        %v546 = vand.u32 %v439, 4294901760
        %v547 = vsub.f32 %v439, %v546
        %v548 = vand.u32 %v547, 4294901760
        %v549 = vsub.f32 %v547, %v548
        %v550 = vand.u32 %v549, 4294901760
        %551 = vmatpush1.msra.mxu0 %v550
        %552 = vmatprep.subr.mxu0 0.0
        %v553 = vand.u32 %v440, 4294901760
        %v554 = vsub.f32 %v440, %v553
        %v555 = vand.u32 %v554, 4294901760
        %v556 = vsub.f32 %v554, %v555
        %v557 = vand.u32 %v556, 4294901760
        %558 = vmatpush1.msra.mxu0 %v557
        %559 = vmatprep.subr.mxu0 0.0
        %560 = vmatpush1.msra.mxu0 0.0
        %561 = vmatprep.subr.mxu0 0.0
        %562 = vmatpush1.msra.mxu0 0.0
        %563 = vmatprep.subr.mxu0 0.0
        %564 = vmatpush1.msra.mxu0 0.0
        %565 = vmatprep.subr.mxu0 0.0
        %566 = vmatpush1.msra.mxu0 0.0
        %567 = vmatprep.subr.mxu0 0.0
        %568 = vmatpush1.msra.mxu0 0.0
        %569 = vmatprep.subr.mxu0 0.0
        %570 = vmatpush1.msra.mxu0 0.0
        %571 = vmatprep.subr.mxu0 0.0
        %572 = vmatpush1.msra.mxu0 0.0
        %573 = vmatprep.subr.mxu0 0.0
        %574 = vmatpush1.msra.mxu0 0.0
        %575 = vmatprep.subr.mxu0 0.0
        %576 = vmatpush1.msra.mxu0 0.0
        %577 = vmatprep.subr.mxu0 0.0
        %578 = vmatpush1.msra.mxu0 0.0
        %579 = vmatprep.subr.mxu0 0.0
        %580 = vmatpush1.msra.mxu0 0.0
        %581 = vmatprep.subr.mxu0 0.0
        %582 = vmatpush1.msra.mxu0 0.0
        %583 = vmatprep.subr.mxu0 0.0
        %584 = vmatpush1.msra.mxu0 0.0
        %585 = vmatprep.subr.mxu0 0.0
        %586 = vmatpush1.msra.mxu0 0.0
        %587 = vmatprep.subr.mxu0 0.0
        %588 = vmatpush1.msra.mxu0 0.0
        %589 = vmatprep.subr.mxu0 0.0
        %590 = vmatpush1.msra.mxu0 0.0
        %591 = vmatprep.subr.mxu0 0.0
        %592 = vmatpush1.msra.mxu0 0.0
        %593 = vmatprep.subr.mxu0 0.0
        %594 = vmatpush1.msra.mxu0 0.0
        %595 = vmatprep.subr.mxu0 0.0
        %596 = vmatpush1.msra.mxu0 0.0
        %597 = vmatprep.subr.mxu0 0.0
        %598 = vmatpush1.msra.mxu0 0.0
        %599 = vmatprep.subr.mxu0 0.0
        %600 = vmatpush1.msra.mxu0 0.0
        %601 = vmatprep.subr.mxu0 0.0
        %602 = vmatpush1.msra.mxu0 0.0
        %603 = vmatprep.subr.mxu0 0.0
        %604 = vmatpush1.msra.mxu0 0.0
        %605 = vmatprep.subr.mxu0 0.0
        %606 = vmatpush1.msra.mxu0 0.0
        %607 = vmatprep.subr.mxu0 0.0
        %608 = vmatpush1.msra.mxu0 0.0
        %609 = vmatprep.subr.mxu0 0.0
        %610 = vmatpush1.msra.mxu0 0.0
        %611 = vmatprep.subr.mxu0 0.0
        %612 = vmatpush1.msra.mxu0 0.0
        %613 = vmatprep.subr.mxu0 0.0
        %614 = vmatpush1.msra.mxu0 0.0
        %615 = vmatprep.mubr.f32.mxu0 0.0
        %v616 = vand.u32 %v450, 4294901760
        %617 = vmatmul.mubr.f32.gmra.mrb[0].mxu0 %v616
        %v618 = vpop.f32.mrb[0].mxu0
        %v619 = vadd.f32 %v528, %v618
        %v620 = vpop.f32.mrb[0].mxu0
        %621 = vdwg.mxu0
        %622 = vmatprep.subr.mxu0 0.0
        %v623 = vand.u32 %v437, 4294901760
        %v624 = vsub.f32 %v437, %v623
        %625 = vmatpush1.msra.mxu0 %v624
        %626 = vmatprep.subr.mxu0 0.0
        %v627 = vand.u32 %v438, 4294901760
        %v628 = vsub.f32 %v438, %v627
        %629 = vmatpush1.msra.mxu0 %v628
        %630 = vmatprep.subr.mxu0 0.0
        %v631 = vand.u32 %v439, 4294901760
        %v632 = vsub.f32 %v439, %v631
        %633 = vmatpush1.msra.mxu0 %v632
        %634 = vmatprep.subr.mxu0 0.0
        %v635 = vand.u32 %v440, 4294901760
        %v636 = vsub.f32 %v440, %v635
        %637 = vmatpush1.msra.mxu0 %v636
        %638 = vmatprep.subr.mxu0 0.0
        %639 = vmatpush1.msra.mxu0 0.0
        %640 = vmatprep.subr.mxu0 0.0
        %641 = vmatpush1.msra.mxu0 0.0
        %642 = vmatprep.subr.mxu0 0.0
        %643 = vmatpush1.msra.mxu0 0.0
        %644 = vmatprep.subr.mxu0 0.0
        %645 = vmatpush1.msra.mxu0 0.0
        %646 = vmatprep.subr.mxu0 0.0
        %647 = vmatpush1.msra.mxu0 0.0
        %648 = vmatprep.subr.mxu0 0.0
        %649 = vmatpush1.msra.mxu0 0.0
        %650 = vmatprep.subr.mxu0 0.0
        %651 = vmatpush1.msra.mxu0 0.0
        %652 = vmatprep.subr.mxu0 0.0
        %653 = vmatpush1.msra.mxu0 0.0
        %654 = vmatprep.subr.mxu0 0.0
        %655 = vmatpush1.msra.mxu0 0.0
        %656 = vmatprep.subr.mxu0 0.0
        %657 = vmatpush1.msra.mxu0 0.0
        %658 = vmatprep.subr.mxu0 0.0
        %659 = vmatpush1.msra.mxu0 0.0
        %660 = vmatprep.subr.mxu0 0.0
        %661 = vmatpush1.msra.mxu0 0.0
        %662 = vmatprep.subr.mxu0 0.0
        %663 = vmatpush1.msra.mxu0 0.0
        %664 = vmatprep.subr.mxu0 0.0
        %665 = vmatpush1.msra.mxu0 0.0
        %666 = vmatprep.subr.mxu0 0.0
        %667 = vmatpush1.msra.mxu0 0.0
        %668 = vmatprep.subr.mxu0 0.0
        %669 = vmatpush1.msra.mxu0 0.0
        %670 = vmatprep.subr.mxu0 0.0
        %671 = vmatpush1.msra.mxu0 0.0
        %672 = vmatprep.subr.mxu0 0.0
        %673 = vmatpush1.msra.mxu0 0.0
        %674 = vmatprep.subr.mxu0 0.0
        %675 = vmatpush1.msra.mxu0 0.0
        %676 = vmatprep.subr.mxu0 0.0
        %677 = vmatpush1.msra.mxu0 0.0
        %678 = vmatprep.subr.mxu0 0.0
        %679 = vmatpush1.msra.mxu0 0.0
        %680 = vmatprep.subr.mxu0 0.0
        %681 = vmatpush1.msra.mxu0 0.0
        %682 = vmatprep.subr.mxu0 0.0
        %683 = vmatpush1.msra.mxu0 0.0
        %684 = vmatprep.subr.mxu0 0.0
        %685 = vmatpush1.msra.mxu0 0.0
        %686 = vmatprep.subr.mxu0 0.0
        %687 = vmatpush1.msra.mxu0 0.0
        %688 = vmatprep.subr.mxu0 0.0
        %689 = vmatpush1.msra.mxu0 0.0
        %690 = vmatprep.subr.mxu0 0.0
        %691 = vmatpush1.msra.mxu0 0.0
        %692 = vmatprep.subr.mxu0 0.0
        %693 = vmatpush1.msra.mxu0 0.0
        %694 = vmatprep.mubr.f32.mxu0 0.0
        %v695 = vand.u32 %v450, 4294901760
        %v696 = vsub.f32 %v450, %v695
        %697 = vmatmul.mubr.f32.gmra.mrb[0].mxu0 %v696
        %v698 = vpop.f32.mrb[0].mxu0
        %v699 = vadd.f32 %v619, %v698
        %v700 = vpop.f32.mrb[0].mxu0
        %701 = vdwg.mxu0
        %702 = vmatprep.subr.mxu0 0.0
        %v703 = vand.u32 %v437, 4294901760
        %704 = vmatpush1.msra.mxu0 %v703
        %705 = vmatprep.subr.mxu0 0.0
        %v706 = vand.u32 %v438, 4294901760
        %707 = vmatpush1.msra.mxu0 %v706
        %708 = vmatprep.subr.mxu0 0.0
        %v709 = vand.u32 %v439, 4294901760
        %710 = vmatpush1.msra.mxu0 %v709
        %711 = vmatprep.subr.mxu0 0.0
        %v712 = vand.u32 %v440, 4294901760
        %713 = vmatpush1.msra.mxu0 %v712
        %714 = vmatprep.subr.mxu0 0.0
        %715 = vmatpush1.msra.mxu0 0.0
        %716 = vmatprep.subr.mxu0 0.0
        %717 = vmatpush1.msra.mxu0 0.0
        %718 = vmatprep.subr.mxu0 0.0
        %719 = vmatpush1.msra.mxu0 0.0
        %720 = vmatprep.subr.mxu0 0.0
        %721 = vmatpush1.msra.mxu0 0.0
        %722 = vmatprep.subr.mxu0 0.0
        %723 = vmatpush1.msra.mxu0 0.0
        %724 = vmatprep.subr.mxu0 0.0
        %725 = vmatpush1.msra.mxu0 0.0
        %726 = vmatprep.subr.mxu0 0.0
        %727 = vmatpush1.msra.mxu0 0.0
        %728 = vmatprep.subr.mxu0 0.0
        %729 = vmatpush1.msra.mxu0 0.0
        %730 = vmatprep.subr.mxu0 0.0
        %731 = vmatpush1.msra.mxu0 0.0
        %732 = vmatprep.subr.mxu0 0.0
        %733 = vmatpush1.msra.mxu0 0.0
        %734 = vmatprep.subr.mxu0 0.0
        %735 = vmatpush1.msra.mxu0 0.0
        %736 = vmatprep.subr.mxu0 0.0
        %737 = vmatpush1.msra.mxu0 0.0
        %738 = vmatprep.subr.mxu0 0.0
        %739 = vmatpush1.msra.mxu0 0.0
        %740 = vmatprep.subr.mxu0 0.0
        %741 = vmatpush1.msra.mxu0 0.0
        %742 = vmatprep.subr.mxu0 0.0
        %743 = vmatpush1.msra.mxu0 0.0
        %744 = vmatprep.subr.mxu0 0.0
        %745 = vmatpush1.msra.mxu0 0.0
        %746 = vmatprep.subr.mxu0 0.0
        %747 = vmatpush1.msra.mxu0 0.0
        %748 = vmatprep.subr.mxu0 0.0
        %749 = vmatpush1.msra.mxu0 0.0
        %750 = vmatprep.subr.mxu0 0.0
        %751 = vmatpush1.msra.mxu0 0.0
        %752 = vmatprep.subr.mxu0 0.0
        %753 = vmatpush1.msra.mxu0 0.0
        %754 = vmatprep.subr.mxu0 0.0
        %755 = vmatpush1.msra.mxu0 0.0
        %756 = vmatprep.subr.mxu0 0.0
        %757 = vmatpush1.msra.mxu0 0.0
        %758 = vmatprep.subr.mxu0 0.0
        %759 = vmatpush1.msra.mxu0 0.0
        %760 = vmatprep.subr.mxu0 0.0
        %761 = vmatpush1.msra.mxu0 0.0
        %762 = vmatprep.subr.mxu0 0.0
        %763 = vmatpush1.msra.mxu0 0.0
        %764 = vmatprep.subr.mxu0 0.0
        %765 = vmatpush1.msra.mxu0 0.0
        %766 = vmatprep.subr.mxu0 0.0
        %767 = vmatpush1.msra.mxu0 0.0
        %768 = vmatprep.subr.mxu0 0.0
        %769 = vmatpush1.msra.mxu0 0.0
        %770 = vmatprep.mubr.f32.mxu0 0.0
        %v771 = vand.u32 %v450, 4294901760
        %v772 = vsub.f32 %v450, %v771
        %v773 = vand.u32 %v772, 4294901760
        %774 = vmatmul.mubr.f32.gmra.mrb[0].mxu0 %v773
        %v775 = vpop.f32.mrb[0].mxu0
        %v776 = vadd.f32 %v699, %v775
        %v777 = vpop.f32.mrb[0].mxu0
        %778 = vdwg.mxu0
        %779 = vmatprep.subr.mxu0 0.0
        %v780 = vand.u32 %v437, 4294901760
        %v781 = vsub.f32 %v437, %v780
        %v782 = vand.u32 %v781, 4294901760
        %783 = vmatpush1.msra.mxu0 %v782
        %784 = vmatprep.subr.mxu0 0.0
        %v785 = vand.u32 %v438, 4294901760
        %v786 = vsub.f32 %v438, %v785
        %v787 = vand.u32 %v786, 4294901760
        %788 = vmatpush1.msra.mxu0 %v787
        %789 = vmatprep.subr.mxu0 0.0
        %v790 = vand.u32 %v439, 4294901760
        %v791 = vsub.f32 %v439, %v790
        %v792 = vand.u32 %v791, 4294901760
        %793 = vmatpush1.msra.mxu0 %v792
        %794 = vmatprep.subr.mxu0 0.0
        %v795 = vand.u32 %v440, 4294901760
        %v796 = vsub.f32 %v440, %v795
        %v797 = vand.u32 %v796, 4294901760
        %798 = vmatpush1.msra.mxu0 %v797
        %799 = vmatprep.subr.mxu0 0.0
        %800 = vmatpush1.msra.mxu0 0.0
        %801 = vmatprep.subr.mxu0 0.0
        %802 = vmatpush1.msra.mxu0 0.0
        %803 = vmatprep.subr.mxu0 0.0
        %804 = vmatpush1.msra.mxu0 0.0
        %805 = vmatprep.subr.mxu0 0.0
        %806 = vmatpush1.msra.mxu0 0.0
        %807 = vmatprep.subr.mxu0 0.0
        %808 = vmatpush1.msra.mxu0 0.0
        %809 = vmatprep.subr.mxu0 0.0
        %810 = vmatpush1.msra.mxu0 0.0
        %811 = vmatprep.subr.mxu0 0.0
        %812 = vmatpush1.msra.mxu0 0.0
        %813 = vmatprep.subr.mxu0 0.0
        %814 = vmatpush1.msra.mxu0 0.0
        %815 = vmatprep.subr.mxu0 0.0
        %816 = vmatpush1.msra.mxu0 0.0
        %817 = vmatprep.subr.mxu0 0.0
        %818 = vmatpush1.msra.mxu0 0.0
        %819 = vmatprep.subr.mxu0 0.0
        %820 = vmatpush1.msra.mxu0 0.0
        %821 = vmatprep.subr.mxu0 0.0
        %822 = vmatpush1.msra.mxu0 0.0
        %823 = vmatprep.subr.mxu0 0.0
        %824 = vmatpush1.msra.mxu0 0.0
        %825 = vmatprep.subr.mxu0 0.0
        %826 = vmatpush1.msra.mxu0 0.0
        %827 = vmatprep.subr.mxu0 0.0
        %828 = vmatpush1.msra.mxu0 0.0
        %829 = vmatprep.subr.mxu0 0.0
        %830 = vmatpush1.msra.mxu0 0.0
        %831 = vmatprep.subr.mxu0 0.0
        %832 = vmatpush1.msra.mxu0 0.0
        %833 = vmatprep.subr.mxu0 0.0
        %834 = vmatpush1.msra.mxu0 0.0
        %835 = vmatprep.subr.mxu0 0.0
        %836 = vmatpush1.msra.mxu0 0.0
        %837 = vmatprep.subr.mxu0 0.0
        %838 = vmatpush1.msra.mxu0 0.0
        %839 = vmatprep.subr.mxu0 0.0
        %840 = vmatpush1.msra.mxu0 0.0
        %841 = vmatprep.subr.mxu0 0.0
        %842 = vmatpush1.msra.mxu0 0.0
        %843 = vmatprep.subr.mxu0 0.0
        %844 = vmatpush1.msra.mxu0 0.0
        %845 = vmatprep.subr.mxu0 0.0
        %846 = vmatpush1.msra.mxu0 0.0
        %847 = vmatprep.subr.mxu0 0.0
        %848 = vmatpush1.msra.mxu0 0.0
        %849 = vmatprep.subr.mxu0 0.0
        %850 = vmatpush1.msra.mxu0 0.0
        %851 = vmatprep.subr.mxu0 0.0
        %852 = vmatpush1.msra.mxu0 0.0
        %853 = vmatprep.subr.mxu0 0.0
        %854 = vmatpush1.msra.mxu0 0.0
        %855 = vmatprep.mubr.f32.mxu0 0.0
        %v856 = vand.u32 %v450, 4294901760
        %857 = vmatmul.mubr.f32.gmra.mrb[0].mxu0 %v856
        %v858 = vpop.f32.mrb[0].mxu0
        %v859 = vadd.f32 %v776, %v858
        %v860 = vpop.f32.mrb[0].mxu0
        %861 = vdwg.mxu0
        %862 = vmatprep.subr.mxu0 0.0
        %v863 = vand.u32 %v437, 4294901760
        %864 = vmatpush1.msra.mxu0 %v863
        %865 = vmatprep.subr.mxu0 0.0
        %v866 = vand.u32 %v438, 4294901760
        %867 = vmatpush1.msra.mxu0 %v866
        %868 = vmatprep.subr.mxu0 0.0
        %v869 = vand.u32 %v439, 4294901760
        %870 = vmatpush1.msra.mxu0 %v869
        %871 = vmatprep.subr.mxu0 0.0
        %v872 = vand.u32 %v440, 4294901760
        %873 = vmatpush1.msra.mxu0 %v872
        %874 = vmatprep.subr.mxu0 0.0
        %875 = vmatpush1.msra.mxu0 0.0
        %876 = vmatprep.subr.mxu0 0.0
        %877 = vmatpush1.msra.mxu0 0.0
        %878 = vmatprep.subr.mxu0 0.0
        %879 = vmatpush1.msra.mxu0 0.0
        %880 = vmatprep.subr.mxu0 0.0
        %881 = vmatpush1.msra.mxu0 0.0
        %882 = vmatprep.subr.mxu0 0.0
        %883 = vmatpush1.msra.mxu0 0.0
        %884 = vmatprep.subr.mxu0 0.0
        %885 = vmatpush1.msra.mxu0 0.0
        %886 = vmatprep.subr.mxu0 0.0
        %887 = vmatpush1.msra.mxu0 0.0
        %888 = vmatprep.subr.mxu0 0.0
        %889 = vmatpush1.msra.mxu0 0.0
        %890 = vmatprep.subr.mxu0 0.0
        %891 = vmatpush1.msra.mxu0 0.0
        %892 = vmatprep.subr.mxu0 0.0
        %893 = vmatpush1.msra.mxu0 0.0
        %894 = vmatprep.subr.mxu0 0.0
        %895 = vmatpush1.msra.mxu0 0.0
        %896 = vmatprep.subr.mxu0 0.0
        %897 = vmatpush1.msra.mxu0 0.0
        %898 = vmatprep.subr.mxu0 0.0
        %899 = vmatpush1.msra.mxu0 0.0
        %900 = vmatprep.subr.mxu0 0.0
        %901 = vmatpush1.msra.mxu0 0.0
        %902 = vmatprep.subr.mxu0 0.0
        %903 = vmatpush1.msra.mxu0 0.0
        %904 = vmatprep.subr.mxu0 0.0
        %905 = vmatpush1.msra.mxu0 0.0
        %906 = vmatprep.subr.mxu0 0.0
        %907 = vmatpush1.msra.mxu0 0.0
        %908 = vmatprep.subr.mxu0 0.0
        %909 = vmatpush1.msra.mxu0 0.0
        %910 = vmatprep.subr.mxu0 0.0
        %911 = vmatpush1.msra.mxu0 0.0
        %912 = vmatprep.subr.mxu0 0.0
        %913 = vmatpush1.msra.mxu0 0.0
        %914 = vmatprep.subr.mxu0 0.0
        %915 = vmatpush1.msra.mxu0 0.0
        %916 = vmatprep.subr.mxu0 0.0
        %917 = vmatpush1.msra.mxu0 0.0
        %918 = vmatprep.subr.mxu0 0.0
        %919 = vmatpush1.msra.mxu0 0.0
        %920 = vmatprep.subr.mxu0 0.0
        %921 = vmatpush1.msra.mxu0 0.0
        %922 = vmatprep.subr.mxu0 0.0
        %923 = vmatpush1.msra.mxu0 0.0
        %924 = vmatprep.subr.mxu0 0.0
        %925 = vmatpush1.msra.mxu0 0.0
        %926 = vmatprep.subr.mxu0 0.0
        %927 = vmatpush1.msra.mxu0 0.0
        %928 = vmatprep.subr.mxu0 0.0
        %929 = vmatpush1.msra.mxu0 0.0
        %930 = vmatprep.mubr.f32.mxu0 0.0
        %v931 = vand.u32 %v450, 4294901760
        %932 = vmatmul.mubr.f32.gmra.mrb[0].mxu0 %v931
        %v933 = vpop.f32.mrb[0].mxu0
        %v934 = vadd.f32 %v859, %v933
        %v935 = vpop.f32.mrb[0].mxu0
        %936 = vdwg.mxu0
        %p937 = scmp.eq.s32.totalorder %s34, 0
        // Predicated region
        $region77: #{tpu_custom_call.1} parent=59 // pred_check
          %p938 = pneg %p937
        $region78: #{tpu_custom_call.1} parent=59 // pred_check_branch
          %940 = sbr.rel (%p938) target = $region80
        $region79: #{tpu_custom_call.1} parent=59 // pred_region
          %vm941 = vcmask 523264
          %942 = vst.msk [vmem:[#allocation2] sm:$0xff] %vm941, 0.0
        $region80: #{tpu_custom_call.1} parent=59 // pred_fallthru
          _
        %v943 = vld [vmem:[#allocation2] sm:$0xff]
        %vm944 = vcmask 523264
        %945 = vst.msk [vmem:[#allocation3] sm:$0xff] %vm944, %v943
        %946 = vst.msk [vmem:[#allocation3 + $0x8] sm:$0xff] %vm944, %v934
        %v947 = vld [vmem:[#allocation3 + $0x8] sm:$0xff]
        %948 = vst.msk [vmem:[#allocation2] sm:$0xff] %vm944, %v947
        %v949 = vld [vmem:[#allocation3] sm:$0xff]
        %v950 = vld [vmem:[#allocation3 + $0x8] sm:$0xff]
        %v951 = vld [vmem:[%s3] sm:$0x7]
        %v952 = vld [vmem:[%s4] sm:$0x1]
        %v954 = vlaneseq
        %v955 = vshrl.u32 %v954, 7
        %v956 = vsub.s32 0, %v955
        %v957 = vrot.slane %v952, %v956
        %v959 = vrot.slane %v949, 6
        %v960 = vrot.slane %v950, 6
        %v961 = vlaneseq
        %v962 = vshrl.u32 %v961, 7
        %vm963 = vcmp.lt.s32.totalorder %v962, 2
        %v964 = vsel %vm963, %v959, %v960
        %v965 = vlaneseq
        %v966 = vshrl.u32 %v965, 7
        %v967 = vsub.s32 0, %v966
        %v968 = vrot.slane %v951, %v967
        %v969 = vmul.f32 %v968, %v964
        %v970 = vadd.f32 %v957, %v969
        %v971 = vrot.slane %v949, 7
        %v972 = vrot.slane %v950, 7
        %vm973 = vcmp.lt.s32.totalorder %v962, 1
        %v974 = vsel %vm973, %v971, %v972
        %v975 = vlaneseq
        %v976 = vshrl.u32 %v975, 7
        %v977 = vsub.s32 1, %v976
        %v978 = vrot.slane %v951, %v977
        %v979 = vmul.f32 %v978, %v974
        %v980 = vadd.f32 %v970, %v979
        %v981 = vlaneseq
        %v982 = vshrl.u32 %v981, 7
        %v983 = vsub.s32 2, %v982
        %v984 = vrot.slane %v951, %v983
        %v985 = vmul.f32 %v984, %v950
        %v986 = vadd.f32 %v980, %v985
        %v987 = vxor.u32 %v986, 2147483648
        %v988 = vmul.f32 %v987, 1.442695
        %v989 = vpow.pop %v988
        %v990 = vadd.f32 %v989, 1.0
        %v991 = vrcp.pop %v990
        %v992 = vmul.f32 1.0, %v991
        %v993 = vmul.f32 %v986, %v992
        %v994 = vld [vmem:[#allocation16] sm:$0xff]
        %v995 = vld [vmem:[#allocation16 + $0x8] sm:$0xff]
        %v996 = vld [vmem:[#allocation16 + $0x10] sm:$0xff]
        %v997 = vld [vmem:[#allocation16 + $0x18] sm:$0xff]
        %v998 = vld [vmem:[#allocation16 + $0x20] sm:$0xff]
        %v999 = vld [vmem:[#allocation16 + $0x28] sm:$0xff]
        %v1000 = vld [vmem:[#allocation16 + $0x30] sm:$0xff]
        %v1001 = vld [vmem:[#allocation16 + $0x38] sm:$0xff]
        %v1002 = vld [vmem:[%s6] sm:$0x1]
        %v1004 = vlaneseq
        %v1005 = vshrl.u32 %v1004, 7
        %v1006 = vsub.s32 0, %v1005
        %v1007 = vrot.slane %v1002, %v1006
        %v1010 = vsel %vm944, %v993, 0
        %1012 = vmatprep.subr.mxu0 0.0
        %v1013 = vand.u32 %v994, 4294901760
        %1014 = vmatpush1.msra.mxu0 %v1013
        %1015 = vmatprep.subr.mxu0 0.0
        %v1016 = vand.u32 %v995, 4294901760
        %1017 = vmatpush1.msra.mxu0 %v1016
        %1018 = vmatprep.subr.mxu0 0.0
        %v1019 = vand.u32 %v996, 4294901760
        %1020 = vmatpush1.msra.mxu0 %v1019
        %1021 = vmatprep.subr.mxu0 0.0
        %v1022 = vand.u32 %v997, 4294901760
        %1023 = vmatpush1.msra.mxu0 %v1022
        %1024 = vmatprep.subr.mxu0 0.0
        %v1025 = vand.u32 %v998, 4294901760
        %1026 = vmatpush1.msra.mxu0 %v1025
        %1027 = vmatprep.subr.mxu0 0.0
        %v1028 = vand.u32 %v999, 4294901760
        %1029 = vmatpush1.msra.mxu0 %v1028
        %1030 = vmatprep.subr.mxu0 0.0
        %v1031 = vand.u32 %v1000, 4294901760
        %1032 = vmatpush1.msra.mxu0 %v1031
        %1033 = vmatprep.subr.mxu0 0.0
        %v1034 = vand.u32 %v1001, 4294901760
        %1035 = vmatpush1.msra.mxu0 %v1034
        %1036 = vmatprep.subr.mxu0 0.0
        %1037 = vmatpush1.msra.mxu0 0.0
        %1038 = vmatprep.subr.mxu0 0.0
        %1039 = vmatpush1.msra.mxu0 0.0
        %1040 = vmatprep.subr.mxu0 0.0
        %1041 = vmatpush1.msra.mxu0 0.0
        %1042 = vmatprep.subr.mxu0 0.0
        %1043 = vmatpush1.msra.mxu0 0.0
        %1044 = vmatprep.subr.mxu0 0.0
        %1045 = vmatpush1.msra.mxu0 0.0
        %1046 = vmatprep.subr.mxu0 0.0
        %1047 = vmatpush1.msra.mxu0 0.0
        %1048 = vmatprep.subr.mxu0 0.0
        %1049 = vmatpush1.msra.mxu0 0.0
        %1050 = vmatprep.subr.mxu0 0.0
        %1051 = vmatpush1.msra.mxu0 0.0
        %1052 = vmatprep.subr.mxu0 0.0
        %1053 = vmatpush1.msra.mxu0 0.0
        %1054 = vmatprep.subr.mxu0 0.0
        %1055 = vmatpush1.msra.mxu0 0.0
        %1056 = vmatprep.subr.mxu0 0.0
        %1057 = vmatpush1.msra.mxu0 0.0
        %1058 = vmatprep.subr.mxu0 0.0
        %1059 = vmatpush1.msra.mxu0 0.0
        %1060 = vmatprep.subr.mxu0 0.0
        %1061 = vmatpush1.msra.mxu0 0.0
        %1062 = vmatprep.subr.mxu0 0.0
        %1063 = vmatpush1.msra.mxu0 0.0
        %1064 = vmatprep.subr.mxu0 0.0
        %1065 = vmatpush1.msra.mxu0 0.0
        %1066 = vmatprep.subr.mxu0 0.0
        %1067 = vmatpush1.msra.mxu0 0.0
        %1068 = vmatprep.subr.mxu0 0.0
        %1069 = vmatpush1.msra.mxu0 0.0
        %1070 = vmatprep.subr.mxu0 0.0
        %1071 = vmatpush1.msra.mxu0 0.0
        %1072 = vmatprep.subr.mxu0 0.0
        %1073 = vmatpush1.msra.mxu0 0.0
        %1074 = vmatprep.subr.mxu0 0.0
        %1075 = vmatpush1.msra.mxu0 0.0
        %1076 = vmatprep.subr.mxu0 0.0
        %1077 = vmatpush1.msra.mxu0 0.0
        %1078 = vmatprep.subr.mxu0 0.0
        %1079 = vmatpush1.msra.mxu0 0.0
        %1080 = vmatprep.subr.mxu0 0.0
        %1081 = vmatpush1.msra.mxu0 0.0
        %1082 = vmatprep.subr.mxu0 0.0
        %1083 = vmatpush1.msra.mxu0 0.0
        %1084 = vmatprep.mubr.f32.mxu0 0.0
        %v1085 = vand.u32 %v1010, 4294901760
        %v1086 = vsub.f32 %v1010, %v1085
        %v1087 = vand.u32 %v1086, 4294901760
        %v1088 = vsub.f32 %v1086, %v1087
        %v1089 = vand.u32 %v1088, 4294901760
        %1090 = vmatmul.mubr.f32.gmra.mrb[0].mxu0 %v1089
        %v1091 = vpop.f32.mrb[0].mxu0
        %v1092 = vadd.f32 %v1007, %v1091
        %v1093 = vpop.f32.mrb[0].mxu0
        %1094 = vdwg.mxu0
        %1095 = vmatprep.subr.mxu0 0.0
        %v1096 = vand.u32 %v994, 4294901760
        %v1097 = vsub.f32 %v994, %v1096
        %v1098 = vand.u32 %v1097, 4294901760
        %v1099 = vsub.f32 %v1097, %v1098
        %v1100 = vand.u32 %v1099, 4294901760
        %1101 = vmatpush1.msra.mxu0 %v1100
        %1102 = vmatprep.subr.mxu0 0.0
        %v1103 = vand.u32 %v995, 4294901760
        %v1104 = vsub.f32 %v995, %v1103
        %v1105 = vand.u32 %v1104, 4294901760
        %v1106 = vsub.f32 %v1104, %v1105
        %v1107 = vand.u32 %v1106, 4294901760
        %1108 = vmatpush1.msra.mxu0 %v1107
        %1109 = vmatprep.subr.mxu0 0.0
        %v1110 = vand.u32 %v996, 4294901760
        %v1111 = vsub.f32 %v996, %v1110
        %v1112 = vand.u32 %v1111, 4294901760
        %v1113 = vsub.f32 %v1111, %v1112
        %v1114 = vand.u32 %v1113, 4294901760
        %1115 = vmatpush1.msra.mxu0 %v1114
        %1116 = vmatprep.subr.mxu0 0.0
        %v1117 = vand.u32 %v997, 4294901760
        %v1118 = vsub.f32 %v997, %v1117
        %v1119 = vand.u32 %v1118, 4294901760
        %v1120 = vsub.f32 %v1118, %v1119
        %v1121 = vand.u32 %v1120, 4294901760
        %1122 = vmatpush1.msra.mxu0 %v1121
        %1123 = vmatprep.subr.mxu0 0.0
        %v1124 = vand.u32 %v998, 4294901760
        %v1125 = vsub.f32 %v998, %v1124
        %v1126 = vand.u32 %v1125, 4294901760
        %v1127 = vsub.f32 %v1125, %v1126
        %v1128 = vand.u32 %v1127, 4294901760
        %1129 = vmatpush1.msra.mxu0 %v1128
        %1130 = vmatprep.subr.mxu0 0.0
        %v1131 = vand.u32 %v999, 4294901760
        %v1132 = vsub.f32 %v999, %v1131
        %v1133 = vand.u32 %v1132, 4294901760
        %v1134 = vsub.f32 %v1132, %v1133
        %v1135 = vand.u32 %v1134, 4294901760
        %1136 = vmatpush1.msra.mxu0 %v1135
        %1137 = vmatprep.subr.mxu0 0.0
        %v1138 = vand.u32 %v1000, 4294901760
        %v1139 = vsub.f32 %v1000, %v1138
        %v1140 = vand.u32 %v1139, 4294901760
        %v1141 = vsub.f32 %v1139, %v1140
        %v1142 = vand.u32 %v1141, 4294901760
        %1143 = vmatpush1.msra.mxu0 %v1142
        %1144 = vmatprep.subr.mxu0 0.0
        %v1145 = vand.u32 %v1001, 4294901760
        %v1146 = vsub.f32 %v1001, %v1145
        %v1147 = vand.u32 %v1146, 4294901760
        %v1148 = vsub.f32 %v1146, %v1147
        %v1149 = vand.u32 %v1148, 4294901760
        %1150 = vmatpush1.msra.mxu0 %v1149
        %1151 = vmatprep.subr.mxu0 0.0
        %1152 = vmatpush1.msra.mxu0 0.0
        %1153 = vmatprep.subr.mxu0 0.0
        %1154 = vmatpush1.msra.mxu0 0.0
        %1155 = vmatprep.subr.mxu0 0.0
        %1156 = vmatpush1.msra.mxu0 0.0
        %1157 = vmatprep.subr.mxu0 0.0
        %1158 = vmatpush1.msra.mxu0 0.0
        %1159 = vmatprep.subr.mxu0 0.0
        %1160 = vmatpush1.msra.mxu0 0.0
        %1161 = vmatprep.subr.mxu0 0.0
        %1162 = vmatpush1.msra.mxu0 0.0
        %1163 = vmatprep.subr.mxu0 0.0
        %1164 = vmatpush1.msra.mxu0 0.0
        %1165 = vmatprep.subr.mxu0 0.0
        %1166 = vmatpush1.msra.mxu0 0.0
        %1167 = vmatprep.subr.mxu0 0.0
        %1168 = vmatpush1.msra.mxu0 0.0
        %1169 = vmatprep.subr.mxu0 0.0
        %1170 = vmatpush1.msra.mxu0 0.0
        %1171 = vmatprep.subr.mxu0 0.0
        %1172 = vmatpush1.msra.mxu0 0.0
        %1173 = vmatprep.subr.mxu0 0.0
        %1174 = vmatpush1.msra.mxu0 0.0
        %1175 = vmatprep.subr.mxu0 0.0
        %1176 = vmatpush1.msra.mxu0 0.0
        %1177 = vmatprep.subr.mxu0 0.0
        %1178 = vmatpush1.msra.mxu0 0.0
        %1179 = vmatprep.subr.mxu0 0.0
        %1180 = vmatpush1.msra.mxu0 0.0
        %1181 = vmatprep.subr.mxu0 0.0
        %1182 = vmatpush1.msra.mxu0 0.0
        %1183 = vmatprep.subr.mxu0 0.0
        %1184 = vmatpush1.msra.mxu0 0.0
        %1185 = vmatprep.subr.mxu0 0.0
        %1186 = vmatpush1.msra.mxu0 0.0
        %1187 = vmatprep.subr.mxu0 0.0
        %1188 = vmatpush1.msra.mxu0 0.0
        %1189 = vmatprep.subr.mxu0 0.0
        %1190 = vmatpush1.msra.mxu0 0.0
        %1191 = vmatprep.subr.mxu0 0.0
        %1192 = vmatpush1.msra.mxu0 0.0
        %1193 = vmatprep.subr.mxu0 0.0
        %1194 = vmatpush1.msra.mxu0 0.0
        %1195 = vmatprep.subr.mxu0 0.0
        %1196 = vmatpush1.msra.mxu0 0.0
        %1197 = vmatprep.subr.mxu0 0.0
        %1198 = vmatpush1.msra.mxu0 0.0
        %1199 = vmatprep.mubr.f32.mxu0 0.0
        %v1200 = vand.u32 %v1010, 4294901760
        %1201 = vmatmul.mubr.f32.gmra.mrb[0].mxu0 %v1200
        %v1202 = vpop.f32.mrb[0].mxu0
        %v1203 = vadd.f32 %v1092, %v1202
        %v1204 = vpop.f32.mrb[0].mxu0
        %1205 = vdwg.mxu0
        %1206 = vmatprep.subr.mxu0 0.0
        %v1207 = vand.u32 %v994, 4294901760
        %v1208 = vsub.f32 %v994, %v1207
        %1209 = vmatpush1.msra.mxu0 %v1208
        %1210 = vmatprep.subr.mxu0 0.0
        %v1211 = vand.u32 %v995, 4294901760
        %v1212 = vsub.f32 %v995, %v1211
        %1213 = vmatpush1.msra.mxu0 %v1212
        %1214 = vmatprep.subr.mxu0 0.0
        %v1215 = vand.u32 %v996, 4294901760
        %v1216 = vsub.f32 %v996, %v1215
        %1217 = vmatpush1.msra.mxu0 %v1216
        %1218 = vmatprep.subr.mxu0 0.0
        %v1219 = vand.u32 %v997, 4294901760
        %v1220 = vsub.f32 %v997, %v1219
        %1221 = vmatpush1.msra.mxu0 %v1220
        %1222 = vmatprep.subr.mxu0 0.0
        %v1223 = vand.u32 %v998, 4294901760
        %v1224 = vsub.f32 %v998, %v1223
        %1225 = vmatpush1.msra.mxu0 %v1224
        %1226 = vmatprep.subr.mxu0 0.0
        %v1227 = vand.u32 %v999, 4294901760
        %v1228 = vsub.f32 %v999, %v1227
        %1229 = vmatpush1.msra.mxu0 %v1228
        %1230 = vmatprep.subr.mxu0 0.0
        %v1231 = vand.u32 %v1000, 4294901760
        %v1232 = vsub.f32 %v1000, %v1231
        %1233 = vmatpush1.msra.mxu0 %v1232
        %1234 = vmatprep.subr.mxu0 0.0
        %v1235 = vand.u32 %v1001, 4294901760
        %v1236 = vsub.f32 %v1001, %v1235
        %1237 = vmatpush1.msra.mxu0 %v1236
        %1238 = vmatprep.subr.mxu0 0.0
        %1239 = vmatpush1.msra.mxu0 0.0
        %1240 = vmatprep.subr.mxu0 0.0
        %1241 = vmatpush1.msra.mxu0 0.0
        %1242 = vmatprep.subr.mxu0 0.0
        %1243 = vmatpush1.msra.mxu0 0.0
        %1244 = vmatprep.subr.mxu0 0.0
        %1245 = vmatpush1.msra.mxu0 0.0
        %1246 = vmatprep.subr.mxu0 0.0
        %1247 = vmatpush1.msra.mxu0 0.0
        %1248 = vmatprep.subr.mxu0 0.0
        %1249 = vmatpush1.msra.mxu0 0.0
        %1250 = vmatprep.subr.mxu0 0.0
        %1251 = vmatpush1.msra.mxu0 0.0
        %1252 = vmatprep.subr.mxu0 0.0
        %1253 = vmatpush1.msra.mxu0 0.0
        %1254 = vmatprep.subr.mxu0 0.0
        %1255 = vmatpush1.msra.mxu0 0.0
        %1256 = vmatprep.subr.mxu0 0.0
        %1257 = vmatpush1.msra.mxu0 0.0
        %1258 = vmatprep.subr.mxu0 0.0
        %1259 = vmatpush1.msra.mxu0 0.0
        %1260 = vmatprep.subr.mxu0 0.0
        %1261 = vmatpush1.msra.mxu0 0.0
        %1262 = vmatprep.subr.mxu0 0.0
        %1263 = vmatpush1.msra.mxu0 0.0
        %1264 = vmatprep.subr.mxu0 0.0
        %1265 = vmatpush1.msra.mxu0 0.0
        %1266 = vmatprep.subr.mxu0 0.0
        %1267 = vmatpush1.msra.mxu0 0.0
        %1268 = vmatprep.subr.mxu0 0.0
        %1269 = vmatpush1.msra.mxu0 0.0
        %1270 = vmatprep.subr.mxu0 0.0
        %1271 = vmatpush1.msra.mxu0 0.0
        %1272 = vmatprep.subr.mxu0 0.0
        %1273 = vmatpush1.msra.mxu0 0.0
        %1274 = vmatprep.subr.mxu0 0.0
        %1275 = vmatpush1.msra.mxu0 0.0
        %1276 = vmatprep.subr.mxu0 0.0
        %1277 = vmatpush1.msra.mxu0 0.0
        %1278 = vmatprep.subr.mxu0 0.0
        %1279 = vmatpush1.msra.mxu0 0.0
        %1280 = vmatprep.subr.mxu0 0.0
        %1281 = vmatpush1.msra.mxu0 0.0
        %1282 = vmatprep.subr.mxu0 0.0
        %1283 = vmatpush1.msra.mxu0 0.0
        %1284 = vmatprep.subr.mxu0 0.0
        %1285 = vmatpush1.msra.mxu0 0.0
        %1286 = vmatprep.mubr.f32.mxu0 0.0
        %v1287 = vand.u32 %v1010, 4294901760
        %v1288 = vsub.f32 %v1010, %v1287
        %1289 = vmatmul.mubr.f32.gmra.mrb[0].mxu0 %v1288
        %v1290 = vpop.f32.mrb[0].mxu0
        %v1291 = vadd.f32 %v1203, %v1290
        %v1292 = vpop.f32.mrb[0].mxu0
        %1293 = vdwg.mxu0
        %1294 = vmatprep.subr.mxu0 0.0
        %v1295 = vand.u32 %v994, 4294901760
        %1296 = vmatpush1.msra.mxu0 %v1295
        %1297 = vmatprep.subr.mxu0 0.0
        %v1298 = vand.u32 %v995, 4294901760
        %1299 = vmatpush1.msra.mxu0 %v1298
        %1300 = vmatprep.subr.mxu0 0.0
        %v1301 = vand.u32 %v996, 4294901760
        %1302 = vmatpush1.msra.mxu0 %v1301
        %1303 = vmatprep.subr.mxu0 0.0
        %v1304 = vand.u32 %v997, 4294901760
        %1305 = vmatpush1.msra.mxu0 %v1304
        %1306 = vmatprep.subr.mxu0 0.0
        %v1307 = vand.u32 %v998, 4294901760
        %1308 = vmatpush1.msra.mxu0 %v1307
        %1309 = vmatprep.subr.mxu0 0.0
        %v1310 = vand.u32 %v999, 4294901760
        %1311 = vmatpush1.msra.mxu0 %v1310
        %1312 = vmatprep.subr.mxu0 0.0
        %v1313 = vand.u32 %v1000, 4294901760
        %1314 = vmatpush1.msra.mxu0 %v1313
        %1315 = vmatprep.subr.mxu0 0.0
        %v1316 = vand.u32 %v1001, 4294901760
        %1317 = vmatpush1.msra.mxu0 %v1316
        %1318 = vmatprep.subr.mxu0 0.0
        %1319 = vmatpush1.msra.mxu0 0.0
        %1320 = vmatprep.subr.mxu0 0.0
        %1321 = vmatpush1.msra.mxu0 0.0
        %1322 = vmatprep.subr.mxu0 0.0
        %1323 = vmatpush1.msra.mxu0 0.0
        %1324 = vmatprep.subr.mxu0 0.0
        %1325 = vmatpush1.msra.mxu0 0.0
        %1326 = vmatprep.subr.mxu0 0.0
        %1327 = vmatpush1.msra.mxu0 0.0
        %1328 = vmatprep.subr.mxu0 0.0
        %1329 = vmatpush1.msra.mxu0 0.0
        %1330 = vmatprep.subr.mxu0 0.0
        %1331 = vmatpush1.msra.mxu0 0.0
        %1332 = vmatprep.subr.mxu0 0.0
        %1333 = vmatpush1.msra.mxu0 0.0
        %1334 = vmatprep.subr.mxu0 0.0
        %1335 = vmatpush1.msra.mxu0 0.0
        %1336 = vmatprep.subr.mxu0 0.0
        %1337 = vmatpush1.msra.mxu0 0.0
        %1338 = vmatprep.subr.mxu0 0.0
        %1339 = vmatpush1.msra.mxu0 0.0
        %1340 = vmatprep.subr.mxu0 0.0
        %1341 = vmatpush1.msra.mxu0 0.0
        %1342 = vmatprep.subr.mxu0 0.0
        %1343 = vmatpush1.msra.mxu0 0.0
        %1344 = vmatprep.subr.mxu0 0.0
        %1345 = vmatpush1.msra.mxu0 0.0
        %1346 = vmatprep.subr.mxu0 0.0
        %1347 = vmatpush1.msra.mxu0 0.0
        %1348 = vmatprep.subr.mxu0 0.0
        %1349 = vmatpush1.msra.mxu0 0.0
        %1350 = vmatprep.subr.mxu0 0.0
        %1351 = vmatpush1.msra.mxu0 0.0
        %1352 = vmatprep.subr.mxu0 0.0
        %1353 = vmatpush1.msra.mxu0 0.0
        %1354 = vmatprep.subr.mxu0 0.0
        %1355 = vmatpush1.msra.mxu0 0.0
        %1356 = vmatprep.subr.mxu0 0.0
        %1357 = vmatpush1.msra.mxu0 0.0
        %1358 = vmatprep.subr.mxu0 0.0
        %1359 = vmatpush1.msra.mxu0 0.0
        %1360 = vmatprep.subr.mxu0 0.0
        %1361 = vmatpush1.msra.mxu0 0.0
        %1362 = vmatprep.subr.mxu0 0.0
        %1363 = vmatpush1.msra.mxu0 0.0
        %1364 = vmatprep.subr.mxu0 0.0
        %1365 = vmatpush1.msra.mxu0 0.0
        %1366 = vmatprep.mubr.f32.mxu0 0.0
        %v1367 = vand.u32 %v1010, 4294901760
        %v1368 = vsub.f32 %v1010, %v1367
        %v1369 = vand.u32 %v1368, 4294901760
        %1370 = vmatmul.mubr.f32.gmra.mrb[0].mxu0 %v1369
        %v1371 = vpop.f32.mrb[0].mxu0
        %v1372 = vadd.f32 %v1291, %v1371
        %v1373 = vpop.f32.mrb[0].mxu0
        %1374 = vdwg.mxu0
        %1375 = vmatprep.subr.mxu0 0.0
        %v1376 = vand.u32 %v994, 4294901760
        %v1377 = vsub.f32 %v994, %v1376
        %v1378 = vand.u32 %v1377, 4294901760
        %1379 = vmatpush1.msra.mxu0 %v1378
        %1380 = vmatprep.subr.mxu0 0.0
        %v1381 = vand.u32 %v995, 4294901760
        %v1382 = vsub.f32 %v995, %v1381
        %v1383 = vand.u32 %v1382, 4294901760
        %1384 = vmatpush1.msra.mxu0 %v1383
        %1385 = vmatprep.subr.mxu0 0.0
        %v1386 = vand.u32 %v996, 4294901760
        %v1387 = vsub.f32 %v996, %v1386
        %v1388 = vand.u32 %v1387, 4294901760
        %1389 = vmatpush1.msra.mxu0 %v1388
        %1390 = vmatprep.subr.mxu0 0.0
        %v1391 = vand.u32 %v997, 4294901760
        %v1392 = vsub.f32 %v997, %v1391
        %v1393 = vand.u32 %v1392, 4294901760
        %1394 = vmatpush1.msra.mxu0 %v1393
        %1395 = vmatprep.subr.mxu0 0.0
        %v1396 = vand.u32 %v998, 4294901760
        %v1397 = vsub.f32 %v998, %v1396
        %v1398 = vand.u32 %v1397, 4294901760
        %1399 = vmatpush1.msra.mxu0 %v1398
        %1400 = vmatprep.subr.mxu0 0.0
        %v1401 = vand.u32 %v999, 4294901760
        %v1402 = vsub.f32 %v999, %v1401
        %v1403 = vand.u32 %v1402, 4294901760
        %1404 = vmatpush1.msra.mxu0 %v1403
        %1405 = vmatprep.subr.mxu0 0.0
        %v1406 = vand.u32 %v1000, 4294901760
        %v1407 = vsub.f32 %v1000, %v1406
        %v1408 = vand.u32 %v1407, 4294901760
        %1409 = vmatpush1.msra.mxu0 %v1408
        %1410 = vmatprep.subr.mxu0 0.0
        %v1411 = vand.u32 %v1001, 4294901760
        %v1412 = vsub.f32 %v1001, %v1411
        %v1413 = vand.u32 %v1412, 4294901760
        %1414 = vmatpush1.msra.mxu0 %v1413
        %1415 = vmatprep.subr.mxu0 0.0
        %1416 = vmatpush1.msra.mxu0 0.0
        %1417 = vmatprep.subr.mxu0 0.0
        %1418 = vmatpush1.msra.mxu0 0.0
        %1419 = vmatprep.subr.mxu0 0.0
        %1420 = vmatpush1.msra.mxu0 0.0
        %1421 = vmatprep.subr.mxu0 0.0
        %1422 = vmatpush1.msra.mxu0 0.0
        %1423 = vmatprep.subr.mxu0 0.0
        %1424 = vmatpush1.msra.mxu0 0.0
        %1425 = vmatprep.subr.mxu0 0.0
        %1426 = vmatpush1.msra.mxu0 0.0
        %1427 = vmatprep.subr.mxu0 0.0
        %1428 = vmatpush1.msra.mxu0 0.0
        %1429 = vmatprep.subr.mxu0 0.0
        %1430 = vmatpush1.msra.mxu0 0.0
        %1431 = vmatprep.subr.mxu0 0.0
        %1432 = vmatpush1.msra.mxu0 0.0
        %1433 = vmatprep.subr.mxu0 0.0
        %1434 = vmatpush1.msra.mxu0 0.0
        %1435 = vmatprep.subr.mxu0 0.0
        %1436 = vmatpush1.msra.mxu0 0.0
        %1437 = vmatprep.subr.mxu0 0.0
        %1438 = vmatpush1.msra.mxu0 0.0
        %1439 = vmatprep.subr.mxu0 0.0
        %1440 = vmatpush1.msra.mxu0 0.0
        %1441 = vmatprep.subr.mxu0 0.0
        %1442 = vmatpush1.msra.mxu0 0.0
        %1443 = vmatprep.subr.mxu0 0.0
        %1444 = vmatpush1.msra.mxu0 0.0
        %1445 = vmatprep.subr.mxu0 0.0
        %1446 = vmatpush1.msra.mxu0 0.0
        %1447 = vmatprep.subr.mxu0 0.0
        %1448 = vmatpush1.msra.mxu0 0.0
        %1449 = vmatprep.subr.mxu0 0.0
        %1450 = vmatpush1.msra.mxu0 0.0
        %1451 = vmatprep.subr.mxu0 0.0
        %1452 = vmatpush1.msra.mxu0 0.0
        %1453 = vmatprep.subr.mxu0 0.0
        %1454 = vmatpush1.msra.mxu0 0.0
        %1455 = vmatprep.subr.mxu0 0.0
        %1456 = vmatpush1.msra.mxu0 0.0
        %1457 = vmatprep.subr.mxu0 0.0
        %1458 = vmatpush1.msra.mxu0 0.0
        %1459 = vmatprep.subr.mxu0 0.0
        %1460 = vmatpush1.msra.mxu0 0.0
        %1461 = vmatprep.subr.mxu0 0.0
        %1462 = vmatpush1.msra.mxu0 0.0
        %1463 = vmatprep.mubr.f32.mxu0 0.0
        %v1464 = vand.u32 %v1010, 4294901760
        %1465 = vmatmul.mubr.f32.gmra.mrb[0].mxu0 %v1464
        %v1466 = vpop.f32.mrb[0].mxu0
        %v1467 = vadd.f32 %v1372, %v1466
        %v1468 = vpop.f32.mrb[0].mxu0
        %1469 = vdwg.mxu0
        %1470 = vmatprep.subr.mxu0 0.0
        %v1471 = vand.u32 %v994, 4294901760
        %1472 = vmatpush1.msra.mxu0 %v1471
        %1473 = vmatprep.subr.mxu0 0.0
        %v1474 = vand.u32 %v995, 4294901760
        %1475 = vmatpush1.msra.mxu0 %v1474
        %1476 = vmatprep.subr.mxu0 0.0
        %v1477 = vand.u32 %v996, 4294901760
        %1478 = vmatpush1.msra.mxu0 %v1477
        %1479 = vmatprep.subr.mxu0 0.0
        %v1480 = vand.u32 %v997, 4294901760
        %1481 = vmatpush1.msra.mxu0 %v1480
        %1482 = vmatprep.subr.mxu0 0.0
        %v1483 = vand.u32 %v998, 4294901760
        %1484 = vmatpush1.msra.mxu0 %v1483
        %1485 = vmatprep.subr.mxu0 0.0
        %v1486 = vand.u32 %v999, 4294901760
        %1487 = vmatpush1.msra.mxu0 %v1486
        %1488 = vmatprep.subr.mxu0 0.0
        %v1489 = vand.u32 %v1000, 4294901760
        %1490 = vmatpush1.msra.mxu0 %v1489
        %1491 = vmatprep.subr.mxu0 0.0
        %v1492 = vand.u32 %v1001, 4294901760
        %1493 = vmatpush1.msra.mxu0 %v1492
        %1494 = vmatprep.subr.mxu0 0.0
        %1495 = vmatpush1.msra.mxu0 0.0
        %1496 = vmatprep.subr.mxu0 0.0
        %1497 = vmatpush1.msra.mxu0 0.0
        %1498 = vmatprep.subr.mxu0 0.0
        %1499 = vmatpush1.msra.mxu0 0.0
        %1500 = vmatprep.subr.mxu0 0.0
        %1501 = vmatpush1.msra.mxu0 0.0
        %1502 = vmatprep.subr.mxu0 0.0
        %1503 = vmatpush1.msra.mxu0 0.0
        %1504 = vmatprep.subr.mxu0 0.0
        %1505 = vmatpush1.msra.mxu0 0.0
        %1506 = vmatprep.subr.mxu0 0.0
        %1507 = vmatpush1.msra.mxu0 0.0
        %1508 = vmatprep.subr.mxu0 0.0
        %1509 = vmatpush1.msra.mxu0 0.0
        %1510 = vmatprep.subr.mxu0 0.0
        %1511 = vmatpush1.msra.mxu0 0.0
        %1512 = vmatprep.subr.mxu0 0.0
        %1513 = vmatpush1.msra.mxu0 0.0
        %1514 = vmatprep.subr.mxu0 0.0
        %1515 = vmatpush1.msra.mxu0 0.0
        %1516 = vmatprep.subr.mxu0 0.0
        %1517 = vmatpush1.msra.mxu0 0.0
        %1518 = vmatprep.subr.mxu0 0.0
        %1519 = vmatpush1.msra.mxu0 0.0
        %1520 = vmatprep.subr.mxu0 0.0
        %1521 = vmatpush1.msra.mxu0 0.0
        %1522 = vmatprep.subr.mxu0 0.0
        %1523 = vmatpush1.msra.mxu0 0.0
        %1524 = vmatprep.subr.mxu0 0.0
        %1525 = vmatpush1.msra.mxu0 0.0
        %1526 = vmatprep.subr.mxu0 0.0
        %1527 = vmatpush1.msra.mxu0 0.0
        %1528 = vmatprep.subr.mxu0 0.0
        %1529 = vmatpush1.msra.mxu0 0.0
        %1530 = vmatprep.subr.mxu0 0.0
        %1531 = vmatpush1.msra.mxu0 0.0
        %1532 = vmatprep.subr.mxu0 0.0
        %1533 = vmatpush1.msra.mxu0 0.0
        %1534 = vmatprep.subr.mxu0 0.0
        %1535 = vmatpush1.msra.mxu0 0.0
        %1536 = vmatprep.subr.mxu0 0.0
        %1537 = vmatpush1.msra.mxu0 0.0
        %1538 = vmatprep.subr.mxu0 0.0
        %1539 = vmatpush1.msra.mxu0 0.0
        %1540 = vmatprep.subr.mxu0 0.0
        %1541 = vmatpush1.msra.mxu0 0.0
        %1542 = vmatprep.mubr.f32.mxu0 0.0
        %v1543 = vand.u32 %v1010, 4294901760
        %1544 = vmatmul.mubr.f32.gmra.mrb[0].mxu0 %v1543
        %v1545 = vpop.f32.mrb[0].mxu0
        %v1546 = vadd.f32 %v1467, %v1545
        %v1547 = vpop.f32.mrb[0].mxu0
        %1548 = vdwg.mxu0
        %v1549 = vmax.f32 %v1546, 0.0
        %vm1550 = vcmp.ne.f32.partialorder %v1546, %v1546
        %v1551 = vadd.f32 %v1546, 0.0
        %v1552 = vand.u32 2147483647, %v1546
        %v1553 = vsub.f32 0.0, %v1552
        %v1554 = vmul.f32 %v1553, 1.442695
        %v1555 = vpow.pop %v1554
        %v1556 = vadd.f32 %v1555, 1.0
        %v1557 = vlog2.pop %v1556
        %v1558 = vmul.f32 %v1557, 0.6931472
        %v1559 = vmul.f32 -0.5, %v1555
        %v1560 = vadd.f32 %v1559, 1.0
        %v1561 = vmul.f32 %v1560, %v1555
        %v1562 = vand.u32 2147483647, %v1555
        %vm1563 = vcmp.lt.f32.partialorder %v1562, 0.0004427343
        %v1564 = vsel %vm1563, %v1561, %v1558
        %v1565 = vadd.f32 %v1549, %v1564
        %v1566 = vsel %vm1550, %v1551, %v1565
        %1567 = vst.msk [vmem:[#allocation4] sm:$0xff] %vm944, %v1566
        %v1568 = vmul.f32 %v1566, %v993
        %1569 = vst.msk [vmem:[#allocation5] sm:$0xff] %vm944, %v1568
        %1571 = vrot.lane.b32.xlu0 %v1546, 64
        %v1572 = vpop.permute.xlu0 %1571
        %vm1574 = vcmask 130048
        %1575 = vst.msk [vmem:[#allocation6] sm:$0xff] %vm1574, %v1572
        %1576 = vrot.lane.b32.xlu0 %v1546, 48
        %v1577 = vpop.permute.xlu0 %1576
        %1579 = vst.msk [vmem:[#allocation7] sm:$0xff] %vm1574, %v1577
        %1580 = vst.msk [vmem:[#allocation8] sm:$0xff] %vm944, 0.0
        %1581 = vst.msk [vmem:[#allocation8 + $0x8] sm:$0xff] %vm944, 0.0
        %v1582 = vld [vmem:[%s7] sm:$0xff]
        %v1583 = vld [vmem:[%s7 + $0x8] sm:$0xff]
        %v1584 = vlaneseq
        %v1585 = vand.u32 %v1584, 127
        %v1586 = vmul.u32 %v962, 16
        %vm1587 = vcmp.ge.s32.totalorder %v1585, %v1586
        %v1588 = vadd.s32 %v962, 1
        %v1589 = vmul.u32 %v1588, 16
        %vm1590 = vcmp.lt.s32.totalorder %v1585, %v1589
        %vm1591 = vmand %vm1587, %vm1590
        %v1592 = vld [vmem:[#allocation4] sm:$0xff]
        %v1593 = vld [vmem:[#allocation5] sm:$0xff]
        %v1594 = vld [vmem:[#allocation6] sm:$0xff]
        %v1595 = vld [vmem:[#allocation7] sm:$0xff]
        %v1597 = vcombine.high %v1592, %v1592
        %v1599 = vunpack.c.l.s4 1966171168
        %v1600 = vunpack.c.0.s8 %v1599
        %v1601 = vlaneseq
        %v1602 = vshrl.u32 %v1601, 7
        %v1603 = vsub.s32 %v1600, %v1602
        %v1604 = vrot.slane %v1592, %v1603
        %v1606 = vunpack.c.l.s4 1966171168
        %v1607 = vunpack.c.0.s8 %v1606
        %v1608 = vlaneseq
        %v1609 = vshrl.u32 %v1608, 7
        %v1610 = vsub.s32 %v1607, %v1609
        %v1611 = vrot.slane %v1597, %v1610
        %v1612 = vcombine.high %v1604, %v1604
        %v1613 = vcombine.high %v1611, %v1611
        %v1615 = vunpack.c.l.s4 1966171168
        %v1616 = vunpack.c.0.s8 %v1615
        %v1617 = vlaneseq
        %v1618 = vshrl.u32 %v1617, 7
        %v1619 = vsub.s32 %v1616, %v1618
        %v1620 = vrot.slane %v1604, %v1619
        %v1622 = vunpack.c.l.s4 1966171168
        %v1623 = vunpack.c.0.s8 %v1622
        %v1624 = vlaneseq
        %v1625 = vshrl.u32 %v1624, 7
        %v1626 = vsub.s32 %v1623, %v1625
        %v1627 = vrot.slane %v1611, %v1626
        %v1629 = vunpack.c.l.s4 1966171168
        %v1630 = vunpack.c.0.s8 %v1629
        %v1631 = vlaneseq
        %v1632 = vshrl.u32 %v1631, 7
        %v1633 = vsub.s32 %v1630, %v1632
        %v1634 = vrot.slane %v1612, %v1633
        %v1636 = vunpack.c.l.s4 1966171168
        %v1637 = vunpack.c.0.s8 %v1636
        %v1638 = vlaneseq
        %v1639 = vshrl.u32 %v1638, 7
        %v1640 = vsub.s32 %v1637, %v1639
        %v1641 = vrot.slane %v1613, %v1640
        %v1642 = vcombine.high %v1620, %v1620
        %v1643 = vcombine.high %v1627, %v1627
        %v1644 = vcombine.high %v1634, %v1634
        %v1645 = vcombine.high %v1641, %v1641
        %v1646 = vlaneseq
        %v1647 = vshrl.u32 %v1646, 7
        %v1648 = vsub.s32 0, %v1647
        %v1649 = vrot.slane %v1620, %v1648
        %v1650 = vlaneseq
        %v1651 = vshrl.u32 %v1650, 7
        %v1652 = vsub.s32 0, %v1651
        %v1653 = vrot.slane %v1634, %v1652
        %v1654 = vlaneseq
        %v1655 = vshrl.u32 %v1654, 7
        %v1656 = vsub.s32 0, %v1655
        %v1657 = vrot.slane %v1642, %v1656
        %v1658 = vlaneseq
        %v1659 = vshrl.u32 %v1658, 7
        %v1660 = vsub.s32 0, %v1659
        %v1661 = vrot.slane %v1644, %v1660
        %v1662 = vlaneseq
        %v1663 = vshrl.u32 %v1662, 7
        %v1664 = vsub.s32 0, %v1663
        %v1665 = vrot.slane %v1627, %v1664
        %v1666 = vlaneseq
        %v1667 = vshrl.u32 %v1666, 7
        %v1668 = vsub.s32 0, %v1667
        %v1669 = vrot.slane %v1641, %v1668
        %v1670 = vlaneseq
        %v1671 = vshrl.u32 %v1670, 7
        %v1672 = vsub.s32 0, %v1671
        %v1673 = vrot.slane %v1643, %v1672
        %v1674 = vlaneseq
        %v1675 = vshrl.u32 %v1674, 7
        %v1676 = vsub.s32 0, %v1675
        %v1677 = vrot.slane %v1645, %v1676
        %v1686 = vmul.f32 %v1649, %v1582
        %v1687 = vmul.f32 %v1649, %v1583
        %v1688 = vmul.f32 %v1653, %v1582
        %v1689 = vmul.f32 %v1653, %v1583
        %v1690 = vmul.f32 %v1657, %v1582
        %v1691 = vmul.f32 %v1657, %v1583
        %v1692 = vmul.f32 %v1661, %v1582
        %v1693 = vmul.f32 %v1661, %v1583
        %v1694 = vmul.f32 %v1665, %v1582
        %v1695 = vmul.f32 %v1665, %v1583
        %v1696 = vmul.f32 %v1669, %v1582
        %v1697 = vmul.f32 %v1669, %v1583
        %v1698 = vmul.f32 %v1673, %v1582
        %v1699 = vmul.f32 %v1673, %v1583
        %v1700 = vmul.f32 %v1677, %v1582
        %v1701 = vmul.f32 %v1677, %v1583
        %v1702 = vmul.f32 %v1686, 1.442695
        %v1703 = vpow.pop %v1702
        %v1704 = vmul.f32 %v1687, 1.442695
        %v1705 = vpow.pop %v1704
        %v1706 = vmul.f32 %v1688, 1.442695
        %v1707 = vpow.pop %v1706
        %v1708 = vmul.f32 %v1689, 1.442695
        %v1709 = vpow.pop %v1708
        %v1710 = vmul.f32 %v1690, 1.442695
        %v1711 = vpow.pop %v1710
        %v1712 = vmul.f32 %v1691, 1.442695
        %v1713 = vpow.pop %v1712
        %v1714 = vmul.f32 %v1692, 1.442695
        %v1715 = vpow.pop %v1714
        %v1716 = vmul.f32 %v1693, 1.442695
        %v1717 = vpow.pop %v1716
        %v1718 = vmul.f32 %v1694, 1.442695
        %v1719 = vpow.pop %v1718
        %v1720 = vmul.f32 %v1695, 1.442695
        %v1721 = vpow.pop %v1720
        %v1722 = vmul.f32 %v1696, 1.442695
        %v1723 = vpow.pop %v1722
        %v1724 = vmul.f32 %v1697, 1.442695
        %v1725 = vpow.pop %v1724
        %v1726 = vmul.f32 %v1698, 1.442695
        %v1727 = vpow.pop %v1726
        %v1728 = vmul.f32 %v1699, 1.442695
        %v1729 = vpow.pop %v1728
        %v1730 = vmul.f32 %v1700, 1.442695
        %v1731 = vpow.pop %v1730
        %v1732 = vmul.f32 %v1701, 1.442695
        %v1733 = vpow.pop %v1732
        %v1734 = vlaneseq
        %v1735 = vshrl.u32 %v1734, 7
        %v1736 = vsub.s32 0, %v1735
        %v1737 = vrot.slane %v1594, %v1736
        %1739 = vbcast.lane.b32.xlu0 %v1737, 256
        %v1740 = vpop.permute.xlu0 %1739
        %s1742 = sor.u32 256, 8
        %1743 = vbcast.lane.b32.xlu0 %v1737, %s1742
        %v1744 = vpop.permute.xlu0 %1743
        %v1745 = vlaneseq
        %v1746 = vshrl.u32 %v1745, 7
        %v1747 = vsub.s32 1, %v1746
        %v1748 = vrot.slane %v1594, %v1747
        %1750 = vbcast.lane.b32.xlu0 %v1748, 256
        %v1751 = vpop.permute.xlu0 %1750
        %s1753 = sor.u32 256, 8
        %1754 = vbcast.lane.b32.xlu0 %v1748, %s1753
        %v1755 = vpop.permute.xlu0 %1754
        %v1756 = vlaneseq
        %v1757 = vshrl.u32 %v1756, 7
        %v1758 = vsub.s32 2, %v1757
        %v1759 = vrot.slane %v1594, %v1758
        %1761 = vbcast.lane.b32.xlu0 %v1759, 256
        %v1762 = vpop.permute.xlu0 %1761
        %s1764 = sor.u32 256, 8
        %1765 = vbcast.lane.b32.xlu0 %v1759, %s1764
        %v1766 = vpop.permute.xlu0 %1765
        %v1767 = vlaneseq
        %v1768 = vshrl.u32 %v1767, 7
        %v1769 = vsub.s32 3, %v1768
        %v1770 = vrot.slane %v1594, %v1769
        %1772 = vbcast.lane.b32.xlu0 %v1770, 256
        %v1773 = vpop.permute.xlu0 %1772
        %s1775 = sor.u32 256, 8
        %1776 = vbcast.lane.b32.xlu0 %v1770, %s1775
        %v1777 = vpop.permute.xlu0 %1776
        %v1778 = vlaneseq
        %v1779 = vshrl.u32 %v1778, 7
        %v1780 = vsub.s32 4, %v1779
        %v1781 = vrot.slane %v1594, %v1780
        %1783 = vbcast.lane.b32.xlu0 %v1781, 256
        %v1784 = vpop.permute.xlu0 %1783
        %s1786 = sor.u32 256, 8
        %1787 = vbcast.lane.b32.xlu0 %v1781, %s1786
        %v1788 = vpop.permute.xlu0 %1787
        %v1789 = vlaneseq
        %v1790 = vshrl.u32 %v1789, 7
        %v1791 = vsub.s32 5, %v1790
        %v1792 = vrot.slane %v1594, %v1791
        %1794 = vbcast.lane.b32.xlu0 %v1792, 256
        %v1795 = vpop.permute.xlu0 %1794
        %s1797 = sor.u32 256, 8
        %1798 = vbcast.lane.b32.xlu0 %v1792, %s1797
        %v1799 = vpop.permute.xlu0 %1798
        %v1800 = vlaneseq
        %v1801 = vshrl.u32 %v1800, 7
        %v1802 = vsub.s32 6, %v1801
        %v1803 = vrot.slane %v1594, %v1802
        %1805 = vbcast.lane.b32.xlu0 %v1803, 256
        %v1806 = vpop.permute.xlu0 %1805
        %s1808 = sor.u32 256, 8
        %1809 = vbcast.lane.b32.xlu0 %v1803, %s1808
        %v1810 = vpop.permute.xlu0 %1809
        %v1811 = vlaneseq
        %v1812 = vshrl.u32 %v1811, 7
        %v1813 = vsub.s32 7, %v1812
        %v1814 = vrot.slane %v1594, %v1813
        %1816 = vbcast.lane.b32.xlu0 %v1814, 256
        %v1817 = vpop.permute.xlu0 %1816
        %s1819 = sor.u32 256, 8
        %1820 = vbcast.lane.b32.xlu0 %v1814, %s1819
        %v1821 = vpop.permute.xlu0 %1820
        %v1823 = vcombine.high %v1593, %v1593
        %v1825 = vunpack.c.l.s4 1966171168
        %v1826 = vunpack.c.0.s8 %v1825
        %v1827 = vlaneseq
        %v1828 = vshrl.u32 %v1827, 7
        %v1829 = vsub.s32 %v1826, %v1828
        %v1830 = vrot.slane %v1593, %v1829
        %v1832 = vunpack.c.l.s4 1966171168
        %v1833 = vunpack.c.0.s8 %v1832
        %v1834 = vlaneseq
        %v1835 = vshrl.u32 %v1834, 7
        %v1836 = vsub.s32 %v1833, %v1835
        %v1837 = vrot.slane %v1823, %v1836
        %v1838 = vcombine.high %v1830, %v1830
        %v1839 = vcombine.high %v1837, %v1837
        %v1841 = vunpack.c.l.s4 1966171168
        %v1842 = vunpack.c.0.s8 %v1841
        %v1843 = vlaneseq
        %v1844 = vshrl.u32 %v1843, 7
        %v1845 = vsub.s32 %v1842, %v1844
        %v1846 = vrot.slane %v1830, %v1845
        %v1848 = vunpack.c.l.s4 1966171168
        %v1849 = vunpack.c.0.s8 %v1848
        %v1850 = vlaneseq
        %v1851 = vshrl.u32 %v1850, 7
        %v1852 = vsub.s32 %v1849, %v1851
        %v1853 = vrot.slane %v1837, %v1852
        %v1855 = vunpack.c.l.s4 1966171168
        %v1856 = vunpack.c.0.s8 %v1855
        %v1857 = vlaneseq
        %v1858 = vshrl.u32 %v1857, 7
        %v1859 = vsub.s32 %v1856, %v1858
        %v1860 = vrot.slane %v1838, %v1859
        %v1862 = vunpack.c.l.s4 1966171168
        %v1863 = vunpack.c.0.s8 %v1862
        %v1864 = vlaneseq
        %v1865 = vshrl.u32 %v1864, 7
        %v1866 = vsub.s32 %v1863, %v1865
        %v1867 = vrot.slane %v1839, %v1866
        %v1868 = vcombine.high %v1846, %v1846
        %v1869 = vcombine.high %v1853, %v1853
        %v1870 = vcombine.high %v1860, %v1860
        %v1871 = vcombine.high %v1867, %v1867
        %v1872 = vlaneseq
        %v1873 = vshrl.u32 %v1872, 7
        %v1874 = vsub.s32 0, %v1873
        %v1875 = vrot.slane %v1846, %v1874
        %v1876 = vlaneseq
        %v1877 = vshrl.u32 %v1876, 7
        %v1878 = vsub.s32 0, %v1877
        %v1879 = vrot.slane %v1860, %v1878
        %v1880 = vlaneseq
        %v1881 = vshrl.u32 %v1880, 7
        %v1882 = vsub.s32 0, %v1881
        %v1883 = vrot.slane %v1868, %v1882
        %v1884 = vlaneseq
        %v1885 = vshrl.u32 %v1884, 7
        %v1886 = vsub.s32 0, %v1885
        %v1887 = vrot.slane %v1870, %v1886
        %v1888 = vlaneseq
        %v1889 = vshrl.u32 %v1888, 7
        %v1890 = vsub.s32 0, %v1889
        %v1891 = vrot.slane %v1853, %v1890
        %v1892 = vlaneseq
        %v1893 = vshrl.u32 %v1892, 7
        %v1894 = vsub.s32 0, %v1893
        %v1895 = vrot.slane %v1867, %v1894
        %v1896 = vlaneseq
        %v1897 = vshrl.u32 %v1896, 7
        %v1898 = vsub.s32 0, %v1897
        %v1899 = vrot.slane %v1869, %v1898
        %v1900 = vlaneseq
        %v1901 = vshrl.u32 %v1900, 7
        %v1902 = vsub.s32 0, %v1901
        %v1903 = vrot.slane %v1871, %v1902
        %v1912 = vmul.f32 %v1740, %v1875
        %v1913 = vmul.f32 %v1744, %v1875
        %v1914 = vmul.f32 %v1751, %v1879
        %v1915 = vmul.f32 %v1755, %v1879
        %v1916 = vmul.f32 %v1762, %v1883
        %v1917 = vmul.f32 %v1766, %v1883
        %v1918 = vmul.f32 %v1773, %v1887
        %v1919 = vmul.f32 %v1777, %v1887
        %v1920 = vmul.f32 %v1784, %v1891
        %v1921 = vmul.f32 %v1788, %v1891
        %v1922 = vmul.f32 %v1795, %v1895
        %v1923 = vmul.f32 %v1799, %v1895
        %v1924 = vmul.f32 %v1806, %v1899
        %v1925 = vmul.f32 %v1810, %v1899
        %v1926 = vmul.f32 %v1817, %v1903
        %v1927 = vmul.f32 %v1821, %v1903
        %v1928 = vld [vmem:[#allocation8] sm:$0xff]
        %v1929 = vld [vmem:[#allocation8 + $0x8] sm:$0xff]
        %v1930 = vmul.f32 %v1703, %v1928
        %v1931 = vmul.f32 %v1705, %v1929
        %v1932 = vadd.f32 %v1930, %v1912
        %v1933 = vadd.f32 %v1931, %v1913
        %1934 = vst.msk [vmem:[#allocation9] sm:$0xff] %vm944, %v1932
        %1935 = vst.msk [vmem:[#allocation9 + $0x8] sm:$0xff] %vm944, %v1933
        %v1936 = vmul.f32 %v1707, %v1932
        %v1937 = vmul.f32 %v1709, %v1933
        %v1938 = vadd.f32 %v1936, %v1914
        %v1939 = vadd.f32 %v1937, %v1915
        %1940 = vst.msk [vmem:[#allocation9 + $0x10] sm:$0xff] %vm944, %v1938
        %1941 = vst.msk [vmem:[#allocation9 + $0x18] sm:$0xff] %vm944, %v1939
        %v1942 = vmul.f32 %v1711, %v1938
        %v1943 = vmul.f32 %v1713, %v1939
        %v1944 = vadd.f32 %v1942, %v1916
        %v1945 = vadd.f32 %v1943, %v1917
        %1946 = vst.msk [vmem:[#allocation9 + $0x20] sm:$0xff] %vm944, %v1944
        %1947 = vst.msk [vmem:[#allocation9 + $0x28] sm:$0xff] %vm944, %v1945
        %v1948 = vmul.f32 %v1715, %v1944
        %v1949 = vmul.f32 %v1717, %v1945
        %v1950 = vadd.f32 %v1948, %v1918
        %v1951 = vadd.f32 %v1949, %v1919
        %1952 = vst.msk [vmem:[#allocation9 + $0x30] sm:$0xff] %vm944, %v1950
        %1953 = vst.msk [vmem:[#allocation9 + $0x38] sm:$0xff] %vm944, %v1951
        %v1954 = vmul.f32 %v1719, %v1950
        %v1955 = vmul.f32 %v1721, %v1951
        %v1956 = vadd.f32 %v1954, %v1920
        %v1957 = vadd.f32 %v1955, %v1921
        %1958 = vst.msk [vmem:[#allocation9 + $0x40] sm:$0xff] %vm944, %v1956
        %1959 = vst.msk [vmem:[#allocation9 + $0x48] sm:$0xff] %vm944, %v1957
        %v1960 = vmul.f32 %v1723, %v1956
        %v1961 = vmul.f32 %v1725, %v1957
        %v1962 = vadd.f32 %v1960, %v1922
        %v1963 = vadd.f32 %v1961, %v1923
        %1964 = vst.msk [vmem:[#allocation9 + $0x50] sm:$0xff] %vm944, %v1962
        %1965 = vst.msk [vmem:[#allocation9 + $0x58] sm:$0xff] %vm944, %v1963
        %v1966 = vmul.f32 %v1727, %v1962
        %v1967 = vmul.f32 %v1729, %v1963
        %v1968 = vadd.f32 %v1966, %v1924
        %v1969 = vadd.f32 %v1967, %v1925
        %1970 = vst.msk [vmem:[#allocation9 + $0x60] sm:$0xff] %vm944, %v1968
        %1971 = vst.msk [vmem:[#allocation9 + $0x68] sm:$0xff] %vm944, %v1969
        %v1972 = vmul.f32 %v1731, %v1968
        %v1973 = vmul.f32 %v1733, %v1969
        %v1974 = vadd.f32 %v1972, %v1926
        %v1975 = vadd.f32 %v1973, %v1927
        %1976 = vst.msk [vmem:[#allocation9 + $0x70] sm:$0xff] %vm944, %v1974
        %1977 = vst.msk [vmem:[#allocation9 + $0x78] sm:$0xff] %vm944, %v1975
        %1978 = vst.msk [vmem:[#allocation8] sm:$0xff] %vm944, %v1974
        %1979 = vst.msk [vmem:[#allocation8 + $0x8] sm:$0xff] %vm944, %v1975
        %1981 = vrot.lane.b32.xlu0 %v1595, 16
        %v1982 = vpop.permute.xlu0 %1981
        %1984 = vrot.lane.b32.xlu0 %v1595, 32
        %v1985 = vpop.permute.xlu0 %1984
        %1987 = vrot.lane.b32.xlu0 %v1595, 48
        %v1988 = vpop.permute.xlu0 %1987
        %1990 = vrot.lane.b32.xlu0 %v1595, 64
        %v1991 = vpop.permute.xlu0 %1990
        %1993 = vrot.lane.b32.xlu0 %v1595, 80
        %v1994 = vpop.permute.xlu0 %1993
        %1996 = vrot.lane.b32.xlu0 %v1595, 96
        %v1997 = vpop.permute.xlu0 %1996
        %1999 = vrot.lane.b32.xlu0 %v1595, 112
        %v2000 = vpop.permute.xlu0 %1999
        %v2002 = vsel %vm1574, %v1595, %v1982
        %v2003 = vsel %vm448, %v2002, %v1985
        %vm2004 = vcmask 392192
        %v2005 = vsel %vm2004, %v2003, %v1988
        %v2006 = vsel %vm944, %v2005, %v1991
        %vm2007 = vcmask 654336
        %v2008 = vsel %vm2007, %v2006, %v1994
        %vm2009 = vcmask 785408
        %v2010 = vsel %vm2009, %v2008, %v1997
        %vm2011 = vcmask 916480
        %v2012 = vsel %vm2011, %v2010, %v2000
        %v2013 = vsel %vm1591, %v2012, 0.0
        %v2014 = vld [vmem:[#allocation9] sm:$0xff]
        %v2015 = vld [vmem:[#allocation9 + $0x8] sm:$0xff]
        %v2016 = vld [vmem:[#allocation9 + $0x10] sm:$0xff]
        %v2017 = vld [vmem:[#allocation9 + $0x18] sm:$0xff]
        %v2018 = vld [vmem:[#allocation9 + $0x20] sm:$0xff]
        %v2019 = vld [vmem:[#allocation9 + $0x28] sm:$0xff]
        %v2020 = vld [vmem:[#allocation9 + $0x30] sm:$0xff]
        %v2021 = vld [vmem:[#allocation9 + $0x38] sm:$0xff]
        %v2022 = vld [vmem:[#allocation9 + $0x40] sm:$0xff]
        %v2023 = vld [vmem:[#allocation9 + $0x48] sm:$0xff]
        %v2024 = vld [vmem:[#allocation9 + $0x50] sm:$0xff]
        %v2025 = vld [vmem:[#allocation9 + $0x58] sm:$0xff]
        %v2026 = vld [vmem:[#allocation9 + $0x60] sm:$0xff]
        %v2027 = vld [vmem:[#allocation9 + $0x68] sm:$0xff]
        %v2028 = vld [vmem:[#allocation9 + $0x70] sm:$0xff]
        %v2029 = vld [vmem:[#allocation9 + $0x78] sm:$0xff]
        %2030 = vmatprep.subr.mxu0 0.0
        %v2031 = vand.u32 %v2014, 4294901760
        %2032 = vmatpush1.msra.mxu0 %v2031
        %2033 = vmatprep.subr.mxu0 0.0
        %v2034 = vand.u32 %v2015, 4294901760
        %2035 = vmatpush1.msra.mxu0 %v2034
        %2036 = vmatprep.subr.mxu0 0.0
        %v2037 = vand.u32 %v2016, 4294901760
        %2038 = vmatpush1.msra.mxu0 %v2037
        %2039 = vmatprep.subr.mxu0 0.0
        %v2040 = vand.u32 %v2017, 4294901760
        %2041 = vmatpush1.msra.mxu0 %v2040
        %2042 = vmatprep.subr.mxu0 0.0
        %v2043 = vand.u32 %v2018, 4294901760
        %2044 = vmatpush1.msra.mxu0 %v2043
        %2045 = vmatprep.subr.mxu0 0.0
        %v2046 = vand.u32 %v2019, 4294901760
        %2047 = vmatpush1.msra.mxu0 %v2046
        %2048 = vmatprep.subr.mxu0 0.0
        %v2049 = vand.u32 %v2020, 4294901760
        %2050 = vmatpush1.msra.mxu0 %v2049
        %2051 = vmatprep.subr.mxu0 0.0
        %v2052 = vand.u32 %v2021, 4294901760
        %2053 = vmatpush1.msra.mxu0 %v2052
        %2054 = vmatprep.subr.mxu0 0.0
        %v2055 = vand.u32 %v2022, 4294901760
        %2056 = vmatpush1.msra.mxu0 %v2055
        %2057 = vmatprep.subr.mxu0 0.0
        %v2058 = vand.u32 %v2023, 4294901760
        %2059 = vmatpush1.msra.mxu0 %v2058
        %2060 = vmatprep.subr.mxu0 0.0
        %v2061 = vand.u32 %v2024, 4294901760
        %2062 = vmatpush1.msra.mxu0 %v2061
        %2063 = vmatprep.subr.mxu0 0.0
        %v2064 = vand.u32 %v2025, 4294901760
        %2065 = vmatpush1.msra.mxu0 %v2064
        %2066 = vmatprep.subr.mxu0 0.0
        %v2067 = vand.u32 %v2026, 4294901760
        %2068 = vmatpush1.msra.mxu0 %v2067
        %2069 = vmatprep.subr.mxu0 0.0
        %v2070 = vand.u32 %v2027, 4294901760
        %2071 = vmatpush1.msra.mxu0 %v2070
        %2072 = vmatprep.subr.mxu0 0.0
        %v2073 = vand.u32 %v2028, 4294901760
        %2074 = vmatpush1.msra.mxu0 %v2073
        %2075 = vmatprep.subr.mxu0 0.0
        %v2076 = vand.u32 %v2029, 4294901760
        %2077 = vmatpush1.msra.mxu0 %v2076
        %2078 = vmatprep.subr.mxu0 0.0
        %2079 = vmatpush1.msra.mxu0 0.0
        %2080 = vmatprep.subr.mxu0 0.0
        %2081 = vmatpush1.msra.mxu0 0.0
        %2082 = vmatprep.subr.mxu0 0.0
        %2083 = vmatpush1.msra.mxu0 0.0
        %2084 = vmatprep.subr.mxu0 0.0
        %2085 = vmatpush1.msra.mxu0 0.0
        %2086 = vmatprep.subr.mxu0 0.0
        %2087 = vmatpush1.msra.mxu0 0.0
        %2088 = vmatprep.subr.mxu0 0.0
        %2089 = vmatpush1.msra.mxu0 0.0
        %2090 = vmatprep.subr.mxu0 0.0
        %2091 = vmatpush1.msra.mxu0 0.0
        %2092 = vmatprep.subr.mxu0 0.0
        %2093 = vmatpush1.msra.mxu0 0.0
        %2094 = vmatprep.subr.mxu0 0.0
        %2095 = vmatpush1.msra.mxu0 0.0
        %2096 = vmatprep.subr.mxu0 0.0
        %2097 = vmatpush1.msra.mxu0 0.0
        %2098 = vmatprep.subr.mxu0 0.0
        %2099 = vmatpush1.msra.mxu0 0.0
        %2100 = vmatprep.subr.mxu0 0.0
        %2101 = vmatpush1.msra.mxu0 0.0
        %2102 = vmatprep.subr.mxu0 0.0
        %2103 = vmatpush1.msra.mxu0 0.0
        %2104 = vmatprep.subr.mxu0 0.0
        %2105 = vmatpush1.msra.mxu0 0.0
        %2106 = vmatprep.subr.mxu0 0.0
        %2107 = vmatpush1.msra.mxu0 0.0
        %2108 = vmatprep.subr.mxu0 0.0
        %2109 = vmatpush1.msra.mxu0 0.0
        %2110 = vmatprep.mubr.f32.mxu0 0.0
        %v2111 = vand.u32 %v2013, 4294901760
        %v2112 = vsub.f32 %v2013, %v2111
        %v2113 = vand.u32 %v2112, 4294901760
        %v2114 = vsub.f32 %v2112, %v2113
        %v2115 = vand.u32 %v2114, 4294901760
        %2116 = vmatmul.mubr.f32.gmra.mrb[0].mxu0 %v2115
        %v2117 = vpop.f32.mrb[0].mxu0
        %v2118 = vadd.f32 0.0, %v2117
        %v2119 = vpop.f32.mrb[0].mxu0
        %2120 = vdwg.mxu0
        %2121 = vmatprep.subr.mxu0 0.0
        %v2122 = vand.u32 %v2014, 4294901760
        %v2123 = vsub.f32 %v2014, %v2122
        %v2124 = vand.u32 %v2123, 4294901760
        %v2125 = vsub.f32 %v2123, %v2124
        %v2126 = vand.u32 %v2125, 4294901760
        %2127 = vmatpush1.msra.mxu0 %v2126
        %2128 = vmatprep.subr.mxu0 0.0
        %v2129 = vand.u32 %v2015, 4294901760
        %v2130 = vsub.f32 %v2015, %v2129
        %v2131 = vand.u32 %v2130, 4294901760
        %v2132 = vsub.f32 %v2130, %v2131
        %v2133 = vand.u32 %v2132, 4294901760
        %2134 = vmatpush1.msra.mxu0 %v2133
        %2135 = vmatprep.subr.mxu0 0.0
        %v2136 = vand.u32 %v2016, 4294901760
        %v2137 = vsub.f32 %v2016, %v2136
        %v2138 = vand.u32 %v2137, 4294901760
        %v2139 = vsub.f32 %v2137, %v2138
        %v2140 = vand.u32 %v2139, 4294901760
        %2141 = vmatpush1.msra.mxu0 %v2140
        %2142 = vmatprep.subr.mxu0 0.0
        %v2143 = vand.u32 %v2017, 4294901760
        %v2144 = vsub.f32 %v2017, %v2143
        %v2145 = vand.u32 %v2144, 4294901760
        %v2146 = vsub.f32 %v2144, %v2145
        %v2147 = vand.u32 %v2146, 4294901760
        %2148 = vmatpush1.msra.mxu0 %v2147
        %2149 = vmatprep.subr.mxu0 0.0
        %v2150 = vand.u32 %v2018, 4294901760
        %v2151 = vsub.f32 %v2018, %v2150
        %v2152 = vand.u32 %v2151, 4294901760
        %v2153 = vsub.f32 %v2151, %v2152
        %v2154 = vand.u32 %v2153, 4294901760
        %2155 = vmatpush1.msra.mxu0 %v2154
        %2156 = vmatprep.subr.mxu0 0.0
        %v2157 = vand.u32 %v2019, 4294901760
        %v2158 = vsub.f32 %v2019, %v2157
        %v2159 = vand.u32 %v2158, 4294901760
        %v2160 = vsub.f32 %v2158, %v2159
        %v2161 = vand.u32 %v2160, 4294901760
        %2162 = vmatpush1.msra.mxu0 %v2161
        %2163 = vmatprep.subr.mxu0 0.0
        %v2164 = vand.u32 %v2020, 4294901760
        %v2165 = vsub.f32 %v2020, %v2164
        %v2166 = vand.u32 %v2165, 4294901760
        %v2167 = vsub.f32 %v2165, %v2166
        %v2168 = vand.u32 %v2167, 4294901760
        %2169 = vmatpush1.msra.mxu0 %v2168
        %2170 = vmatprep.subr.mxu0 0.0
        %v2171 = vand.u32 %v2021, 4294901760
        %v2172 = vsub.f32 %v2021, %v2171
        %v2173 = vand.u32 %v2172, 4294901760
        %v2174 = vsub.f32 %v2172, %v2173
        %v2175 = vand.u32 %v2174, 4294901760
        %2176 = vmatpush1.msra.mxu0 %v2175
        %2177 = vmatprep.subr.mxu0 0.0
        %v2178 = vand.u32 %v2022, 4294901760
        %v2179 = vsub.f32 %v2022, %v2178
        %v2180 = vand.u32 %v2179, 4294901760
        %v2181 = vsub.f32 %v2179, %v2180
        %v2182 = vand.u32 %v2181, 4294901760
        %2183 = vmatpush1.msra.mxu0 %v2182
        %2184 = vmatprep.subr.mxu0 0.0
        %v2185 = vand.u32 %v2023, 4294901760
        %v2186 = vsub.f32 %v2023, %v2185
        %v2187 = vand.u32 %v2186, 4294901760
        %v2188 = vsub.f32 %v2186, %v2187
        %v2189 = vand.u32 %v2188, 4294901760
        %2190 = vmatpush1.msra.mxu0 %v2189
        %2191 = vmatprep.subr.mxu0 0.0
        %v2192 = vand.u32 %v2024, 4294901760
        %v2193 = vsub.f32 %v2024, %v2192
        %v2194 = vand.u32 %v2193, 4294901760
        %v2195 = vsub.f32 %v2193, %v2194
        %v2196 = vand.u32 %v2195, 4294901760
        %2197 = vmatpush1.msra.mxu0 %v2196
        %2198 = vmatprep.subr.mxu0 0.0
        %v2199 = vand.u32 %v2025, 4294901760
        %v2200 = vsub.f32 %v2025, %v2199
        %v2201 = vand.u32 %v2200, 4294901760
        %v2202 = vsub.f32 %v2200, %v2201
        %v2203 = vand.u32 %v2202, 4294901760
        %2204 = vmatpush1.msra.mxu0 %v2203
        %2205 = vmatprep.subr.mxu0 0.0
        %v2206 = vand.u32 %v2026, 4294901760
        %v2207 = vsub.f32 %v2026, %v2206
        %v2208 = vand.u32 %v2207, 4294901760
        %v2209 = vsub.f32 %v2207, %v2208
        %v2210 = vand.u32 %v2209, 4294901760
        %2211 = vmatpush1.msra.mxu0 %v2210
        %2212 = vmatprep.subr.mxu0 0.0
        %v2213 = vand.u32 %v2027, 4294901760
        %v2214 = vsub.f32 %v2027, %v2213
        %v2215 = vand.u32 %v2214, 4294901760
        %v2216 = vsub.f32 %v2214, %v2215
        %v2217 = vand.u32 %v2216, 4294901760
        %2218 = vmatpush1.msra.mxu0 %v2217
        %2219 = vmatprep.subr.mxu0 0.0
        %v2220 = vand.u32 %v2028, 4294901760
        %v2221 = vsub.f32 %v2028, %v2220
        %v2222 = vand.u32 %v2221, 4294901760
        %v2223 = vsub.f32 %v2221, %v2222
        %v2224 = vand.u32 %v2223, 4294901760
        %2225 = vmatpush1.msra.mxu0 %v2224
        %2226 = vmatprep.subr.mxu0 0.0
        %v2227 = vand.u32 %v2029, 4294901760
        %v2228 = vsub.f32 %v2029, %v2227
        %v2229 = vand.u32 %v2228, 4294901760
        %v2230 = vsub.f32 %v2228, %v2229
        %v2231 = vand.u32 %v2230, 4294901760
        %2232 = vmatpush1.msra.mxu0 %v2231
        %2233 = vmatprep.subr.mxu0 0.0
        %2234 = vmatpush1.msra.mxu0 0.0
        %2235 = vmatprep.subr.mxu0 0.0
        %2236 = vmatpush1.msra.mxu0 0.0
        %2237 = vmatprep.subr.mxu0 0.0
        %2238 = vmatpush1.msra.mxu0 0.0
        %2239 = vmatprep.subr.mxu0 0.0
        %2240 = vmatpush1.msra.mxu0 0.0
        %2241 = vmatprep.subr.mxu0 0.0
        %2242 = vmatpush1.msra.mxu0 0.0
        %2243 = vmatprep.subr.mxu0 0.0
        %2244 = vmatpush1.msra.mxu0 0.0
        %2245 = vmatprep.subr.mxu0 0.0
        %2246 = vmatpush1.msra.mxu0 0.0
        %2247 = vmatprep.subr.mxu0 0.0
        %2248 = vmatpush1.msra.mxu0 0.0
        %2249 = vmatprep.subr.mxu0 0.0
        %2250 = vmatpush1.msra.mxu0 0.0
        %2251 = vmatprep.subr.mxu0 0.0
        %2252 = vmatpush1.msra.mxu0 0.0
        %2253 = vmatprep.subr.mxu0 0.0
        %2254 = vmatpush1.msra.mxu0 0.0
        %2255 = vmatprep.subr.mxu0 0.0
        %2256 = vmatpush1.msra.mxu0 0.0
        %2257 = vmatprep.subr.mxu0 0.0
        %2258 = vmatpush1.msra.mxu0 0.0
        %2259 = vmatprep.subr.mxu0 0.0
        %2260 = vmatpush1.msra.mxu0 0.0
        %2261 = vmatprep.subr.mxu0 0.0
        %2262 = vmatpush1.msra.mxu0 0.0
        %2263 = vmatprep.subr.mxu0 0.0
        %2264 = vmatpush1.msra.mxu0 0.0
        %2265 = vmatprep.mubr.f32.mxu0 0.0
        %v2266 = vand.u32 %v2013, 4294901760
        %2267 = vmatmul.mubr.f32.gmra.mrb[0].mxu0 %v2266
        %v2268 = vpop.f32.mrb[0].mxu0
        %v2269 = vadd.f32 %v2118, %v2268
        %v2270 = vpop.f32.mrb[0].mxu0
        %2271 = vdwg.mxu0
        %2272 = vmatprep.subr.mxu0 0.0
        %v2273 = vand.u32 %v2014, 4294901760
        %v2274 = vsub.f32 %v2014, %v2273
        %2275 = vmatpush1.msra.mxu0 %v2274
        %2276 = vmatprep.subr.mxu0 0.0
        %v2277 = vand.u32 %v2015, 4294901760
        %v2278 = vsub.f32 %v2015, %v2277
        %2279 = vmatpush1.msra.mxu0 %v2278
        %2280 = vmatprep.subr.mxu0 0.0
        %v2281 = vand.u32 %v2016, 4294901760
        %v2282 = vsub.f32 %v2016, %v2281
        %2283 = vmatpush1.msra.mxu0 %v2282
        %2284 = vmatprep.subr.mxu0 0.0
        %v2285 = vand.u32 %v2017, 4294901760
        %v2286 = vsub.f32 %v2017, %v2285
        %2287 = vmatpush1.msra.mxu0 %v2286
        %2288 = vmatprep.subr.mxu0 0.0
        %v2289 = vand.u32 %v2018, 4294901760
        %v2290 = vsub.f32 %v2018, %v2289
        %2291 = vmatpush1.msra.mxu0 %v2290
        %2292 = vmatprep.subr.mxu0 0.0
        %v2293 = vand.u32 %v2019, 4294901760
        %v2294 = vsub.f32 %v2019, %v2293
        %2295 = vmatpush1.msra.mxu0 %v2294
        %2296 = vmatprep.subr.mxu0 0.0
        %v2297 = vand.u32 %v2020, 4294901760
        %v2298 = vsub.f32 %v2020, %v2297
        %2299 = vmatpush1.msra.mxu0 %v2298
        %2300 = vmatprep.subr.mxu0 0.0
        %v2301 = vand.u32 %v2021, 4294901760
        %v2302 = vsub.f32 %v2021, %v2301
        %2303 = vmatpush1.msra.mxu0 %v2302
        %2304 = vmatprep.subr.mxu0 0.0
        %v2305 = vand.u32 %v2022, 4294901760
        %v2306 = vsub.f32 %v2022, %v2305
        %2307 = vmatpush1.msra.mxu0 %v2306
        %2308 = vmatprep.subr.mxu0 0.0
        %v2309 = vand.u32 %v2023, 4294901760
        %v2310 = vsub.f32 %v2023, %v2309
        %2311 = vmatpush1.msra.mxu0 %v2310
        %2312 = vmatprep.subr.mxu0 0.0
        %v2313 = vand.u32 %v2024, 4294901760
        %v2314 = vsub.f32 %v2024, %v2313
        %2315 = vmatpush1.msra.mxu0 %v2314
        %2316 = vmatprep.subr.mxu0 0.0
        %v2317 = vand.u32 %v2025, 4294901760
        %v2318 = vsub.f32 %v2025, %v2317
        %2319 = vmatpush1.msra.mxu0 %v2318
        %2320 = vmatprep.subr.mxu0 0.0
        %v2321 = vand.u32 %v2026, 4294901760
        %v2322 = vsub.f32 %v2026, %v2321
        %2323 = vmatpush1.msra.mxu0 %v2322
        %2324 = vmatprep.subr.mxu0 0.0
        %v2325 = vand.u32 %v2027, 4294901760
        %v2326 = vsub.f32 %v2027, %v2325
        %2327 = vmatpush1.msra.mxu0 %v2326
        %2328 = vmatprep.subr.mxu0 0.0
        %v2329 = vand.u32 %v2028, 4294901760
        %v2330 = vsub.f32 %v2028, %v2329
        %2331 = vmatpush1.msra.mxu0 %v2330
        %2332 = vmatprep.subr.mxu0 0.0
        %v2333 = vand.u32 %v2029, 4294901760
        %v2334 = vsub.f32 %v2029, %v2333
        %2335 = vmatpush1.msra.mxu0 %v2334
        %2336 = vmatprep.subr.mxu0 0.0
        %2337 = vmatpush1.msra.mxu0 0.0
        %2338 = vmatprep.subr.mxu0 0.0
        %2339 = vmatpush1.msra.mxu0 0.0
        %2340 = vmatprep.subr.mxu0 0.0
        %2341 = vmatpush1.msra.mxu0 0.0
        %2342 = vmatprep.subr.mxu0 0.0
        %2343 = vmatpush1.msra.mxu0 0.0
        %2344 = vmatprep.subr.mxu0 0.0
        %2345 = vmatpush1.msra.mxu0 0.0
        %2346 = vmatprep.subr.mxu0 0.0
        %2347 = vmatpush1.msra.mxu0 0.0
        %2348 = vmatprep.subr.mxu0 0.0
        %2349 = vmatpush1.msra.mxu0 0.0
        %2350 = vmatprep.subr.mxu0 0.0
        %2351 = vmatpush1.msra.mxu0 0.0
        %2352 = vmatprep.subr.mxu0 0.0
        %2353 = vmatpush1.msra.mxu0 0.0
        %2354 = vmatprep.subr.mxu0 0.0
        %2355 = vmatpush1.msra.mxu0 0.0
        %2356 = vmatprep.subr.mxu0 0.0
        %2357 = vmatpush1.msra.mxu0 0.0
        %2358 = vmatprep.subr.mxu0 0.0
        %2359 = vmatpush1.msra.mxu0 0.0
        %2360 = vmatprep.subr.mxu0 0.0
        %2361 = vmatpush1.msra.mxu0 0.0
        %2362 = vmatprep.subr.mxu0 0.0
        %2363 = vmatpush1.msra.mxu0 0.0
        %2364 = vmatprep.subr.mxu0 0.0
        %2365 = vmatpush1.msra.mxu0 0.0
        %2366 = vmatprep.subr.mxu0 0.0
        %2367 = vmatpush1.msra.mxu0 0.0
        %2368 = vmatprep.mubr.f32.mxu0 0.0
        %v2369 = vand.u32 %v2013, 4294901760
        %v2370 = vsub.f32 %v2013, %v2369
        %2371 = vmatmul.mubr.f32.gmra.mrb[0].mxu0 %v2370
        %v2372 = vpop.f32.mrb[0].mxu0
        %v2373 = vadd.f32 %v2269, %v2372
        %v2374 = vpop.f32.mrb[0].mxu0
        %2375 = vdwg.mxu0
        %2376 = vmatprep.subr.mxu0 0.0
        %v2377 = vand.u32 %v2014, 4294901760
        %2378 = vmatpush1.msra.mxu0 %v2377
        %2379 = vmatprep.subr.mxu0 0.0
        %v2380 = vand.u32 %v2015, 4294901760
        %2381 = vmatpush1.msra.mxu0 %v2380
        %2382 = vmatprep.subr.mxu0 0.0
        %v2383 = vand.u32 %v2016, 4294901760
        %2384 = vmatpush1.msra.mxu0 %v2383
        %2385 = vmatprep.subr.mxu0 0.0
        %v2386 = vand.u32 %v2017, 4294901760
        %2387 = vmatpush1.msra.mxu0 %v2386
        %2388 = vmatprep.subr.mxu0 0.0
        %v2389 = vand.u32 %v2018, 4294901760
        %2390 = vmatpush1.msra.mxu0 %v2389
        %2391 = vmatprep.subr.mxu0 0.0
        %v2392 = vand.u32 %v2019, 4294901760
        %2393 = vmatpush1.msra.mxu0 %v2392
        %2394 = vmatprep.subr.mxu0 0.0
        %v2395 = vand.u32 %v2020, 4294901760
        %2396 = vmatpush1.msra.mxu0 %v2395
        %2397 = vmatprep.subr.mxu0 0.0
        %v2398 = vand.u32 %v2021, 4294901760
        %2399 = vmatpush1.msra.mxu0 %v2398
        %2400 = vmatprep.subr.mxu0 0.0
        %v2401 = vand.u32 %v2022, 4294901760
        %2402 = vmatpush1.msra.mxu0 %v2401
        %2403 = vmatprep.subr.mxu0 0.0
        %v2404 = vand.u32 %v2023, 4294901760
        %2405 = vmatpush1.msra.mxu0 %v2404
        %2406 = vmatprep.subr.mxu0 0.0
        %v2407 = vand.u32 %v2024, 4294901760
        %2408 = vmatpush1.msra.mxu0 %v2407
        %2409 = vmatprep.subr.mxu0 0.0
        %v2410 = vand.u32 %v2025, 4294901760
        %2411 = vmatpush1.msra.mxu0 %v2410
        %2412 = vmatprep.subr.mxu0 0.0
        %v2413 = vand.u32 %v2026, 4294901760
        %2414 = vmatpush1.msra.mxu0 %v2413
        %2415 = vmatprep.subr.mxu0 0.0
        %v2416 = vand.u32 %v2027, 4294901760
        %2417 = vmatpush1.msra.mxu0 %v2416
        %2418 = vmatprep.subr.mxu0 0.0
        %v2419 = vand.u32 %v2028, 4294901760
        %2420 = vmatpush1.msra.mxu0 %v2419
        %2421 = vmatprep.subr.mxu0 0.0
        %v2422 = vand.u32 %v2029, 4294901760
        %2423 = vmatpush1.msra.mxu0 %v2422
        %2424 = vmatprep.subr.mxu0 0.0
        %2425 = vmatpush1.msra.mxu0 0.0
        %2426 = vmatprep.subr.mxu0 0.0
        %2427 = vmatpush1.msra.mxu0 0.0
        %2428 = vmatprep.subr.mxu0 0.0
        %2429 = vmatpush1.msra.mxu0 0.0
        %2430 = vmatprep.subr.mxu0 0.0
        %2431 = vmatpush1.msra.mxu0 0.0
        %2432 = vmatprep.subr.mxu0 0.0
        %2433 = vmatpush1.msra.mxu0 0.0
        %2434 = vmatprep.subr.mxu0 0.0
        %2435 = vmatpush1.msra.mxu0 0.0
        %2436 = vmatprep.subr.mxu0 0.0
        %2437 = vmatpush1.msra.mxu0 0.0
        %2438 = vmatprep.subr.mxu0 0.0
        %2439 = vmatpush1.msra.mxu0 0.0
        %2440 = vmatprep.subr.mxu0 0.0
        %2441 = vmatpush1.msra.mxu0 0.0
        %2442 = vmatprep.subr.mxu0 0.0
        %2443 = vmatpush1.msra.mxu0 0.0
        %2444 = vmatprep.subr.mxu0 0.0
        %2445 = vmatpush1.msra.mxu0 0.0
        %2446 = vmatprep.subr.mxu0 0.0
        %2447 = vmatpush1.msra.mxu0 0.0
        %2448 = vmatprep.subr.mxu0 0.0
        %2449 = vmatpush1.msra.mxu0 0.0
        %2450 = vmatprep.subr.mxu0 0.0
        %2451 = vmatpush1.msra.mxu0 0.0
        %2452 = vmatprep.subr.mxu0 0.0
        %2453 = vmatpush1.msra.mxu0 0.0
        %2454 = vmatprep.subr.mxu0 0.0
        %2455 = vmatpush1.msra.mxu0 0.0
        %2456 = vmatprep.mubr.f32.mxu0 0.0
        %v2457 = vand.u32 %v2013, 4294901760
        %v2458 = vsub.f32 %v2013, %v2457
        %v2459 = vand.u32 %v2458, 4294901760
        %2460 = vmatmul.mubr.f32.gmra.mrb[0].mxu0 %v2459
        %v2461 = vpop.f32.mrb[0].mxu0
        %v2462 = vadd.f32 %v2373, %v2461
        %v2463 = vpop.f32.mrb[0].mxu0
        %2464 = vdwg.mxu0
        %2465 = vmatprep.subr.mxu0 0.0
        %v2466 = vand.u32 %v2014, 4294901760
        %v2467 = vsub.f32 %v2014, %v2466
        %v2468 = vand.u32 %v2467, 4294901760
        %2469 = vmatpush1.msra.mxu0 %v2468
        %2470 = vmatprep.subr.mxu0 0.0
        %v2471 = vand.u32 %v2015, 4294901760
        %v2472 = vsub.f32 %v2015, %v2471
        %v2473 = vand.u32 %v2472, 4294901760
        %2474 = vmatpush1.msra.mxu0 %v2473
        %2475 = vmatprep.subr.mxu0 0.0
        %v2476 = vand.u32 %v2016, 4294901760
        %v2477 = vsub.f32 %v2016, %v2476
        %v2478 = vand.u32 %v2477, 4294901760
        %2479 = vmatpush1.msra.mxu0 %v2478
        %2480 = vmatprep.subr.mxu0 0.0
        %v2481 = vand.u32 %v2017, 4294901760
        %v2482 = vsub.f32 %v2017, %v2481
        %v2483 = vand.u32 %v2482, 4294901760
        %2484 = vmatpush1.msra.mxu0 %v2483
        %2485 = vmatprep.subr.mxu0 0.0
        %v2486 = vand.u32 %v2018, 4294901760
        %v2487 = vsub.f32 %v2018, %v2486
        %v2488 = vand.u32 %v2487, 4294901760
        %2489 = vmatpush1.msra.mxu0 %v2488
        %2490 = vmatprep.subr.mxu0 0.0
        %v2491 = vand.u32 %v2019, 4294901760
        %v2492 = vsub.f32 %v2019, %v2491
        %v2493 = vand.u32 %v2492, 4294901760
        %2494 = vmatpush1.msra.mxu0 %v2493
        %2495 = vmatprep.subr.mxu0 0.0
        %v2496 = vand.u32 %v2020, 4294901760
        %v2497 = vsub.f32 %v2020, %v2496
        %v2498 = vand.u32 %v2497, 4294901760
        %2499 = vmatpush1.msra.mxu0 %v2498
        %2500 = vmatprep.subr.mxu0 0.0
        %v2501 = vand.u32 %v2021, 4294901760
        %v2502 = vsub.f32 %v2021, %v2501
        %v2503 = vand.u32 %v2502, 4294901760
        %2504 = vmatpush1.msra.mxu0 %v2503
        %2505 = vmatprep.subr.mxu0 0.0
        %v2506 = vand.u32 %v2022, 4294901760
        %v2507 = vsub.f32 %v2022, %v2506
        %v2508 = vand.u32 %v2507, 4294901760
        %2509 = vmatpush1.msra.mxu0 %v2508
        %2510 = vmatprep.subr.mxu0 0.0
        %v2511 = vand.u32 %v2023, 4294901760
        %v2512 = vsub.f32 %v2023, %v2511
        %v2513 = vand.u32 %v2512, 4294901760
        %2514 = vmatpush1.msra.mxu0 %v2513
        %2515 = vmatprep.subr.mxu0 0.0
        %v2516 = vand.u32 %v2024, 4294901760
        %v2517 = vsub.f32 %v2024, %v2516
        %v2518 = vand.u32 %v2517, 4294901760
        %2519 = vmatpush1.msra.mxu0 %v2518
        %2520 = vmatprep.subr.mxu0 0.0
        %v2521 = vand.u32 %v2025, 4294901760
        %v2522 = vsub.f32 %v2025, %v2521
        %v2523 = vand.u32 %v2522, 4294901760
        %2524 = vmatpush1.msra.mxu0 %v2523
        %2525 = vmatprep.subr.mxu0 0.0
        %v2526 = vand.u32 %v2026, 4294901760
        %v2527 = vsub.f32 %v2026, %v2526
        %v2528 = vand.u32 %v2527, 4294901760
        %2529 = vmatpush1.msra.mxu0 %v2528
        %2530 = vmatprep.subr.mxu0 0.0
        %v2531 = vand.u32 %v2027, 4294901760
        %v2532 = vsub.f32 %v2027, %v2531
        %v2533 = vand.u32 %v2532, 4294901760
        %2534 = vmatpush1.msra.mxu0 %v2533
        %2535 = vmatprep.subr.mxu0 0.0
        %v2536 = vand.u32 %v2028, 4294901760
        %v2537 = vsub.f32 %v2028, %v2536
        %v2538 = vand.u32 %v2537, 4294901760
        %2539 = vmatpush1.msra.mxu0 %v2538
        %2540 = vmatprep.subr.mxu0 0.0
        %v2541 = vand.u32 %v2029, 4294901760
        %v2542 = vsub.f32 %v2029, %v2541
        %v2543 = vand.u32 %v2542, 4294901760
        %2544 = vmatpush1.msra.mxu0 %v2543
        %2545 = vmatprep.subr.mxu0 0.0
        %2546 = vmatpush1.msra.mxu0 0.0
        %2547 = vmatprep.subr.mxu0 0.0
        %2548 = vmatpush1.msra.mxu0 0.0
        %2549 = vmatprep.subr.mxu0 0.0
        %2550 = vmatpush1.msra.mxu0 0.0
        %2551 = vmatprep.subr.mxu0 0.0
        %2552 = vmatpush1.msra.mxu0 0.0
        %2553 = vmatprep.subr.mxu0 0.0
        %2554 = vmatpush1.msra.mxu0 0.0
        %2555 = vmatprep.subr.mxu0 0.0
        %2556 = vmatpush1.msra.mxu0 0.0
        %2557 = vmatprep.subr.mxu0 0.0
        %2558 = vmatpush1.msra.mxu0 0.0
        %2559 = vmatprep.subr.mxu0 0.0
        %2560 = vmatpush1.msra.mxu0 0.0
        %2561 = vmatprep.subr.mxu0 0.0
        %2562 = vmatpush1.msra.mxu0 0.0
        %2563 = vmatprep.subr.mxu0 0.0
        %2564 = vmatpush1.msra.mxu0 0.0
        %2565 = vmatprep.subr.mxu0 0.0
        %2566 = vmatpush1.msra.mxu0 0.0
        %2567 = vmatprep.subr.mxu0 0.0
        %2568 = vmatpush1.msra.mxu0 0.0
        %2569 = vmatprep.subr.mxu0 0.0
        %2570 = vmatpush1.msra.mxu0 0.0
        %2571 = vmatprep.subr.mxu0 0.0
        %2572 = vmatpush1.msra.mxu0 0.0
        %2573 = vmatprep.subr.mxu0 0.0
        %2574 = vmatpush1.msra.mxu0 0.0
        %2575 = vmatprep.subr.mxu0 0.0
        %2576 = vmatpush1.msra.mxu0 0.0
        %2577 = vmatprep.mubr.f32.mxu0 0.0
        %v2578 = vand.u32 %v2013, 4294901760
        %2579 = vmatmul.mubr.f32.gmra.mrb[0].mxu0 %v2578
        %v2580 = vpop.f32.mrb[0].mxu0
        %v2581 = vadd.f32 %v2462, %v2580
        %v2582 = vpop.f32.mrb[0].mxu0
        %2583 = vdwg.mxu0
        %2584 = vmatprep.subr.mxu0 0.0
        %v2585 = vand.u32 %v2014, 4294901760
        %2586 = vmatpush1.msra.mxu0 %v2585
        %2587 = vmatprep.subr.mxu0 0.0
        %v2588 = vand.u32 %v2015, 4294901760
        %2589 = vmatpush1.msra.mxu0 %v2588
        %2590 = vmatprep.subr.mxu0 0.0
        %v2591 = vand.u32 %v2016, 4294901760
        %2592 = vmatpush1.msra.mxu0 %v2591
        %2593 = vmatprep.subr.mxu0 0.0
        %v2594 = vand.u32 %v2017, 4294901760
        %2595 = vmatpush1.msra.mxu0 %v2594
        %2596 = vmatprep.subr.mxu0 0.0
        %v2597 = vand.u32 %v2018, 4294901760
        %2598 = vmatpush1.msra.mxu0 %v2597
        %2599 = vmatprep.subr.mxu0 0.0
        %v2600 = vand.u32 %v2019, 4294901760
        %2601 = vmatpush1.msra.mxu0 %v2600
        %2602 = vmatprep.subr.mxu0 0.0
        %v2603 = vand.u32 %v2020, 4294901760
        %2604 = vmatpush1.msra.mxu0 %v2603
        %2605 = vmatprep.subr.mxu0 0.0
        %v2606 = vand.u32 %v2021, 4294901760
        %2607 = vmatpush1.msra.mxu0 %v2606
        %2608 = vmatprep.subr.mxu0 0.0
        %v2609 = vand.u32 %v2022, 4294901760
        %2610 = vmatpush1.msra.mxu0 %v2609
        %2611 = vmatprep.subr.mxu0 0.0
        %v2612 = vand.u32 %v2023, 4294901760
        %2613 = vmatpush1.msra.mxu0 %v2612
        %2614 = vmatprep.subr.mxu0 0.0
        %v2615 = vand.u32 %v2024, 4294901760
        %2616 = vmatpush1.msra.mxu0 %v2615
        %2617 = vmatprep.subr.mxu0 0.0
        %v2618 = vand.u32 %v2025, 4294901760
        %2619 = vmatpush1.msra.mxu0 %v2618
        %2620 = vmatprep.subr.mxu0 0.0
        %v2621 = vand.u32 %v2026, 4294901760
        %2622 = vmatpush1.msra.mxu0 %v2621
        %2623 = vmatprep.subr.mxu0 0.0
        %v2624 = vand.u32 %v2027, 4294901760
        %2625 = vmatpush1.msra.mxu0 %v2624
        %2626 = vmatprep.subr.mxu0 0.0
        %v2627 = vand.u32 %v2028, 4294901760
        %2628 = vmatpush1.msra.mxu0 %v2627
        %2629 = vmatprep.subr.mxu0 0.0
        %v2630 = vand.u32 %v2029, 4294901760
        %2631 = vmatpush1.msra.mxu0 %v2630
        %2632 = vmatprep.subr.mxu0 0.0
        %2633 = vmatpush1.msra.mxu0 0.0
        %2634 = vmatprep.subr.mxu0 0.0
        %2635 = vmatpush1.msra.mxu0 0.0
        %2636 = vmatprep.subr.mxu0 0.0
        %2637 = vmatpush1.msra.mxu0 0.0
        %2638 = vmatprep.subr.mxu0 0.0
        %2639 = vmatpush1.msra.mxu0 0.0
        %2640 = vmatprep.subr.mxu0 0.0
        %2641 = vmatpush1.msra.mxu0 0.0
        %2642 = vmatprep.subr.mxu0 0.0
        %2643 = vmatpush1.msra.mxu0 0.0
        %2644 = vmatprep.subr.mxu0 0.0
        %2645 = vmatpush1.msra.mxu0 0.0
        %2646 = vmatprep.subr.mxu0 0.0
        %2647 = vmatpush1.msra.mxu0 0.0
        %2648 = vmatprep.subr.mxu0 0.0
        %2649 = vmatpush1.msra.mxu0 0.0
        %2650 = vmatprep.subr.mxu0 0.0
        %2651 = vmatpush1.msra.mxu0 0.0
        %2652 = vmatprep.subr.mxu0 0.0
        %2653 = vmatpush1.msra.mxu0 0.0
        %2654 = vmatprep.subr.mxu0 0.0
        %2655 = vmatpush1.msra.mxu0 0.0
        %2656 = vmatprep.subr.mxu0 0.0
        %2657 = vmatpush1.msra.mxu0 0.0
        %2658 = vmatprep.subr.mxu0 0.0
        %2659 = vmatpush1.msra.mxu0 0.0
        %2660 = vmatprep.subr.mxu0 0.0
        %2661 = vmatpush1.msra.mxu0 0.0
        %2662 = vmatprep.subr.mxu0 0.0
        %2663 = vmatpush1.msra.mxu0 0.0
        %2664 = vmatprep.mubr.f32.mxu0 0.0
        %v2665 = vand.u32 %v2013, 4294901760
        %2666 = vmatmul.mubr.f32.gmra.mrb[0].mxu0 %v2665
        %v2667 = vpop.f32.mrb[0].mxu0
        %v2668 = vadd.f32 %v2581, %v2667
        %v2669 = vpop.f32.mrb[0].mxu0
        %2670 = vdwg.mxu0
        %2671 = vst.msk [vmem:[#allocation10] sm:$0xff] %vm944, %v2668
        %v2672 = vld [vmem:[#allocation10] sm:$0xff]
        %v2673 = vxor.u32 %v934, 2147483648
        %v2674 = vmul.f32 %v2673, 1.442695
        %v2675 = vpow.pop %v2674
        %v2676 = vadd.f32 %v2675, 1.0
        %v2677 = vrcp.pop %v2676
        %v2678 = vmul.f32 1.0, %v2677
        %v2679 = vmul.f32 %v934, %v2678
        %2681 = vrot.lane.b32.xlu0 %v2679, 64
        %v2682 = vpop.permute.xlu0 %2681
        %v2684 = vmul.f32 %v2672, %v2682
        %v2685 = vld [vmem:[#allocation17] sm:$0xff]
        %v2686 = vld [vmem:[#allocation17 + $0x8] sm:$0xff]
        %v2687 = vld [vmem:[#allocation17 + $0x10] sm:$0xff]
        %v2688 = vld [vmem:[#allocation17 + $0x18] sm:$0xff]
        %v2689 = vld [vmem:[#allocation17 + $0x20] sm:$0xff]
        %v2690 = vld [vmem:[#allocation17 + $0x28] sm:$0xff]
        %v2691 = vld [vmem:[#allocation17 + $0x30] sm:$0xff]
        %v2692 = vld [vmem:[#allocation17 + $0x38] sm:$0xff]
        %v2693 = vld [vmem:[%s9] sm:$0x1]
        %v2695 = vlaneseq
        %v2696 = vshrl.u32 %v2695, 7
        %v2697 = vsub.s32 0, %v2696
        %v2698 = vrot.slane %v2693, %v2697
        %v2701 = vsel %vm944, %v2684, 0
        %2703 = vmatprep.subr.mxu0 0.0
        %v2704 = vand.u32 %v2685, 4294901760
        %2705 = vmatpush1.msra.mxu0 %v2704
        %2706 = vmatprep.subr.mxu0 0.0
        %v2707 = vand.u32 %v2686, 4294901760
        %2708 = vmatpush1.msra.mxu0 %v2707
        %2709 = vmatprep.subr.mxu0 0.0
        %v2710 = vand.u32 %v2687, 4294901760
        %2711 = vmatpush1.msra.mxu0 %v2710
        %2712 = vmatprep.subr.mxu0 0.0
        %v2713 = vand.u32 %v2688, 4294901760
        %2714 = vmatpush1.msra.mxu0 %v2713
        %2715 = vmatprep.subr.mxu0 0.0
        %v2716 = vand.u32 %v2689, 4294901760
        %2717 = vmatpush1.msra.mxu0 %v2716
        %2718 = vmatprep.subr.mxu0 0.0
        %v2719 = vand.u32 %v2690, 4294901760
        %2720 = vmatpush1.msra.mxu0 %v2719
        %2721 = vmatprep.subr.mxu0 0.0
        %v2722 = vand.u32 %v2691, 4294901760
        %2723 = vmatpush1.msra.mxu0 %v2722
        %2724 = vmatprep.subr.mxu0 0.0
        %v2725 = vand.u32 %v2692, 4294901760
        %2726 = vmatpush1.msra.mxu0 %v2725
        %2727 = vmatprep.subr.mxu0 0.0
        %2728 = vmatpush1.msra.mxu0 0.0
        %2729 = vmatprep.subr.mxu0 0.0
        %2730 = vmatpush1.msra.mxu0 0.0
        %2731 = vmatprep.subr.mxu0 0.0
        %2732 = vmatpush1.msra.mxu0 0.0
        %2733 = vmatprep.subr.mxu0 0.0
        %2734 = vmatpush1.msra.mxu0 0.0
        %2735 = vmatprep.subr.mxu0 0.0
        %2736 = vmatpush1.msra.mxu0 0.0
        %2737 = vmatprep.subr.mxu0 0.0
        %2738 = vmatpush1.msra.mxu0 0.0
        %2739 = vmatprep.subr.mxu0 0.0
        %2740 = vmatpush1.msra.mxu0 0.0
        %2741 = vmatprep.subr.mxu0 0.0
        %2742 = vmatpush1.msra.mxu0 0.0
        %2743 = vmatprep.subr.mxu0 0.0
        %2744 = vmatpush1.msra.mxu0 0.0
        %2745 = vmatprep.subr.mxu0 0.0
        %2746 = vmatpush1.msra.mxu0 0.0
        %2747 = vmatprep.subr.mxu0 0.0
        %2748 = vmatpush1.msra.mxu0 0.0
        %2749 = vmatprep.subr.mxu0 0.0
        %2750 = vmatpush1.msra.mxu0 0.0
        %2751 = vmatprep.subr.mxu0 0.0
        %2752 = vmatpush1.msra.mxu0 0.0
        %2753 = vmatprep.subr.mxu0 0.0
        %2754 = vmatpush1.msra.mxu0 0.0
        %2755 = vmatprep.subr.mxu0 0.0
        %2756 = vmatpush1.msra.mxu0 0.0
        %2757 = vmatprep.subr.mxu0 0.0
        %2758 = vmatpush1.msra.mxu0 0.0
        %2759 = vmatprep.subr.mxu0 0.0
        %2760 = vmatpush1.msra.mxu0 0.0
        %2761 = vmatprep.subr.mxu0 0.0
        %2762 = vmatpush1.msra.mxu0 0.0
        %2763 = vmatprep.subr.mxu0 0.0
        %2764 = vmatpush1.msra.mxu0 0.0
        %2765 = vmatprep.subr.mxu0 0.0
        %2766 = vmatpush1.msra.mxu0 0.0
        %2767 = vmatprep.subr.mxu0 0.0
        %2768 = vmatpush1.msra.mxu0 0.0
        %2769 = vmatprep.subr.mxu0 0.0
        %2770 = vmatpush1.msra.mxu0 0.0
        %2771 = vmatprep.subr.mxu0 0.0
        %2772 = vmatpush1.msra.mxu0 0.0
        %2773 = vmatprep.subr.mxu0 0.0
        %2774 = vmatpush1.msra.mxu0 0.0
        %2775 = vmatprep.mubr.f32.mxu0 0.0
        %v2776 = vand.u32 %v2701, 4294901760
        %v2777 = vsub.f32 %v2701, %v2776
        %v2778 = vand.u32 %v2777, 4294901760
        %v2779 = vsub.f32 %v2777, %v2778
        %v2780 = vand.u32 %v2779, 4294901760
        %2781 = vmatmul.mubr.f32.gmra.mrb[0].mxu0 %v2780
        %v2782 = vpop.f32.mrb[0].mxu0
        %v2783 = vadd.f32 %v2698, %v2782
        %v2784 = vpop.f32.mrb[0].mxu0
        %2785 = vdwg.mxu0
        %2786 = vmatprep.subr.mxu0 0.0
        %v2787 = vand.u32 %v2685, 4294901760
        %v2788 = vsub.f32 %v2685, %v2787
        %v2789 = vand.u32 %v2788, 4294901760
        %v2790 = vsub.f32 %v2788, %v2789
        %v2791 = vand.u32 %v2790, 4294901760
        %2792 = vmatpush1.msra.mxu0 %v2791
        %2793 = vmatprep.subr.mxu0 0.0
        %v2794 = vand.u32 %v2686, 4294901760
        %v2795 = vsub.f32 %v2686, %v2794
        %v2796 = vand.u32 %v2795, 4294901760
        %v2797 = vsub.f32 %v2795, %v2796
        %v2798 = vand.u32 %v2797, 4294901760
        %2799 = vmatpush1.msra.mxu0 %v2798
        %2800 = vmatprep.subr.mxu0 0.0
        %v2801 = vand.u32 %v2687, 4294901760
        %v2802 = vsub.f32 %v2687, %v2801
        %v2803 = vand.u32 %v2802, 4294901760
        %v2804 = vsub.f32 %v2802, %v2803
        %v2805 = vand.u32 %v2804, 4294901760
        %2806 = vmatpush1.msra.mxu0 %v2805
        %2807 = vmatprep.subr.mxu0 0.0
        %v2808 = vand.u32 %v2688, 4294901760
        %v2809 = vsub.f32 %v2688, %v2808
        %v2810 = vand.u32 %v2809, 4294901760
        %v2811 = vsub.f32 %v2809, %v2810
        %v2812 = vand.u32 %v2811, 4294901760
        %2813 = vmatpush1.msra.mxu0 %v2812
        %2814 = vmatprep.subr.mxu0 0.0
        %v2815 = vand.u32 %v2689, 4294901760
        %v2816 = vsub.f32 %v2689, %v2815
        %v2817 = vand.u32 %v2816, 4294901760
        %v2818 = vsub.f32 %v2816, %v2817
        %v2819 = vand.u32 %v2818, 4294901760
        %2820 = vmatpush1.msra.mxu0 %v2819
        %2821 = vmatprep.subr.mxu0 0.0
        %v2822 = vand.u32 %v2690, 4294901760
        %v2823 = vsub.f32 %v2690, %v2822
        %v2824 = vand.u32 %v2823, 4294901760
        %v2825 = vsub.f32 %v2823, %v2824
        %v2826 = vand.u32 %v2825, 4294901760
        %2827 = vmatpush1.msra.mxu0 %v2826
        %2828 = vmatprep.subr.mxu0 0.0
        %v2829 = vand.u32 %v2691, 4294901760
        %v2830 = vsub.f32 %v2691, %v2829
        %v2831 = vand.u32 %v2830, 4294901760
        %v2832 = vsub.f32 %v2830, %v2831
        %v2833 = vand.u32 %v2832, 4294901760
        %2834 = vmatpush1.msra.mxu0 %v2833
        %2835 = vmatprep.subr.mxu0 0.0
        %v2836 = vand.u32 %v2692, 4294901760
        %v2837 = vsub.f32 %v2692, %v2836
        %v2838 = vand.u32 %v2837, 4294901760
        %v2839 = vsub.f32 %v2837, %v2838
        %v2840 = vand.u32 %v2839, 4294901760
        %2841 = vmatpush1.msra.mxu0 %v2840
        %2842 = vmatprep.subr.mxu0 0.0
        %2843 = vmatpush1.msra.mxu0 0.0
        %2844 = vmatprep.subr.mxu0 0.0
        %2845 = vmatpush1.msra.mxu0 0.0
        %2846 = vmatprep.subr.mxu0 0.0
        %2847 = vmatpush1.msra.mxu0 0.0
        %2848 = vmatprep.subr.mxu0 0.0
        %2849 = vmatpush1.msra.mxu0 0.0
        %2850 = vmatprep.subr.mxu0 0.0
        %2851 = vmatpush1.msra.mxu0 0.0
        %2852 = vmatprep.subr.mxu0 0.0
        %2853 = vmatpush1.msra.mxu0 0.0
        %2854 = vmatprep.subr.mxu0 0.0
        %2855 = vmatpush1.msra.mxu0 0.0
        %2856 = vmatprep.subr.mxu0 0.0
        %2857 = vmatpush1.msra.mxu0 0.0
        %2858 = vmatprep.subr.mxu0 0.0
        %2859 = vmatpush1.msra.mxu0 0.0
        %2860 = vmatprep.subr.mxu0 0.0
        %2861 = vmatpush1.msra.mxu0 0.0
        %2862 = vmatprep.subr.mxu0 0.0
        %2863 = vmatpush1.msra.mxu0 0.0
        %2864 = vmatprep.subr.mxu0 0.0
        %2865 = vmatpush1.msra.mxu0 0.0
        %2866 = vmatprep.subr.mxu0 0.0
        %2867 = vmatpush1.msra.mxu0 0.0
        %2868 = vmatprep.subr.mxu0 0.0
        %2869 = vmatpush1.msra.mxu0 0.0
        %2870 = vmatprep.subr.mxu0 0.0
        %2871 = vmatpush1.msra.mxu0 0.0
        %2872 = vmatprep.subr.mxu0 0.0
        %2873 = vmatpush1.msra.mxu0 0.0
        %2874 = vmatprep.subr.mxu0 0.0
        %2875 = vmatpush1.msra.mxu0 0.0
        %2876 = vmatprep.subr.mxu0 0.0
        %2877 = vmatpush1.msra.mxu0 0.0
        %2878 = vmatprep.subr.mxu0 0.0
        %2879 = vmatpush1.msra.mxu0 0.0
        %2880 = vmatprep.subr.mxu0 0.0
        %2881 = vmatpush1.msra.mxu0 0.0
        %2882 = vmatprep.subr.mxu0 0.0
        %2883 = vmatpush1.msra.mxu0 0.0
        %2884 = vmatprep.subr.mxu0 0.0
        %2885 = vmatpush1.msra.mxu0 0.0
        %2886 = vmatprep.subr.mxu0 0.0
        %2887 = vmatpush1.msra.mxu0 0.0
        %2888 = vmatprep.subr.mxu0 0.0
        %2889 = vmatpush1.msra.mxu0 0.0
        %2890 = vmatprep.mubr.f32.mxu0 0.0
        %v2891 = vand.u32 %v2701, 4294901760
        %2892 = vmatmul.mubr.f32.gmra.mrb[0].mxu0 %v2891
        %v2893 = vpop.f32.mrb[0].mxu0
        %v2894 = vadd.f32 %v2783, %v2893
        %v2895 = vpop.f32.mrb[0].mxu0
        %2896 = vdwg.mxu0
        %2897 = vmatprep.subr.mxu0 0.0
        %v2898 = vand.u32 %v2685, 4294901760
        %v2899 = vsub.f32 %v2685, %v2898
        %2900 = vmatpush1.msra.mxu0 %v2899
        %2901 = vmatprep.subr.mxu0 0.0
        %v2902 = vand.u32 %v2686, 4294901760
        %v2903 = vsub.f32 %v2686, %v2902
        %2904 = vmatpush1.msra.mxu0 %v2903
        %2905 = vmatprep.subr.mxu0 0.0
        %v2906 = vand.u32 %v2687, 4294901760
        %v2907 = vsub.f32 %v2687, %v2906
        %2908 = vmatpush1.msra.mxu0 %v2907
        %2909 = vmatprep.subr.mxu0 0.0
        %v2910 = vand.u32 %v2688, 4294901760
        %v2911 = vsub.f32 %v2688, %v2910
        %2912 = vmatpush1.msra.mxu0 %v2911
        %2913 = vmatprep.subr.mxu0 0.0
        %v2914 = vand.u32 %v2689, 4294901760
        %v2915 = vsub.f32 %v2689, %v2914
        %2916 = vmatpush1.msra.mxu0 %v2915
        %2917 = vmatprep.subr.mxu0 0.0
        %v2918 = vand.u32 %v2690, 4294901760
        %v2919 = vsub.f32 %v2690, %v2918
        %2920 = vmatpush1.msra.mxu0 %v2919
        %2921 = vmatprep.subr.mxu0 0.0
        %v2922 = vand.u32 %v2691, 4294901760
        %v2923 = vsub.f32 %v2691, %v2922
        %2924 = vmatpush1.msra.mxu0 %v2923
        %2925 = vmatprep.subr.mxu0 0.0
        %v2926 = vand.u32 %v2692, 4294901760
        %v2927 = vsub.f32 %v2692, %v2926
        %2928 = vmatpush1.msra.mxu0 %v2927
        %2929 = vmatprep.subr.mxu0 0.0
        %2930 = vmatpush1.msra.mxu0 0.0
        %2931 = vmatprep.subr.mxu0 0.0
        %2932 = vmatpush1.msra.mxu0 0.0
        %2933 = vmatprep.subr.mxu0 0.0
        %2934 = vmatpush1.msra.mxu0 0.0
        %2935 = vmatprep.subr.mxu0 0.0
        %2936 = vmatpush1.msra.mxu0 0.0
        %2937 = vmatprep.subr.mxu0 0.0
        %2938 = vmatpush1.msra.mxu0 0.0
        %2939 = vmatprep.subr.mxu0 0.0
        %2940 = vmatpush1.msra.mxu0 0.0
        %2941 = vmatprep.subr.mxu0 0.0
        %2942 = vmatpush1.msra.mxu0 0.0
        %2943 = vmatprep.subr.mxu0 0.0
        %2944 = vmatpush1.msra.mxu0 0.0
        %2945 = vmatprep.subr.mxu0 0.0
        %2946 = vmatpush1.msra.mxu0 0.0
        %2947 = vmatprep.subr.mxu0 0.0
        %2948 = vmatpush1.msra.mxu0 0.0
        %2949 = vmatprep.subr.mxu0 0.0
        %2950 = vmatpush1.msra.mxu0 0.0
        %2951 = vmatprep.subr.mxu0 0.0
        %2952 = vmatpush1.msra.mxu0 0.0
        %2953 = vmatprep.subr.mxu0 0.0
        %2954 = vmatpush1.msra.mxu0 0.0
        %2955 = vmatprep.subr.mxu0 0.0
        %2956 = vmatpush1.msra.mxu0 0.0
        %2957 = vmatprep.subr.mxu0 0.0
        %2958 = vmatpush1.msra.mxu0 0.0
        %2959 = vmatprep.subr.mxu0 0.0
        %2960 = vmatpush1.msra.mxu0 0.0
        %2961 = vmatprep.subr.mxu0 0.0
        %2962 = vmatpush1.msra.mxu0 0.0
        %2963 = vmatprep.subr.mxu0 0.0
        %2964 = vmatpush1.msra.mxu0 0.0
        %2965 = vmatprep.subr.mxu0 0.0
        %2966 = vmatpush1.msra.mxu0 0.0
        %2967 = vmatprep.subr.mxu0 0.0
        %2968 = vmatpush1.msra.mxu0 0.0
        %2969 = vmatprep.subr.mxu0 0.0
        %2970 = vmatpush1.msra.mxu0 0.0
        %2971 = vmatprep.subr.mxu0 0.0
        %2972 = vmatpush1.msra.mxu0 0.0
        %2973 = vmatprep.subr.mxu0 0.0
        %2974 = vmatpush1.msra.mxu0 0.0
        %2975 = vmatprep.subr.mxu0 0.0
        %2976 = vmatpush1.msra.mxu0 0.0
        %2977 = vmatprep.mubr.f32.mxu0 0.0
        %v2978 = vand.u32 %v2701, 4294901760
        %v2979 = vsub.f32 %v2701, %v2978
        %2980 = vmatmul.mubr.f32.gmra.mrb[0].mxu0 %v2979
        %v2981 = vpop.f32.mrb[0].mxu0
        %v2982 = vadd.f32 %v2894, %v2981
        %v2983 = vpop.f32.mrb[0].mxu0
        %2984 = vdwg.mxu0
        %2985 = vmatprep.subr.mxu0 0.0
        %v2986 = vand.u32 %v2685, 4294901760
        %2987 = vmatpush1.msra.mxu0 %v2986
        %2988 = vmatprep.subr.mxu0 0.0
        %v2989 = vand.u32 %v2686, 4294901760
        %2990 = vmatpush1.msra.mxu0 %v2989
        %2991 = vmatprep.subr.mxu0 0.0
        %v2992 = vand.u32 %v2687, 4294901760
        %2993 = vmatpush1.msra.mxu0 %v2992
        %2994 = vmatprep.subr.mxu0 0.0
        %v2995 = vand.u32 %v2688, 4294901760
        %2996 = vmatpush1.msra.mxu0 %v2995
        %2997 = vmatprep.subr.mxu0 0.0
        %v2998 = vand.u32 %v2689, 4294901760
        %2999 = vmatpush1.msra.mxu0 %v2998
        %3000 = vmatprep.subr.mxu0 0.0
        %v3001 = vand.u32 %v2690, 4294901760
        %3002 = vmatpush1.msra.mxu0 %v3001
        %3003 = vmatprep.subr.mxu0 0.0
        %v3004 = vand.u32 %v2691, 4294901760
        %3005 = vmatpush1.msra.mxu0 %v3004
        %3006 = vmatprep.subr.mxu0 0.0
        %v3007 = vand.u32 %v2692, 4294901760
        %3008 = vmatpush1.msra.mxu0 %v3007
        %3009 = vmatprep.subr.mxu0 0.0
        %3010 = vmatpush1.msra.mxu0 0.0
        %3011 = vmatprep.subr.mxu0 0.0
        %3012 = vmatpush1.msra.mxu0 0.0
        %3013 = vmatprep.subr.mxu0 0.0
        %3014 = vmatpush1.msra.mxu0 0.0
        %3015 = vmatprep.subr.mxu0 0.0
        %3016 = vmatpush1.msra.mxu0 0.0
        %3017 = vmatprep.subr.mxu0 0.0
        %3018 = vmatpush1.msra.mxu0 0.0
        %3019 = vmatprep.subr.mxu0 0.0
        %3020 = vmatpush1.msra.mxu0 0.0
        %3021 = vmatprep.subr.mxu0 0.0
        %3022 = vmatpush1.msra.mxu0 0.0
        %3023 = vmatprep.subr.mxu0 0.0
        %3024 = vmatpush1.msra.mxu0 0.0
        %3025 = vmatprep.subr.mxu0 0.0
        %3026 = vmatpush1.msra.mxu0 0.0
        %3027 = vmatprep.subr.mxu0 0.0
        %3028 = vmatpush1.msra.mxu0 0.0
        %3029 = vmatprep.subr.mxu0 0.0
        %3030 = vmatpush1.msra.mxu0 0.0
        %3031 = vmatprep.subr.mxu0 0.0
        %3032 = vmatpush1.msra.mxu0 0.0
        %3033 = vmatprep.subr.mxu0 0.0
        %3034 = vmatpush1.msra.mxu0 0.0
        %3035 = vmatprep.subr.mxu0 0.0
        %3036 = vmatpush1.msra.mxu0 0.0
        %3037 = vmatprep.subr.mxu0 0.0
        %3038 = vmatpush1.msra.mxu0 0.0
        %3039 = vmatprep.subr.mxu0 0.0
        %3040 = vmatpush1.msra.mxu0 0.0
        %3041 = vmatprep.subr.mxu0 0.0
        %3042 = vmatpush1.msra.mxu0 0.0
        %3043 = vmatprep.subr.mxu0 0.0
        %3044 = vmatpush1.msra.mxu0 0.0
        %3045 = vmatprep.subr.mxu0 0.0
        %3046 = vmatpush1.msra.mxu0 0.0
        %3047 = vmatprep.subr.mxu0 0.0
        %3048 = vmatpush1.msra.mxu0 0.0
        %3049 = vmatprep.subr.mxu0 0.0
        %3050 = vmatpush1.msra.mxu0 0.0
        %3051 = vmatprep.subr.mxu0 0.0
        %3052 = vmatpush1.msra.mxu0 0.0
        %3053 = vmatprep.subr.mxu0 0.0
        %3054 = vmatpush1.msra.mxu0 0.0
        %3055 = vmatprep.subr.mxu0 0.0
        %3056 = vmatpush1.msra.mxu0 0.0
        %3057 = vmatprep.mubr.f32.mxu0 0.0
        %v3058 = vand.u32 %v2701, 4294901760
        %v3059 = vsub.f32 %v2701, %v3058
        %v3060 = vand.u32 %v3059, 4294901760
        %3061 = vmatmul.mubr.f32.gmra.mrb[0].mxu0 %v3060
        %v3062 = vpop.f32.mrb[0].mxu0
        %v3063 = vadd.f32 %v2982, %v3062
        %v3064 = vpop.f32.mrb[0].mxu0
        %3065 = vdwg.mxu0
        %3066 = vmatprep.subr.mxu0 0.0
        %v3067 = vand.u32 %v2685, 4294901760
        %v3068 = vsub.f32 %v2685, %v3067
        %v3069 = vand.u32 %v3068, 4294901760
        %3070 = vmatpush1.msra.mxu0 %v3069
        %3071 = vmatprep.subr.mxu0 0.0
        %v3072 = vand.u32 %v2686, 4294901760
        %v3073 = vsub.f32 %v2686, %v3072
        %v3074 = vand.u32 %v3073, 4294901760
        %3075 = vmatpush1.msra.mxu0 %v3074
        %3076 = vmatprep.subr.mxu0 0.0
        %v3077 = vand.u32 %v2687, 4294901760
        %v3078 = vsub.f32 %v2687, %v3077
        %v3079 = vand.u32 %v3078, 4294901760
        %3080 = vmatpush1.msra.mxu0 %v3079
        %3081 = vmatprep.subr.mxu0 0.0
        %v3082 = vand.u32 %v2688, 4294901760
        %v3083 = vsub.f32 %v2688, %v3082
        %v3084 = vand.u32 %v3083, 4294901760
        %3085 = vmatpush1.msra.mxu0 %v3084
        %3086 = vmatprep.subr.mxu0 0.0
        %v3087 = vand.u32 %v2689, 4294901760
        %v3088 = vsub.f32 %v2689, %v3087
        %v3089 = vand.u32 %v3088, 4294901760
        %3090 = vmatpush1.msra.mxu0 %v3089
        %3091 = vmatprep.subr.mxu0 0.0
        %v3092 = vand.u32 %v2690, 4294901760
        %v3093 = vsub.f32 %v2690, %v3092
        %v3094 = vand.u32 %v3093, 4294901760
        %3095 = vmatpush1.msra.mxu0 %v3094
        %3096 = vmatprep.subr.mxu0 0.0
        %v3097 = vand.u32 %v2691, 4294901760
        %v3098 = vsub.f32 %v2691, %v3097
        %v3099 = vand.u32 %v3098, 4294901760
        %3100 = vmatpush1.msra.mxu0 %v3099
        %3101 = vmatprep.subr.mxu0 0.0
        %v3102 = vand.u32 %v2692, 4294901760
        %v3103 = vsub.f32 %v2692, %v3102
        %v3104 = vand.u32 %v3103, 4294901760
        %3105 = vmatpush1.msra.mxu0 %v3104
        %3106 = vmatprep.subr.mxu0 0.0
        %3107 = vmatpush1.msra.mxu0 0.0
        %3108 = vmatprep.subr.mxu0 0.0
        %3109 = vmatpush1.msra.mxu0 0.0
        %3110 = vmatprep.subr.mxu0 0.0
        %3111 = vmatpush1.msra.mxu0 0.0
        %3112 = vmatprep.subr.mxu0 0.0
        %3113 = vmatpush1.msra.mxu0 0.0
        %3114 = vmatprep.subr.mxu0 0.0
        %3115 = vmatpush1.msra.mxu0 0.0
        %3116 = vmatprep.subr.mxu0 0.0
        %3117 = vmatpush1.msra.mxu0 0.0
        %3118 = vmatprep.subr.mxu0 0.0
        %3119 = vmatpush1.msra.mxu0 0.0
        %3120 = vmatprep.subr.mxu0 0.0
        %3121 = vmatpush1.msra.mxu0 0.0
        %3122 = vmatprep.subr.mxu0 0.0
        %3123 = vmatpush1.msra.mxu0 0.0
        %3124 = vmatprep.subr.mxu0 0.0
        %3125 = vmatpush1.msra.mxu0 0.0
        %3126 = vmatprep.subr.mxu0 0.0
        %3127 = vmatpush1.msra.mxu0 0.0
        %3128 = vmatprep.subr.mxu0 0.0
        %3129 = vmatpush1.msra.mxu0 0.0
        %3130 = vmatprep.subr.mxu0 0.0
        %3131 = vmatpush1.msra.mxu0 0.0
        %3132 = vmatprep.subr.mxu0 0.0
        %3133 = vmatpush1.msra.mxu0 0.0
        %3134 = vmatprep.subr.mxu0 0.0
        %3135 = vmatpush1.msra.mxu0 0.0
        %3136 = vmatprep.subr.mxu0 0.0
        %3137 = vmatpush1.msra.mxu0 0.0
        %3138 = vmatprep.subr.mxu0 0.0
        %3139 = vmatpush1.msra.mxu0 0.0
        %3140 = vmatprep.subr.mxu0 0.0
        %3141 = vmatpush1.msra.mxu0 0.0
        %3142 = vmatprep.subr.mxu0 0.0
        %3143 = vmatpush1.msra.mxu0 0.0
        %3144 = vmatprep.subr.mxu0 0.0
        %3145 = vmatpush1.msra.mxu0 0.0
        %3146 = vmatprep.subr.mxu0 0.0
        %3147 = vmatpush1.msra.mxu0 0.0
        %3148 = vmatprep.subr.mxu0 0.0
        %3149 = vmatpush1.msra.mxu0 0.0
        %3150 = vmatprep.subr.mxu0 0.0
        %3151 = vmatpush1.msra.mxu0 0.0
        %3152 = vmatprep.subr.mxu0 0.0
        %3153 = vmatpush1.msra.mxu0 0.0
        %3154 = vmatprep.mubr.f32.mxu0 0.0
        %v3155 = vand.u32 %v2701, 4294901760
        %3156 = vmatmul.mubr.f32.gmra.mrb[0].mxu0 %v3155
        %v3157 = vpop.f32.mrb[0].mxu0
        %v3158 = vadd.f32 %v3063, %v3157
        %v3159 = vpop.f32.mrb[0].mxu0
        %3160 = vdwg.mxu0
        %3161 = vmatprep.subr.mxu0 0.0
        %v3162 = vand.u32 %v2685, 4294901760
        %3163 = vmatpush1.msra.mxu0 %v3162
        %3164 = vmatprep.subr.mxu0 0.0
        %v3165 = vand.u32 %v2686, 4294901760
        %3166 = vmatpush1.msra.mxu0 %v3165
        %3167 = vmatprep.subr.mxu0 0.0
        %v3168 = vand.u32 %v2687, 4294901760
        %3169 = vmatpush1.msra.mxu0 %v3168
        %3170 = vmatprep.subr.mxu0 0.0
        %v3171 = vand.u32 %v2688, 4294901760
        %3172 = vmatpush1.msra.mxu0 %v3171
        %3173 = vmatprep.subr.mxu0 0.0
        %v3174 = vand.u32 %v2689, 4294901760
        %3175 = vmatpush1.msra.mxu0 %v3174
        %3176 = vmatprep.subr.mxu0 0.0
        %v3177 = vand.u32 %v2690, 4294901760
        %3178 = vmatpush1.msra.mxu0 %v3177
        %3179 = vmatprep.subr.mxu0 0.0
        %v3180 = vand.u32 %v2691, 4294901760
        %3181 = vmatpush1.msra.mxu0 %v3180
        %3182 = vmatprep.subr.mxu0 0.0
        %v3183 = vand.u32 %v2692, 4294901760
        %3184 = vmatpush1.msra.mxu0 %v3183
        %3185 = vmatprep.subr.mxu0 0.0
        %3186 = vmatpush1.msra.mxu0 0.0
        %3187 = vmatprep.subr.mxu0 0.0
        %3188 = vmatpush1.msra.mxu0 0.0
        %3189 = vmatprep.subr.mxu0 0.0
        %3190 = vmatpush1.msra.mxu0 0.0
        %3191 = vmatprep.subr.mxu0 0.0
        %3192 = vmatpush1.msra.mxu0 0.0
        %3193 = vmatprep.subr.mxu0 0.0
        %3194 = vmatpush1.msra.mxu0 0.0
        %3195 = vmatprep.subr.mxu0 0.0
        %3196 = vmatpush1.msra.mxu0 0.0
        %3197 = vmatprep.subr.mxu0 0.0
        %3198 = vmatpush1.msra.mxu0 0.0
        %3199 = vmatprep.subr.mxu0 0.0
        %3200 = vmatpush1.msra.mxu0 0.0
        %3201 = vmatprep.subr.mxu0 0.0
        %3202 = vmatpush1.msra.mxu0 0.0
        %3203 = vmatprep.subr.mxu0 0.0
        %3204 = vmatpush1.msra.mxu0 0.0
        %3205 = vmatprep.subr.mxu0 0.0
        %3206 = vmatpush1.msra.mxu0 0.0
        %3207 = vmatprep.subr.mxu0 0.0
        %3208 = vmatpush1.msra.mxu0 0.0
        %3209 = vmatprep.subr.mxu0 0.0
        %3210 = vmatpush1.msra.mxu0 0.0
        %3211 = vmatprep.subr.mxu0 0.0
        %3212 = vmatpush1.msra.mxu0 0.0
        %3213 = vmatprep.subr.mxu0 0.0
        %3214 = vmatpush1.msra.mxu0 0.0
        %3215 = vmatprep.subr.mxu0 0.0
        %3216 = vmatpush1.msra.mxu0 0.0
        %3217 = vmatprep.subr.mxu0 0.0
        %3218 = vmatpush1.msra.mxu0 0.0
        %3219 = vmatprep.subr.mxu0 0.0
        %3220 = vmatpush1.msra.mxu0 0.0
        %3221 = vmatprep.subr.mxu0 0.0
        %3222 = vmatpush1.msra.mxu0 0.0
        %3223 = vmatprep.subr.mxu0 0.0
        %3224 = vmatpush1.msra.mxu0 0.0
        %3225 = vmatprep.subr.mxu0 0.0
        %3226 = vmatpush1.msra.mxu0 0.0
        %3227 = vmatprep.subr.mxu0 0.0
        %3228 = vmatpush1.msra.mxu0 0.0
        %3229 = vmatprep.subr.mxu0 0.0
        %3230 = vmatpush1.msra.mxu0 0.0
        %3231 = vmatprep.subr.mxu0 0.0
        %3232 = vmatpush1.msra.mxu0 0.0
        %3233 = vmatprep.mubr.f32.mxu0 0.0
        %v3234 = vand.u32 %v2701, 4294901760
        %3235 = vmatmul.mubr.f32.gmra.mrb[0].mxu0 %v3234
        %v3236 = vpop.f32.mrb[0].mxu0
        %v3237 = vadd.f32 %v3158, %v3236
        %v3238 = vpop.f32.mrb[0].mxu0
        %3239 = vdwg.mxu0
        %3240 = vst [vmem:[%s435] sm:$0xff] %v3237
        %s3241 = sand.u32 %s268, 1
        %s3242 = scalar_lea.sflag [#allocation13], %s3241
        %s3243 = sand.u32 %s268, 1
        %s3244 = smul.addr %s3243, 8
        %s3245 = scalar_lea.vmem [#allocation19], %s3244
        // Predicated region
        $region81: #{tpu_custom_call.1} parent=59 // pred_check
          %p3246 = pneg %p278
        $region82: #{tpu_custom_call.1} parent=59 // pred_check_branch
          %3248 = sbr.rel (%p3246) target = $region84
        $region83: #{tpu_custom_call.1} parent=59 // pred_region
          %s3250 = ssub.s32 128, 128
          %3251 = vsyncadd %s3242, %s3250
          %s3252 = sadd.s32 %s34, %s33
          %s3253 = smul.addr %s3252, 128
          %s3254 = scalar_lea.hbm %s10, %s3253
          %s3256 = sshll.u32 %s3245, 4
          %s3257 = int_to_ptr.vmem [resolvable:$true] %s3256
          %3259 = dma.vmem_to_hbm [thread:$0]  %s3257, 128, %s3254, %s3242
        $region84: #{tpu_custom_call.1} parent=59 // pred_fallthru
          _
      $region60: #{tpu_custom_call.1} parent=5 // pred_fallthru
        _
      %p3260 = scmp.le.s32.totalorder 2, %s24
      // Predicated region
      $region85: #{tpu_custom_call.1} parent=5 // pred_check
        %p3261 = pneg %p3260
      $region86: #{tpu_custom_call.1} parent=5 // pred_check_branch
        %3263 = sbr.rel (%p3261) target = $region88
      $region87: #{tpu_custom_call.1} parent=5 // pred_region
        %s3264 = ssub.s32 %s24, 2
        // Predicated region
        $region89: #{tpu_custom_call.1} parent=87 // pred_check
          %p3265 = pneg %p284
        $region90: #{tpu_custom_call.1} parent=87 // pred_check_branch
          %3267 = sbr.rel (%p3265) target = $region92
        $region91: #{tpu_custom_call.1} parent=87 // pred_region
          %s3268 = sand.u32 %s269, 1
          %s3269 = scalar_lea.sflag [#allocation13], %s3268
          %s3270 = sand.u32 %s269, 1
          %s3271 = smul.addr %s3270, 8
          %s3272 = scalar_lea.vmem [#allocation19], %s3271
          %3273 = dma.done %s3269, 128
        $region92: #{tpu_custom_call.1} parent=87 // pred_fallthru
          _
      $region88: #{tpu_custom_call.1} parent=5 // pred_fallthru
        _
    $region6: #{tpu_custom_call.1} parent=1 // loop_footer
      %s28 = sadd.s32 1, %s24
    $region7: #{tpu_custom_call.1} parent=1 // loop_footer_branch
      %23 = sbr.rel target = $region3
    $region8: #{tpu_custom_call.1} parent=1 // loop_exit
      _
    %3274 = vsyncpa [#allocation12], 1
    %s3275 = scalar_lea.sflag [#allocation12], 1
    %3276 = vsyncpa %s3275, 1
    %3277 = vsyncpa [#allocation15], 1
    %3278 = vsyncpa [#allocation18], 1
    %3279 = vsyncpa [#allocation13], 1
    %s3280 = scalar_lea.sflag [#allocation13], 1
    %3281 = vsyncpa %s3280, 1

</llo_original>
